<compile_context>
chip_gen: v7x
topology: tpu7x:2x2x1
jax: 0.10.0
libtpu: 0.0.40
codegen_flags: <defaults>
</compile_context>

<pallas_src>
import numpy as np
import jax
import jax.numpy as jnp
from jax import lax
from jax.experimental import pallas as pl
from jax.experimental.pallas import tpu as pltpu

H_SP, W_SP = 5, 64           # conv spatial size
P = H_SP * W_SP              # 320 flattened spatial positions (lanes)
PAD = 128                    # lane padding on each side of the scratch slab
PADW = P + 2 * PAD           # 576
C_MID = 16                   # SepConv mid channels (expansion=1 -> 16)
HIDDEN = 64                  # LSTM hidden size
BN_EPS = 1e-5


# -----------------------------------------------------------------------------
# Fused trans kernel: SepConv(1->16) + SepConv(16->1), both branches via grid.
# -----------------------------------------------------------------------------
def _dwconv3x3(x, taps, pad_ref, m_left, m_right):
    """Depthwise 3x3 (padding=1) on a (C, P) flattened slab (P = H*W).

    x:    (C, P) f32 value
    taps: (C, 9) f32 value, row-major 3x3 taps per channel
    pad_ref: (C_MID, PADW) VMEM scratch whose border lanes stay zero
    m_left/m_right: (1, P) bool masks (w != 0 / w != W-1) for column wrap.
    """
    C = x.shape[0]
    pad_ref[0:C, PAD:PAD + P] = x          # aligned interior slab store
    acc = jnp.zeros((C, P), jnp.float32)
    for kh in range(3):
        for kw in range(3):
            d = (kh - 1) * W_SP + (kw - 1)
            shifted = pad_ref[0:C, PAD + d:PAD + d + P]
            if kw == 0:                     # reads w-1: invalid at w == 0
                shifted = jnp.where(m_left, shifted, 0.0)
            elif kw == 2:                   # reads w+1: invalid at w == W-1
                shifted = jnp.where(m_right, shifted, 0.0)
            k = kh * 3 + kw
            acc = acc + taps[:, k:k + 1] * shifted
    return acc


def _pw_bn_relu(x, pw, b):
    """1x1 conv (+folded BN scale) + bias + ReLU as one MXU matmul."""
    if pw.shape[1] == 1:                    # K == 1: plain broadcast multiply
        z = pw * x
    else:
        z = jnp.dot(pw, x, preferred_element_type=jnp.float32)
    return jnp.maximum(z + b, 0.0)


def trans_kernel(x_ref,
                 a_dw1, a_pw1, a_b1, a_dw2, a_pw2, a_b2,
                 b_dw1, b_pw1, b_b1, b_dw2, b_pw2, b_b2,
                 o_ref, pad_ref):
    # Zero the scratch; the border lanes provide the conv zero padding and the
    # interior is fully overwritten before every read.
    pad_ref[...] = jnp.zeros(pad_ref.shape, pad_ref.dtype)
    wpos = lax.broadcasted_iota(jnp.int32, (1, P), 1) & (W_SP - 1)
    m_left = wpos != 0
    m_right = wpos != W_SP - 1

    def sepconv(x, dw1, pw1, b1, dw2, pw2, b2):
        y = _dwconv3x3(x, dw1[...], pad_ref, m_left, m_right)
        y = _pw_bn_relu(y, pw1[...], b1[...])
        y = _dwconv3x3(y, dw2[...], pad_ref, m_left, m_right)
        return _pw_bn_relu(y, pw2[...], b2[...])

    y = sepconv(x_ref[...], a_dw1, a_pw1, a_b1, a_dw2, a_pw2, a_b2)  # (16, P)
    y = sepconv(y, b_dw1, b_pw1, b_b1, b_dw2, b_pw2, b_b2)           # (1, P)
    o_ref[...] = y


_TRANS_WNAMES = ("a_dw1", "a_pw1", "a_b1", "a_dw2", "a_pw2", "a_b2",
                 "b_dw1", "b_pw1", "b_b1", "b_dw2", "b_pw2", "b_b2")


def run_trans_pair(x_flat, tp):
    """Runs trans1 and trans2 in ONE pallas_call (grid=(2,), parallel).

    x_flat: (1, P); tp: dict of per-branch stacked (2, ...) parameters.
    Returns (2, H_SP, W_SP).
    """
    w_specs = [pl.BlockSpec((None,) + tuple(tp[n].shape[1:]),
                            lambda b: (b, 0, 0)) for n in _TRANS_WNAMES]
    out = pl.pallas_call(
        trans_kernel,
        out_shape=jax.ShapeDtypeStruct((2, 1, P), jnp.float32),
        grid=(2,),
        in_specs=[pl.BlockSpec((1, P), lambda b: (0, 0))] + w_specs,
        out_specs=pl.BlockSpec((None, 1, P), lambda b: (b, 0, 0)),
        scratch_shapes=[pltpu.VMEM((C_MID, PADW), jnp.float32)],
        compiler_params=pltpu.CompilerParams(
            dimension_semantics=("parallel",)),
    )(x_flat, *[tp[n] for n in _TRANS_WNAMES])
    return out.reshape(2, H_SP, W_SP)


# -----------------------------------------------------------------------------
# Fused 4-layer LSTM stack: lstm1 (2 layers, no bias) -> sigmoid -> lstm2
# (2 layers, no bias) -> sigmoid, in a single Pallas kernel.
# -----------------------------------------------------------------------------
def run_lstm_stack(x, p1, p2):
    """x: (B, T, 64). Returns (pr, pr1), each (B, T, 64)."""
    B, T, D = x.shape
    H = HIDDEN
    # Row layout t*B + b so each timestep is a leading-index (B, D) block.
    x_flat = jnp.swapaxes(x, 0, 1).reshape(T * B, D)

    def kernel(xf_ref, wi0a, wh0a, wi1a, wh1a, wi0b, wh0b, wi1b, wh1b,
               pr_ref, pr1_ref):
        f32 = jnp.float32

        def cell(g, c_prev):
            s = jax.nn.sigmoid(g)                    # full (B, 4H) slab
            i_g = s[:, 0:H]
            f_g = s[:, H:2 * H]
            o_g = s[:, 3 * H:4 * H]
            g_g = jnp.tanh(g[:, 2 * H:3 * H])
            c_new = f_g * c_prev + i_g * g_g
            return o_g * jnp.tanh(c_new), c_new

        # Hoisted layer-0 input projection of lstm1: one matmul for all T.
        xp = jnp.dot(xf_ref[...], wi0a[...], preferred_element_type=f32)

        z = jnp.zeros((B, H), f32)
        h0a, c0a, h1a, c1a = z, z, z, z
        h0b, c0b, h1b, c1b = z, z, z, z

        for t in range(T):                            # T static & small (5)
            # --- lstm1 (RNN1), layers 0 and 1 ---
            g = xp[t * B:(t + 1) * B, :] + jnp.dot(
                h0a, wh0a[...], preferred_element_type=f32)
            h0a, c0a = cell(g, c0a)
            g = (jnp.dot(h0a, wi1a[...], preferred_element_type=f32)
                 + jnp.dot(h1a, wh1a[...], preferred_element_type=f32))
            h1a, c1a = cell(g, c1a)
            s1 = jax.nn.sigmoid(h1a)
            pr1_ref[t] = s1
            # --- lstm2 (RNN2), fed by sigmoid(lstm1 output) ---
            g = (jnp.dot(s1, wi0b[...], preferred_element_type=f32)
                 + jnp.dot(h0b, wh0b[...], preferred_element_type=f32))
            h0b, c0b = cell(g, c0b)
            g = (jnp.dot(h0b, wi1b[...], preferred_element_type=f32)
                 + jnp.dot(h1b, wh1b[...], preferred_element_type=f32))
            h1b, c1b = cell(g, c1b)
            pr_ref[t] = jax.nn.sigmoid(h1b)

    pr_t, pr1_t = pl.pallas_call(
        kernel,
        out_shape=(jax.ShapeDtypeStruct((T, B, H), jnp.float32),
                   jax.ShapeDtypeStruct((T, B, H), jnp.float32)),
    )(x_flat, p1["wi0"], p1["wh0"], p1["wi1"], p1["wh1"],
      p2["wi0"], p2["wh0"], p2["wi1"], p2["wh1"])
    return jnp.swapaxes(pr_t, 0, 1), jnp.swapaxes(pr1_t, 0, 1)


# -----------------------------------------------------------------------------
# Forward (matches Astrocyte_Network_1.forward semantics)
# -----------------------------------------------------------------------------
def forward(weight_avg, params, i):
    if i == 0:
        x = weight_avg.reshape(1, H_SP, W_SP)
        pr, _ = run_lstm_stack(x, params["lstm1"], params["lstm2"])
        return pr.reshape(-1, W_SP)
    else:
        x_flat = weight_avg.reshape(1, P)
        cat = run_trans_pair(x_flat, params["trans"])        # (2, 5, 64)
        pr, pr1 = run_lstm_stack(cat, params["lstm1"], params["lstm2"])
        return [pr, pr1]


# -----------------------------------------------------------------------------
# Deterministic parameter initialization
# -----------------------------------------------------------------------------
def init_lstm_params(key, input_size, hidden):
    ks = jax.random.split(key, 4)
    bound = 1.0 / np.sqrt(hidden)

    def u(k, shape):
        return jax.random.uniform(k, shape, jnp.float32, -bound, bound)

    # PyTorch stores (4H, in) with gate order i|f|g|o; pass transposed so the
    # kernel computes x @ W. nn.LSTM(bias=False) -> no gate biases.
    return {"wi0": u(ks[0], (4 * hidden, input_size)).T,
            "wh0": u(ks[1], (4 * hidden, hidden)).T,
            "wi1": u(ks[2], (4 * hidden, hidden)).T,
            "wh1": u(ks[3], (4 * hidden, hidden)).T}


def init_sepconv_params(key, cin, cout):
    ks = jax.random.split(key, 4)
    dw1 = jax.random.normal(ks[0], (cin, 3, 3), jnp.float32) * 0.2
    pw1 = jax.random.normal(ks[1], (cin, cin), jnp.float32) * 0.2
    dw2 = jax.random.normal(ks[2], (cin, 3, 3), jnp.float32) * 0.2
    pw2 = jax.random.normal(ks[3], (cout, cin), jnp.float32) * 0.2
    # Eval-mode BatchNorm with default stats folded into the 1x1 convs.
    s1 = 1.0 / np.sqrt(1.0 + BN_EPS)
    s2 = 1.0 / np.sqrt(1.0 + BN_EPS)
    return {"dw1": dw1.reshape(cin, 9), "pw1": pw1 * s1,
            "b1": jnp.zeros((cin, 1), jnp.float32),
            "dw2": dw2.reshape(cin, 9), "pw2": pw2 * s2,
            "b2": jnp.zeros((cout, 1), jnp.float32),
            "dw1_k": dw1, "dw2_k": dw2}   # unflattened copies for the reference


def stack_trans_params(t1, t2):
    """Stack trans1/trans2 params along a leading branch dim of 2."""
    out = {}
    for blk, tag in ((0, "a"), (1, "b")):
        for f in ("dw1", "pw1", "b1", "dw2", "pw2", "b2"):
            out[f"{tag}_{f}"] = jnp.stack([t1[blk][f], t2[blk][f]], axis=0)
    return out


# -----------------------------------------------------------------------------
# Pure-JAX references (correctness checking only)
# -----------------------------------------------------------------------------
def ref_lstm(x, p):
    B, T, _ = x.shape
    H = HIDDEN
    h0 = jnp.zeros((B, H)); c0 = jnp.zeros((B, H))
    h1 = jnp.zeros((B, H)); c1 = jnp.zeros((B, H))
    outs = []
    for t in range(T):
        g = x[:, t, :] @ p["wi0"] + h0 @ p["wh0"]
        i, f, gg, o = jnp.split(g, 4, axis=1)
        c0 = jax.nn.sigmoid(f) * c0 + jax.nn.sigmoid(i) * jnp.tanh(gg)
        h0 = jax.nn.sigmoid(o) * jnp.tanh(c0)
        g = h0 @ p["wi1"] + h1 @ p["wh1"]
        i, f, gg, o = jnp.split(g, 4, axis=1)
        c1 = jax.nn.sigmoid(f) * c1 + jax.nn.sigmoid(i) * jnp.tanh(gg)
        h1 = jax.nn.sigmoid(o) * jnp.tanh(c1)
        outs.append(jax.nn.sigmoid(h1))
    return jnp.stack(outs, axis=1)


def ref_sepconv(x, p):
    xn = x[None]

    def dwconv(y, k):
        c = y.shape[1]
        return lax.conv_general_dilated(
            y, k[:, None, :, :], (1, 1), ((1, 1), (1, 1)),
            feature_group_count=c, dimension_numbers=("NCHW", "OIHW", "NCHW"))

    def pwconv(y, w, b):
        z = lax.conv_general_dilated(
            y, w[:, :, None, None], (1, 1), ((0, 0), (0, 0)),
            dimension_numbers=("NCHW", "OIHW", "NCHW"))
        return jax.nn.relu(z + b[None, :, :, None])

    y = dwconv(xn, p["dw1_k"]); y = pwconv(y, p["pw1"], p["b1"])
    y = dwconv(y, p["dw2_k"]); y = pwconv(y, p["pw2"], p["b2"])
    return y[0]


def ref_trans(x_chw, plist):
    y = ref_sepconv(x_chw, plist[0])
    return ref_sepconv(y, plist[1])


# -----------------------------------------------------------------------------
if __name__ == "__main__":
    key = jax.random.PRNGKey(0)
    k_in, k_l1, k_l2, k_t1a, k_t1b, k_t2a, k_t2b = jax.random.split(key, 7)

    weight_avg = jax.random.normal(k_in, (H_SP, W_SP), jnp.float32)

    t1 = [init_sepconv_params(k_t1a, 1, C_MID),
          init_sepconv_params(k_t1b, C_MID, 1)]
    t2 = [init_sepconv_params(k_t2a, 1, C_MID),
          init_sepconv_params(k_t2b, C_MID, 1)]
    params = {"lstm1": init_lstm_params(k_l1, 64, 64),
              "lstm2": init_lstm_params(k_l2, 64, 64),
              "trans": stack_trans_params(t1, t2)}

    fwd0 = jax.jit(lambda wa, p: forward(wa, p, 0))
    fwd1 = jax.jit(lambda wa, p: forward(wa, p, 1))

    out0 = jax.block_until_ready(fwd0(weight_avg, params))          # branch 0
    out1 = [jax.block_until_ready(o) for o in fwd1(weight_avg, params)]  # br 1

    # ---- pure-JAX reference checks ----
    ref0 = ref_lstm(ref_lstm(weight_avg.reshape(1, H_SP, W_SP),
                             params["lstm1"]),
                    params["lstm2"]).reshape(-1, W_SP)

    x_chw = weight_avg.reshape(1, H_SP, W_SP)
    ref_cat = jnp.concatenate([ref_trans(x_chw, t1), ref_trans(x_chw, t2)],
                              axis=0)                                 # (2,5,64)
    ref_pr1 = ref_lstm(ref_cat, params["lstm1"])
    ref_pr = ref_lstm(ref_pr1, params["lstm2"])

    assert out0.shape == (H_SP, W_SP)
    np.testing.assert_allclose(np.asarray(out0), np.asarray(ref0),
                               rtol=1e-4, atol=1e-4)
    for got, want in zip(out1, [ref_pr, ref_pr1]):
        assert got.shape == (2, H_SP, W_SP)
        np.testing.assert_allclose(np.asarray(got), np.asarray(want),
                                   rtol=1e-4, atol=1e-4)

    print("KERNEL_OK")
</pallas_src>

<mosaic_0001>
module attributes {stable_mosaic.version = 11 : i64} {
  func.func @kernel(%arg0: memref<5x64xf32, #tpu.memory_space<vmem>>, %arg1: memref<64x256xf32, #tpu.memory_space<vmem>>, %arg2: memref<64x256xf32, #tpu.memory_space<vmem>>, %arg3: memref<64x256xf32, #tpu.memory_space<vmem>>, %arg4: memref<64x256xf32, #tpu.memory_space<vmem>>, %arg5: memref<64x256xf32, #tpu.memory_space<vmem>>, %arg6: memref<64x256xf32, #tpu.memory_space<vmem>>, %arg7: memref<64x256xf32, #tpu.memory_space<vmem>>, %arg8: memref<64x256xf32, #tpu.memory_space<vmem>>, %arg9: memref<5x1x64xf32, #tpu.memory_space<vmem>>, %arg10: memref<5x1x64xf32, #tpu.memory_space<vmem>>) attributes {dimension_semantics = [], scalar_prefetch = 0 : i64, scratch_operands = 0 : i64, tpu.core_type = #tpu.core_type<tc>} {
    %c0 = arith.constant 0 : index
    %c0_0 = arith.constant 0 : index
    %0 = vector.load %arg0[%c0, %c0_0] : memref<5x64xf32, #tpu.memory_space<vmem>>, vector<5x64xf32>
    %c0_1 = arith.constant 0 : index
    %c0_2 = arith.constant 0 : index
    %1 = vector.load %arg1[%c0_1, %c0_2] : memref<64x256xf32, #tpu.memory_space<vmem>>, vector<64x256xf32>
    %cst = arith.constant dense<0.000000e+00> : vector<5x256xf32>
    %2 = tpu.matmul %0, %1, %cst {dimension_numbers = #tpu.dot_dimension_numbers<[1], [0], [0], [1], [0, 0, 1, 1], [], []>} : vector<5x64xf32>, vector<64x256xf32>, vector<5x256xf32> -> vector<5x256xf32>
    %cst_3 = arith.constant 0.000000e+00 : f32
    %3 = vector.broadcast %cst_3 : f32 to vector<1x64xf32>
    %4 = vector.extract_strided_slice %2 {offsets = [0, 0], sizes = [1, 256], strides = [1, 1]} : vector<5x256xf32> to vector<1x256xf32>
    %c0_4 = arith.constant 0 : index
    %c0_5 = arith.constant 0 : index
    %5 = vector.load %arg2[%c0_4, %c0_5] : memref<64x256xf32, #tpu.memory_space<vmem>>, vector<64x256xf32>
    %cst_6 = arith.constant dense<0.000000e+00> : vector<1x256xf32>
    %6 = tpu.matmul %3, %5, %cst_6 {dimension_numbers = #tpu.dot_dimension_numbers<[1], [0], [0], [1], [0, 0, 1, 1], [], []>} : vector<1x64xf32>, vector<64x256xf32>, vector<1x256xf32> -> vector<1x256xf32>
    %7 = arith.addf %4, %6 : vector<1x256xf32>
    %8 = arith.negf %7 : vector<1x256xf32>
    %9 = math.exp %8 : vector<1x256xf32>
    %cst_7 = arith.constant 1.000000e+00 : f32
    %10 = vector.broadcast %cst_7 : f32 to vector<1x256xf32>
    %11 = arith.addf %10, %9 : vector<1x256xf32>
    %12 = arith.divf %10, %11 : vector<1x256xf32>
    %13 = vector.extract_strided_slice %12 {offsets = [0, 0], sizes = [1, 64], strides = [1, 1]} : vector<1x256xf32> to vector<1x64xf32>
    %14 = vector.extract_strided_slice %12 {offsets = [0, 64], sizes = [1, 64], strides = [1, 1]} : vector<1x256xf32> to vector<1x64xf32>
    %15 = vector.extract_strided_slice %12 {offsets = [0, 192], sizes = [1, 64], strides = [1, 1]} : vector<1x256xf32> to vector<1x64xf32>
    %16 = vector.extract_strided_slice %7 {offsets = [0, 128], sizes = [1, 64], strides = [1, 1]} : vector<1x256xf32> to vector<1x64xf32>
    %17 = math.tanh %16 : vector<1x64xf32>
    %18 = arith.mulf %14, %3 : vector<1x64xf32>
    %19 = arith.mulf %13, %17 : vector<1x64xf32>
    %20 = arith.addf %18, %19 : vector<1x64xf32>
    %21 = math.tanh %20 : vector<1x64xf32>
    %22 = arith.mulf %15, %21 : vector<1x64xf32>
    %c0_8 = arith.constant 0 : index
    %c0_9 = arith.constant 0 : index
    %23 = vector.load %arg3[%c0_8, %c0_9] : memref<64x256xf32, #tpu.memory_space<vmem>>, vector<64x256xf32>
    %cst_10 = arith.constant dense<0.000000e+00> : vector<1x256xf32>
    %24 = tpu.matmul %22, %23, %cst_10 {dimension_numbers = #tpu.dot_dimension_numbers<[1], [0], [0], [1], [0, 0, 1, 1], [], []>} : vector<1x64xf32>, vector<64x256xf32>, vector<1x256xf32> -> vector<1x256xf32>
    %c0_11 = arith.constant 0 : index
    %c0_12 = arith.constant 0 : index
    %25 = vector.load %arg4[%c0_11, %c0_12] : memref<64x256xf32, #tpu.memory_space<vmem>>, vector<64x256xf32>
    %cst_13 = arith.constant dense<0.000000e+00> : vector<1x256xf32>
    %26 = tpu.matmul %3, %25, %cst_13 {dimension_numbers = #tpu.dot_dimension_numbers<[1], [0], [0], [1], [0, 0, 1, 1], [], []>} : vector<1x64xf32>, vector<64x256xf32>, vector<1x256xf32> -> vector<1x256xf32>
    %27 = arith.addf %24, %26 : vector<1x256xf32>
    %28 = arith.negf %27 : vector<1x256xf32>
    %29 = math.exp %28 : vector<1x256xf32>
    %cst_14 = arith.constant 1.000000e+00 : f32
    %30 = vector.broadcast %cst_14 : f32 to vector<1x256xf32>
    %31 = arith.addf %30, %29 : vector<1x256xf32>
    %32 = arith.divf %30, %31 : vector<1x256xf32>
    %33 = vector.extract_strided_slice %32 {offsets = [0, 0], sizes = [1, 64], strides = [1, 1]} : vector<1x256xf32> to vector<1x64xf32>
    %34 = vector.extract_strided_slice %32 {offsets = [0, 64], sizes = [1, 64], strides = [1, 1]} : vector<1x256xf32> to vector<1x64xf32>
    %35 = vector.extract_strided_slice %32 {offsets = [0, 192], sizes = [1, 64], strides = [1, 1]} : vector<1x256xf32> to vector<1x64xf32>
    %36 = vector.extract_strided_slice %27 {offsets = [0, 128], sizes = [1, 64], strides = [1, 1]} : vector<1x256xf32> to vector<1x64xf32>
    %37 = math.tanh %36 : vector<1x64xf32>
    %38 = arith.mulf %34, %3 : vector<1x64xf32>
    %39 = arith.mulf %33, %37 : vector<1x64xf32>
    %40 = arith.addf %38, %39 : vector<1x64xf32>
    %41 = math.tanh %40 : vector<1x64xf32>
    %42 = arith.mulf %35, %41 : vector<1x64xf32>
    %43 = arith.negf %42 : vector<1x64xf32>
    %44 = math.exp %43 : vector<1x64xf32>
    %cst_15 = arith.constant 1.000000e+00 : f32
    %45 = vector.broadcast %cst_15 : f32 to vector<1x64xf32>
    %46 = arith.addf %45, %44 : vector<1x64xf32>
    %47 = arith.divf %45, %46 : vector<1x64xf32>
    %c0_16 = arith.constant 0 : index
    %c0_17 = arith.constant 0 : index
    %c0_18 = arith.constant 0 : index
    %48 = vector.load %arg10[%c0_16, %c0_17, %c0_18] : memref<5x1x64xf32, #tpu.memory_space<vmem>>, vector<1x1x64xf32>
    %49 = vector.shape_cast %48 : vector<1x1x64xf32> to vector<1x64xf32>
    %50 = vector.shape_cast %47 : vector<1x64xf32> to vector<1x1x64xf32>
    tpu.vector_store %arg10[%c0_16, %c0_17, %c0_18], %50 {strides = array<i32>} : memref<5x1x64xf32, #tpu.memory_space<vmem>>, vector<1x1x64xf32>,
    %c0_19 = arith.constant 0 : index
    %c0_20 = arith.constant 0 : index
    %51 = vector.load %arg5[%c0_19, %c0_20] : memref<64x256xf32, #tpu.memory_space<vmem>>, vector<64x256xf32>
    %cst_21 = arith.constant dense<0.000000e+00> : vector<1x256xf32>
    %52 = tpu.matmul %47, %51, %cst_21 {dimension_numbers = #tpu.dot_dimension_numbers<[1], [0], [0], [1], [0, 0, 1, 1], [], []>} : vector<1x64xf32>, vector<64x256xf32>, vector<1x256xf32> -> vector<1x256xf32>
    %c0_22 = arith.constant 0 : index
    %c0_23 = arith.constant 0 : index
    %53 = vector.load %arg6[%c0_22, %c0_23] : memref<64x256xf32, #tpu.memory_space<vmem>>, vector<64x256xf32>
    %cst_24 = arith.constant dense<0.000000e+00> : vector<1x256xf32>
    %54 = tpu.matmul %3, %53, %cst_24 {dimension_numbers = #tpu.dot_dimension_numbers<[1], [0], [0], [1], [0, 0, 1, 1], [], []>} : vector<1x64xf32>, vector<64x256xf32>, vector<1x256xf32> -> vector<1x256xf32>
    %55 = arith.addf %52, %54 : vector<1x256xf32>
    %56 = arith.negf %55 : vector<1x256xf32>
    %57 = math.exp %56 : vector<1x256xf32>
    %cst_25 = arith.constant 1.000000e+00 : f32
    %58 = vector.broadcast %cst_25 : f32 to vector<1x256xf32>
    %59 = arith.addf %58, %57 : vector<1x256xf32>
    %60 = arith.divf %58, %59 : vector<1x256xf32>
    %61 = vector.extract_strided_slice %60 {offsets = [0, 0], sizes = [1, 64], strides = [1, 1]} : vector<1x256xf32> to vector<1x64xf32>
    %62 = vector.extract_strided_slice %60 {offsets = [0, 64], sizes = [1, 64], strides = [1, 1]} : vector<1x256xf32> to vector<1x64xf32>
    %63 = vector.extract_strided_slice %60 {offsets = [0, 192], sizes = [1, 64], strides = [1, 1]} : vector<1x256xf32> to vector<1x64xf32>
    %64 = vector.extract_strided_slice %55 {offsets = [0, 128], sizes = [1, 64], strides = [1, 1]} : vector<1x256xf32> to vector<1x64xf32>
    %65 = math.tanh %64 : vector<1x64xf32>
    %66 = arith.mulf %62, %3 : vector<1x64xf32>
    %67 = arith.mulf %61, %65 : vector<1x64xf32>
    %68 = arith.addf %66, %67 : vector<1x64xf32>
    %69 = math.tanh %68 : vector<1x64xf32>
    %70 = arith.mulf %63, %69 : vector<1x64xf32>
    %c0_26 = arith.constant 0 : index
    %c0_27 = arith.constant 0 : index
    %71 = vector.load %arg7[%c0_26, %c0_27] : memref<64x256xf32, #tpu.memory_space<vmem>>, vector<64x256xf32>
    %cst_28 = arith.constant dense<0.000000e+00> : vector<1x256xf32>
    %72 = tpu.matmul %70, %71, %cst_28 {dimension_numbers = #tpu.dot_dimension_numbers<[1], [0], [0], [1], [0, 0, 1, 1], [], []>} : vector<1x64xf32>, vector<64x256xf32>, vector<1x256xf32> -> vector<1x256xf32>
    %c0_29 = arith.constant 0 : index
    %c0_30 = arith.constant 0 : index
    %73 = vector.load %arg8[%c0_29, %c0_30] : memref<64x256xf32, #tpu.memory_space<vmem>>, vector<64x256xf32>
    %cst_31 = arith.constant dense<0.000000e+00> : vector<1x256xf32>
    %74 = tpu.matmul %3, %73, %cst_31 {dimension_numbers = #tpu.dot_dimension_numbers<[1], [0], [0], [1], [0, 0, 1, 1], [], []>} : vector<1x64xf32>, vector<64x256xf32>, vector<1x256xf32> -> vector<1x256xf32>
    %75 = arith.addf %72, %74 : vector<1x256xf32>
    %76 = arith.negf %75 : vector<1x256xf32>
    %77 = math.exp %76 : vector<1x256xf32>
    %cst_32 = arith.constant 1.000000e+00 : f32
    %78 = vector.broadcast %cst_32 : f32 to vector<1x256xf32>
    %79 = arith.addf %78, %77 : vector<1x256xf32>
    %80 = arith.divf %78, %79 : vector<1x256xf32>
    %81 = vector.extract_strided_slice %80 {offsets = [0, 0], sizes = [1, 64], strides = [1, 1]} : vector<1x256xf32> to vector<1x64xf32>
    %82 = vector.extract_strided_slice %80 {offsets = [0, 64], sizes = [1, 64], strides = [1, 1]} : vector<1x256xf32> to vector<1x64xf32>
    %83 = vector.extract_strided_slice %80 {offsets = [0, 192], sizes = [1, 64], strides = [1, 1]} : vector<1x256xf32> to vector<1x64xf32>
    %84 = vector.extract_strided_slice %75 {offsets = [0, 128], sizes = [1, 64], strides = [1, 1]} : vector<1x256xf32> to vector<1x64xf32>
    %85 = math.tanh %84 : vector<1x64xf32>
    %86 = arith.mulf %82, %3 : vector<1x64xf32>
    %87 = arith.mulf %81, %85 : vector<1x64xf32>
    %88 = arith.addf %86, %87 : vector<1x64xf32>
    %89 = math.tanh %88 : vector<1x64xf32>
    %90 = arith.mulf %83, %89 : vector<1x64xf32>
    %91 = arith.negf %90 : vector<1x64xf32>
    %92 = math.exp %91 : vector<1x64xf32>
    %cst_33 = arith.constant 1.000000e+00 : f32
    %93 = vector.broadcast %cst_33 : f32 to vector<1x64xf32>
    %94 = arith.addf %93, %92 : vector<1x64xf32>
    %95 = arith.divf %93, %94 : vector<1x64xf32>
    %c0_34 = arith.constant 0 : index
    %c0_35 = arith.constant 0 : index
    %c0_36 = arith.constant 0 : index
    %96 = vector.load %arg9[%c0_34, %c0_35, %c0_36] : memref<5x1x64xf32, #tpu.memory_space<vmem>>, vector<1x1x64xf32>
    %97 = vector.shape_cast %96 : vector<1x1x64xf32> to vector<1x64xf32>
    %98 = vector.shape_cast %95 : vector<1x64xf32> to vector<1x1x64xf32>
    tpu.vector_store %arg9[%c0_34, %c0_35, %c0_36], %98 {strides = array<i32>} : memref<5x1x64xf32, #tpu.memory_space<vmem>>, vector<1x1x64xf32>,
    %99 = vector.extract_strided_slice %2 {offsets = [1, 0], sizes = [1, 256], strides = [1, 1]} : vector<5x256xf32> to vector<1x256xf32>
    %c0_37 = arith.constant 0 : index
    %c0_38 = arith.constant 0 : index
    %100 = vector.load %arg2[%c0_37, %c0_38] : memref<64x256xf32, #tpu.memory_space<vmem>>, vector<64x256xf32>
    %cst_39 = arith.constant dense<0.000000e+00> : vector<1x256xf32>
    %101 = tpu.matmul %22, %100, %cst_39 {dimension_numbers = #tpu.dot_dimension_numbers<[1], [0], [0], [1], [0, 0, 1, 1], [], []>} : vector<1x64xf32>, vector<64x256xf32>, vector<1x256xf32> -> vector<1x256xf32>
    %102 = arith.addf %99, %101 : vector<1x256xf32>
    %103 = arith.negf %102 : vector<1x256xf32>
    %104 = math.exp %103 : vector<1x256xf32>
    %cst_40 = arith.constant 1.000000e+00 : f32
    %105 = vector.broadcast %cst_40 : f32 to vector<1x256xf32>
    %106 = arith.addf %105, %104 : vector<1x256xf32>
    %107 = arith.divf %105, %106 : vector<1x256xf32>
    %108 = vector.extract_strided_slice %107 {offsets = [0, 0], sizes = [1, 64], strides = [1, 1]} : vector<1x256xf32> to vector<1x64xf32>
    %109 = vector.extract_strided_slice %107 {offsets = [0, 64], sizes = [1, 64], strides = [1, 1]} : vector<1x256xf32> to vector<1x64xf32>
    %110 = vector.extract_strided_slice %107 {offsets = [0, 192], sizes = [1, 64], strides = [1, 1]} : vector<1x256xf32> to vector<1x64xf32>
    %111 = vector.extract_strided_slice %102 {offsets = [0, 128], sizes = [1, 64], strides = [1, 1]} : vector<1x256xf32> to vector<1x64xf32>
    %112 = math.tanh %111 : vector<1x64xf32>
    %113 = arith.mulf %109, %20 : vector<1x64xf32>
    %114 = arith.mulf %108, %112 : vector<1x64xf32>
    %115 = arith.addf %113, %114 : vector<1x64xf32>
    %116 = math.tanh %115 : vector<1x64xf32>
    %117 = arith.mulf %110, %116 : vector<1x64xf32>
    %c0_41 = arith.constant 0 : index
    %c0_42 = arith.constant 0 : index
    %118 = vector.load %arg3[%c0_41, %c0_42] : memref<64x256xf32, #tpu.memory_space<vmem>>, vector<64x256xf32>
    %cst_43 = arith.constant dense<0.000000e+00> : vector<1x256xf32>
    %119 = tpu.matmul %117, %118, %cst_43 {dimension_numbers = #tpu.dot_dimension_numbers<[1], [0], [0], [1], [0, 0, 1, 1], [], []>} : vector<1x64xf32>, vector<64x256xf32>, vector<1x256xf32> -> vector<1x256xf32>
    %c0_44 = arith.constant 0 : index
    %c0_45 = arith.constant 0 : index
    %120 = vector.load %arg4[%c0_44, %c0_45] : memref<64x256xf32, #tpu.memory_space<vmem>>, vector<64x256xf32>
    %cst_46 = arith.constant dense<0.000000e+00> : vector<1x256xf32>
    %121 = tpu.matmul %42, %120, %cst_46 {dimension_numbers = #tpu.dot_dimension_numbers<[1], [0], [0], [1], [0, 0, 1, 1], [], []>} : vector<1x64xf32>, vector<64x256xf32>, vector<1x256xf32> -> vector<1x256xf32>
    %122 = arith.addf %119, %121 : vector<1x256xf32>
    %123 = arith.negf %122 : vector<1x256xf32>
    %124 = math.exp %123 : vector<1x256xf32>
    %cst_47 = arith.constant 1.000000e+00 : f32
    %125 = vector.broadcast %cst_47 : f32 to vector<1x256xf32>
    %126 = arith.addf %125, %124 : vector<1x256xf32>
    %127 = arith.divf %125, %126 : vector<1x256xf32>
    %128 = vector.extract_strided_slice %127 {offsets = [0, 0], sizes = [1, 64], strides = [1, 1]} : vector<1x256xf32> to vector<1x64xf32>
    %129 = vector.extract_strided_slice %127 {offsets = [0, 64], sizes = [1, 64], strides = [1, 1]} : vector<1x256xf32> to vector<1x64xf32>
    %130 = vector.extract_strided_slice %127 {offsets = [0, 192], sizes = [1, 64], strides = [1, 1]} : vector<1x256xf32> to vector<1x64xf32>
    %131 = vector.extract_strided_slice %122 {offsets = [0, 128], sizes = [1, 64], strides = [1, 1]} : vector<1x256xf32> to vector<1x64xf32>
    %132 = math.tanh %131 : vector<1x64xf32>
    %133 = arith.mulf %129, %40 : vector<1x64xf32>
    %134 = arith.mulf %128, %132 : vector<1x64xf32>
    %135 = arith.addf %133, %134 : vector<1x64xf32>
    %136 = math.tanh %135 : vector<1x64xf32>
    %137 = arith.mulf %130, %136 : vector<1x64xf32>
    %138 = arith.negf %137 : vector<1x64xf32>
    %139 = math.exp %138 : vector<1x64xf32>
    %cst_48 = arith.constant 1.000000e+00 : f32
    %140 = vector.broadcast %cst_48 : f32 to vector<1x64xf32>
    %141 = arith.addf %140, %139 : vector<1x64xf32>
    %142 = arith.divf %140, %141 : vector<1x64xf32>
    %c1 = arith.constant 1 : index
    %c0_49 = arith.constant 0 : index
    %c0_50 = arith.constant 0 : index
    %143 = vector.load %arg10[%c1, %c0_49, %c0_50] : memref<5x1x64xf32, #tpu.memory_space<vmem>>, vector<1x1x64xf32>
    %144 = vector.shape_cast %143 : vector<1x1x64xf32> to vector<1x64xf32>
    %145 = vector.shape_cast %142 : vector<1x64xf32> to vector<1x1x64xf32>
    tpu.vector_store %arg10[%c1, %c0_49, %c0_50], %145 {strides = array<i32>} : memref<5x1x64xf32, #tpu.memory_space<vmem>>, vector<1x1x64xf32>,
    %c0_51 = arith.constant 0 : index
    %c0_52 = arith.constant 0 : index
    %146 = vector.load %arg5[%c0_51, %c0_52] : memref<64x256xf32, #tpu.memory_space<vmem>>, vector<64x256xf32>
    %cst_53 = arith.constant dense<0.000000e+00> : vector<1x256xf32>
    %147 = tpu.matmul %142, %146, %cst_53 {dimension_numbers = #tpu.dot_dimension_numbers<[1], [0], [0], [1], [0, 0, 1, 1], [], []>} : vector<1x64xf32>, vector<64x256xf32>, vector<1x256xf32> -> vector<1x256xf32>
    %c0_54 = arith.constant 0 : index
    %c0_55 = arith.constant 0 : index
    %148 = vector.load %arg6[%c0_54, %c0_55] : memref<64x256xf32, #tpu.memory_space<vmem>>, vector<64x256xf32>
    %cst_56 = arith.constant dense<0.000000e+00> : vector<1x256xf32>
    %149 = tpu.matmul %70, %148, %cst_56 {dimension_numbers = #tpu.dot_dimension_numbers<[1], [0], [0], [1], [0, 0, 1, 1], [], []>} : vector<1x64xf32>, vector<64x256xf32>, vector<1x256xf32> -> vector<1x256xf32>
    %150 = arith.addf %147, %149 : vector<1x256xf32>
    %151 = arith.negf %150 : vector<1x256xf32>
    %152 = math.exp %151 : vector<1x256xf32>
    %cst_57 = arith.constant 1.000000e+00 : f32
    %153 = vector.broadcast %cst_57 : f32 to vector<1x256xf32>
    %154 = arith.addf %153, %152 : vector<1x256xf32>
    %155 = arith.divf %153, %154 : vector<1x256xf32>
    %156 = vector.extract_strided_slice %155 {offsets = [0, 0], sizes = [1, 64], strides = [1, 1]} : vector<1x256xf32> to vector<1x64xf32>
    %157 = vector.extract_strided_slice %155 {offsets = [0, 64], sizes = [1, 64], strides = [1, 1]} : vector<1x256xf32> to vector<1x64xf32>
    %158 = vector.extract_strided_slice %155 {offsets = [0, 192], sizes = [1, 64], strides = [1, 1]} : vector<1x256xf32> to vector<1x64xf32>
    %159 = vector.extract_strided_slice %150 {offsets = [0, 128], sizes = [1, 64], strides = [1, 1]} : vector<1x256xf32> to vector<1x64xf32>
    %160 = math.tanh %159 : vector<1x64xf32>
    %161 = arith.mulf %157, %68 : vector<1x64xf32>
    %162 = arith.mulf %156, %160 : vector<1x64xf32>
    %163 = arith.addf %161, %162 : vector<1x64xf32>
    %164 = math.tanh %163 : vector<1x64xf32>
    %165 = arith.mulf %158, %164 : vector<1x64xf32>
    %c0_58 = arith.constant 0 : index
    %c0_59 = arith.constant 0 : index
    %166 = vector.load %arg7[%c0_58, %c0_59] : memref<64x256xf32, #tpu.memory_space<vmem>>, vector<64x256xf32>
    %cst_60 = arith.constant dense<0.000000e+00> : vector<1x256xf32>
    %167 = tpu.matmul %165, %166, %cst_60 {dimension_numbers = #tpu.dot_dimension_numbers<[1], [0], [0], [1], [0, 0, 1, 1], [], []>} : vector<1x64xf32>, vector<64x256xf32>, vector<1x256xf32> -> vector<1x256xf32>
    %c0_61 = arith.constant 0 : index
    %c0_62 = arith.constant 0 : index
    %168 = vector.load %arg8[%c0_61, %c0_62] : memref<64x256xf32, #tpu.memory_space<vmem>>, vector<64x256xf32>
    %cst_63 = arith.constant dense<0.000000e+00> : vector<1x256xf32>
    %169 = tpu.matmul %90, %168, %cst_63 {dimension_numbers = #tpu.dot_dimension_numbers<[1], [0], [0], [1], [0, 0, 1, 1], [], []>} : vector<1x64xf32>, vector<64x256xf32>, vector<1x256xf32> -> vector<1x256xf32>
    %170 = arith.addf %167, %169 : vector<1x256xf32>
    %171 = arith.negf %170 : vector<1x256xf32>
    %172 = math.exp %171 : vector<1x256xf32>
    %cst_64 = arith.constant 1.000000e+00 : f32
    %173 = vector.broadcast %cst_64 : f32 to vector<1x256xf32>
    %174 = arith.addf %173, %172 : vector<1x256xf32>
    %175 = arith.divf %173, %174 : vector<1x256xf32>
    %176 = vector.extract_strided_slice %175 {offsets = [0, 0], sizes = [1, 64], strides = [1, 1]} : vector<1x256xf32> to vector<1x64xf32>
    %177 = vector.extract_strided_slice %175 {offsets = [0, 64], sizes = [1, 64], strides = [1, 1]} : vector<1x256xf32> to vector<1x64xf32>
    %178 = vector.extract_strided_slice %175 {offsets = [0, 192], sizes = [1, 64], strides = [1, 1]} : vector<1x256xf32> to vector<1x64xf32>
    %179 = vector.extract_strided_slice %170 {offsets = [0, 128], sizes = [1, 64], strides = [1, 1]} : vector<1x256xf32> to vector<1x64xf32>
    %180 = math.tanh %179 : vector<1x64xf32>
    %181 = arith.mulf %177, %88 : vector<1x64xf32>
    %182 = arith.mulf %176, %180 : vector<1x64xf32>
    %183 = arith.addf %181, %182 : vector<1x64xf32>
    %184 = math.tanh %183 : vector<1x64xf32>
    %185 = arith.mulf %178, %184 : vector<1x64xf32>
    %186 = arith.negf %185 : vector<1x64xf32>
    %187 = math.exp %186 : vector<1x64xf32>
    %cst_65 = arith.constant 1.000000e+00 : f32
    %188 = vector.broadcast %cst_65 : f32 to vector<1x64xf32>
    %189 = arith.addf %188, %187 : vector<1x64xf32>
    %190 = arith.divf %188, %189 : vector<1x64xf32>
    %c1_66 = arith.constant 1 : index
    %c0_67 = arith.constant 0 : index
    %c0_68 = arith.constant 0 : index
    %191 = vector.load %arg9[%c1_66, %c0_67, %c0_68] : memref<5x1x64xf32, #tpu.memory_space<vmem>>, vector<1x1x64xf32>
    %192 = vector.shape_cast %191 : vector<1x1x64xf32> to vector<1x64xf32>
    %193 = vector.shape_cast %190 : vector<1x64xf32> to vector<1x1x64xf32>
    tpu.vector_store %arg9[%c1_66, %c0_67, %c0_68], %193 {strides = array<i32>} : memref<5x1x64xf32, #tpu.memory_space<vmem>>, vector<1x1x64xf32>,
    %194 = vector.extract_strided_slice %2 {offsets = [2, 0], sizes = [1, 256], strides = [1, 1]} : vector<5x256xf32> to vector<1x256xf32>
    %c0_69 = arith.constant 0 : index
    %c0_70 = arith.constant 0 : index
    %195 = vector.load %arg2[%c0_69, %c0_70] : memref<64x256xf32, #tpu.memory_space<vmem>>, vector<64x256xf32>
    %cst_71 = arith.constant dense<0.000000e+00> : vector<1x256xf32>
    %196 = tpu.matmul %117, %195, %cst_71 {dimension_numbers = #tpu.dot_dimension_numbers<[1], [0], [0], [1], [0, 0, 1, 1], [], []>} : vector<1x64xf32>, vector<64x256xf32>, vector<1x256xf32> -> vector<1x256xf32>
    %197 = arith.addf %194, %196 : vector<1x256xf32>
    %198 = arith.negf %197 : vector<1x256xf32>
    %199 = math.exp %198 : vector<1x256xf32>
    %cst_72 = arith.constant 1.000000e+00 : f32
    %200 = vector.broadcast %cst_72 : f32 to vector<1x256xf32>
    %201 = arith.addf %200, %199 : vector<1x256xf32>
    %202 = arith.divf %200, %201 : vector<1x256xf32>
    %203 = vector.extract_strided_slice %202 {offsets = [0, 0], sizes = [1, 64], strides = [1, 1]} : vector<1x256xf32> to vector<1x64xf32>
    %204 = vector.extract_strided_slice %202 {offsets = [0, 64], sizes = [1, 64], strides = [1, 1]} : vector<1x256xf32> to vector<1x64xf32>
    %205 = vector.extract_strided_slice %202 {offsets = [0, 192], sizes = [1, 64], strides = [1, 1]} : vector<1x256xf32> to vector<1x64xf32>
    %206 = vector.extract_strided_slice %197 {offsets = [0, 128], sizes = [1, 64], strides = [1, 1]} : vector<1x256xf32> to vector<1x64xf32>
    %207 = math.tanh %206 : vector<1x64xf32>
    %208 = arith.mulf %204, %115 : vector<1x64xf32>
    %209 = arith.mulf %203, %207 : vector<1x64xf32>
    %210 = arith.addf %208, %209 : vector<1x64xf32>
    %211 = math.tanh %210 : vector<1x64xf32>
    %212 = arith.mulf %205, %211 : vector<1x64xf32>
    %c0_73 = arith.constant 0 : index
    %c0_74 = arith.constant 0 : index
    %213 = vector.load %arg3[%c0_73, %c0_74] : memref<64x256xf32, #tpu.memory_space<vmem>>, vector<64x256xf32>
    %cst_75 = arith.constant dense<0.000000e+00> : vector<1x256xf32>
    %214 = tpu.matmul %212, %213, %cst_75 {dimension_numbers = #tpu.dot_dimension_numbers<[1], [0], [0], [1], [0, 0, 1, 1], [], []>} : vector<1x64xf32>, vector<64x256xf32>, vector<1x256xf32> -> vector<1x256xf32>
    %c0_76 = arith.constant 0 : index
    %c0_77 = arith.constant 0 : index
    %215 = vector.load %arg4[%c0_76, %c0_77] : memref<64x256xf32, #tpu.memory_space<vmem>>, vector<64x256xf32>
    %cst_78 = arith.constant dense<0.000000e+00> : vector<1x256xf32>
    %216 = tpu.matmul %137, %215, %cst_78 {dimension_numbers = #tpu.dot_dimension_numbers<[1], [0], [0], [1], [0, 0, 1, 1], [], []>} : vector<1x64xf32>, vector<64x256xf32>, vector<1x256xf32> -> vector<1x256xf32>
    %217 = arith.addf %214, %216 : vector<1x256xf32>
    %218 = arith.negf %217 : vector<1x256xf32>
    %219 = math.exp %218 : vector<1x256xf32>
    %cst_79 = arith.constant 1.000000e+00 : f32
    %220 = vector.broadcast %cst_79 : f32 to vector<1x256xf32>
    %221 = arith.addf %220, %219 : vector<1x256xf32>
    %222 = arith.divf %220, %221 : vector<1x256xf32>
    %223 = vector.extract_strided_slice %222 {offsets = [0, 0], sizes = [1, 64], strides = [1, 1]} : vector<1x256xf32> to vector<1x64xf32>
    %224 = vector.extract_strided_slice %222 {offsets = [0, 64], sizes = [1, 64], strides = [1, 1]} : vector<1x256xf32> to vector<1x64xf32>
    %225 = vector.extract_strided_slice %222 {offsets = [0, 192], sizes = [1, 64], strides = [1, 1]} : vector<1x256xf32> to vector<1x64xf32>
    %226 = vector.extract_strided_slice %217 {offsets = [0, 128], sizes = [1, 64], strides = [1, 1]} : vector<1x256xf32> to vector<1x64xf32>
    %227 = math.tanh %226 : vector<1x64xf32>
    %228 = arith.mulf %224, %135 : vector<1x64xf32>
    %229 = arith.mulf %223, %227 : vector<1x64xf32>
    %230 = arith.addf %228, %229 : vector<1x64xf32>
    %231 = math.tanh %230 : vector<1x64xf32>
    %232 = arith.mulf %225, %231 : vector<1x64xf32>
    %233 = arith.negf %232 : vector<1x64xf32>
    %234 = math.exp %233 : vector<1x64xf32>
    %cst_80 = arith.constant 1.000000e+00 : f32
    %235 = vector.broadcast %cst_80 : f32 to vector<1x64xf32>
    %236 = arith.addf %235, %234 : vector<1x64xf32>
    %237 = arith.divf %235, %236 : vector<1x64xf32>
    %c2 = arith.constant 2 : index
    %c0_81 = arith.constant 0 : index
    %c0_82 = arith.constant 0 : index
    %238 = vector.load %arg10[%c2, %c0_81, %c0_82] : memref<5x1x64xf32, #tpu.memory_space<vmem>>, vector<1x1x64xf32>
    %239 = vector.shape_cast %238 : vector<1x1x64xf32> to vector<1x64xf32>
    %240 = vector.shape_cast %237 : vector<1x64xf32> to vector<1x1x64xf32>
    tpu.vector_store %arg10[%c2, %c0_81, %c0_82], %240 {strides = array<i32>} : memref<5x1x64xf32, #tpu.memory_space<vmem>>, vector<1x1x64xf32>,
    %c0_83 = arith.constant 0 : index
    %c0_84 = arith.constant 0 : index
    %241 = vector.load %arg5[%c0_83, %c0_84] : memref<64x256xf32, #tpu.memory_space<vmem>>, vector<64x256xf32>
    %cst_85 = arith.constant dense<0.000000e+00> : vector<1x256xf32>
    %242 = tpu.matmul %237, %241, %cst_85 {dimension_numbers = #tpu.dot_dimension_numbers<[1], [0], [0], [1], [0, 0, 1, 1], [], []>} : vector<1x64xf32>, vector<64x256xf32>, vector<1x256xf32> -> vector<1x256xf32>
    %c0_86 = arith.constant 0 : index
    %c0_87 = arith.constant 0 : index
    %243 = vector.load %arg6[%c0_86, %c0_87] : memref<64x256xf32, #tpu.memory_space<vmem>>, vector<64x256xf32>
    %cst_88 = arith.constant dense<0.000000e+00> : vector<1x256xf32>
    %244 = tpu.matmul %165, %243, %cst_88 {dimension_numbers = #tpu.dot_dimension_numbers<[1], [0], [0], [1], [0, 0, 1, 1], [], []>} : vector<1x64xf32>, vector<64x256xf32>, vector<1x256xf32> -> vector<1x256xf32>
    %245 = arith.addf %242, %244 : vector<1x256xf32>
    %246 = arith.negf %245 : vector<1x256xf32>
    %247 = math.exp %246 : vector<1x256xf32>
    %cst_89 = arith.constant 1.000000e+00 : f32
    %248 = vector.broadcast %cst_89 : f32 to vector<1x256xf32>
    %249 = arith.addf %248, %247 : vector<1x256xf32>
    %250 = arith.divf %248, %249 : vector<1x256xf32>
    %251 = vector.extract_strided_slice %250 {offsets = [0, 0], sizes = [1, 64], strides = [1, 1]} : vector<1x256xf32> to vector<1x64xf32>
    %252 = vector.extract_strided_slice %250 {offsets = [0, 64], sizes = [1, 64], strides = [1, 1]} : vector<1x256xf32> to vector<1x64xf32>
    %253 = vector.extract_strided_slice %250 {offsets = [0, 192], sizes = [1, 64], strides = [1, 1]} : vector<1x256xf32> to vector<1x64xf32>
    %254 = vector.extract_strided_slice %245 {offsets = [0, 128], sizes = [1, 64], strides = [1, 1]} : vector<1x256xf32> to vector<1x64xf32>
    %255 = math.tanh %254 : vector<1x64xf32>
    %256 = arith.mulf %252, %163 : vector<1x64xf32>
    %257 = arith.mulf %251, %255 : vector<1x64xf32>
    %258 = arith.addf %256, %257 : vector<1x64xf32>
    %259 = math.tanh %258 : vector<1x64xf32>
    %260 = arith.mulf %253, %259 : vector<1x64xf32>
    %c0_90 = arith.constant 0 : index
    %c0_91 = arith.constant 0 : index
    %261 = vector.load %arg7[%c0_90, %c0_91] : memref<64x256xf32, #tpu.memory_space<vmem>>, vector<64x256xf32>
    %cst_92 = arith.constant dense<0.000000e+00> : vector<1x256xf32>
    %262 = tpu.matmul %260, %261, %cst_92 {dimension_numbers = #tpu.dot_dimension_numbers<[1], [0], [0], [1], [0, 0, 1, 1], [], []>} : vector<1x64xf32>, vector<64x256xf32>, vector<1x256xf32> -> vector<1x256xf32>
    %c0_93 = arith.constant 0 : index
    %c0_94 = arith.constant 0 : index
    %263 = vector.load %arg8[%c0_93, %c0_94] : memref<64x256xf32, #tpu.memory_space<vmem>>, vector<64x256xf32>
    %cst_95 = arith.constant dense<0.000000e+00> : vector<1x256xf32>
    %264 = tpu.matmul %185, %263, %cst_95 {dimension_numbers = #tpu.dot_dimension_numbers<[1], [0], [0], [1], [0, 0, 1, 1], [], []>} : vector<1x64xf32>, vector<64x256xf32>, vector<1x256xf32> -> vector<1x256xf32>
    %265 = arith.addf %262, %264 : vector<1x256xf32>
    %266 = arith.negf %265 : vector<1x256xf32>
    %267 = math.exp %266 : vector<1x256xf32>
    %cst_96 = arith.constant 1.000000e+00 : f32
    %268 = vector.broadcast %cst_96 : f32 to vector<1x256xf32>
    %269 = arith.addf %268, %267 : vector<1x256xf32>
    %270 = arith.divf %268, %269 : vector<1x256xf32>
    %271 = vector.extract_strided_slice %270 {offsets = [0, 0], sizes = [1, 64], strides = [1, 1]} : vector<1x256xf32> to vector<1x64xf32>
    %272 = vector.extract_strided_slice %270 {offsets = [0, 64], sizes = [1, 64], strides = [1, 1]} : vector<1x256xf32> to vector<1x64xf32>
    %273 = vector.extract_strided_slice %270 {offsets = [0, 192], sizes = [1, 64], strides = [1, 1]} : vector<1x256xf32> to vector<1x64xf32>
    %274 = vector.extract_strided_slice %265 {offsets = [0, 128], sizes = [1, 64], strides = [1, 1]} : vector<1x256xf32> to vector<1x64xf32>
    %275 = math.tanh %274 : vector<1x64xf32>
    %276 = arith.mulf %272, %183 : vector<1x64xf32>
    %277 = arith.mulf %271, %275 : vector<1x64xf32>
    %278 = arith.addf %276, %277 : vector<1x64xf32>
    %279 = math.tanh %278 : vector<1x64xf32>
    %280 = arith.mulf %273, %279 : vector<1x64xf32>
    %281 = arith.negf %280 : vector<1x64xf32>
    %282 = math.exp %281 : vector<1x64xf32>
    %cst_97 = arith.constant 1.000000e+00 : f32
    %283 = vector.broadcast %cst_97 : f32 to vector<1x64xf32>
    %284 = arith.addf %283, %282 : vector<1x64xf32>
    %285 = arith.divf %283, %284 : vector<1x64xf32>
    %c2_98 = arith.constant 2 : index
    %c0_99 = arith.constant 0 : index
    %c0_100 = arith.constant 0 : index
    %286 = vector.load %arg9[%c2_98, %c0_99, %c0_100] : memref<5x1x64xf32, #tpu.memory_space<vmem>>, vector<1x1x64xf32>
    %287 = vector.shape_cast %286 : vector<1x1x64xf32> to vector<1x64xf32>
    %288 = vector.shape_cast %285 : vector<1x64xf32> to vector<1x1x64xf32>
    tpu.vector_store %arg9[%c2_98, %c0_99, %c0_100], %288 {strides = array<i32>} : memref<5x1x64xf32, #tpu.memory_space<vmem>>, vector<1x1x64xf32>,
    %289 = vector.extract_strided_slice %2 {offsets = [3, 0], sizes = [1, 256], strides = [1, 1]} : vector<5x256xf32> to vector<1x256xf32>
    %c0_101 = arith.constant 0 : index
    %c0_102 = arith.constant 0 : index
    %290 = vector.load %arg2[%c0_101, %c0_102] : memref<64x256xf32, #tpu.memory_space<vmem>>, vector<64x256xf32>
    %cst_103 = arith.constant dense<0.000000e+00> : vector<1x256xf32>
    %291 = tpu.matmul %212, %290, %cst_103 {dimension_numbers = #tpu.dot_dimension_numbers<[1], [0], [0], [1], [0, 0, 1, 1], [], []>} : vector<1x64xf32>, vector<64x256xf32>, vector<1x256xf32> -> vector<1x256xf32>
    %292 = arith.addf %289, %291 : vector<1x256xf32>
    %293 = arith.negf %292 : vector<1x256xf32>
    %294 = math.exp %293 : vector<1x256xf32>
    %cst_104 = arith.constant 1.000000e+00 : f32
    %295 = vector.broadcast %cst_104 : f32 to vector<1x256xf32>
    %296 = arith.addf %295, %294 : vector<1x256xf32>
    %297 = arith.divf %295, %296 : vector<1x256xf32>
    %298 = vector.extract_strided_slice %297 {offsets = [0, 0], sizes = [1, 64], strides = [1, 1]} : vector<1x256xf32> to vector<1x64xf32>
    %299 = vector.extract_strided_slice %297 {offsets = [0, 64], sizes = [1, 64], strides = [1, 1]} : vector<1x256xf32> to vector<1x64xf32>
    %300 = vector.extract_strided_slice %297 {offsets = [0, 192], sizes = [1, 64], strides = [1, 1]} : vector<1x256xf32> to vector<1x64xf32>
    %301 = vector.extract_strided_slice %292 {offsets = [0, 128], sizes = [1, 64], strides = [1, 1]} : vector<1x256xf32> to vector<1x64xf32>
    %302 = math.tanh %301 : vector<1x64xf32>
    %303 = arith.mulf %299, %210 : vector<1x64xf32>
    %304 = arith.mulf %298, %302 : vector<1x64xf32>
    %305 = arith.addf %303, %304 : vector<1x64xf32>
    %306 = math.tanh %305 : vector<1x64xf32>
    %307 = arith.mulf %300, %306 : vector<1x64xf32>
    %c0_105 = arith.constant 0 : index
    %c0_106 = arith.constant 0 : index
    %308 = vector.load %arg3[%c0_105, %c0_106] : memref<64x256xf32, #tpu.memory_space<vmem>>, vector<64x256xf32>
    %cst_107 = arith.constant dense<0.000000e+00> : vector<1x256xf32>
    %309 = tpu.matmul %307, %308, %cst_107 {dimension_numbers = #tpu.dot_dimension_numbers<[1], [0], [0], [1], [0, 0, 1, 1], [], []>} : vector<1x64xf32>, vector<64x256xf32>, vector<1x256xf32> -> vector<1x256xf32>
    %c0_108 = arith.constant 0 : index
    %c0_109 = arith.constant 0 : index
    %310 = vector.load %arg4[%c0_108, %c0_109] : memref<64x256xf32, #tpu.memory_space<vmem>>, vector<64x256xf32>
    %cst_110 = arith.constant dense<0.000000e+00> : vector<1x256xf32>
    %311 = tpu.matmul %232, %310, %cst_110 {dimension_numbers = #tpu.dot_dimension_numbers<[1], [0], [0], [1], [0, 0, 1, 1], [], []>} : vector<1x64xf32>, vector<64x256xf32>, vector<1x256xf32> -> vector<1x256xf32>
    %312 = arith.addf %309, %311 : vector<1x256xf32>
    %313 = arith.negf %312 : vector<1x256xf32>
    %314 = math.exp %313 : vector<1x256xf32>
    %cst_111 = arith.constant 1.000000e+00 : f32
    %315 = vector.broadcast %cst_111 : f32 to vector<1x256xf32>
    %316 = arith.addf %315, %314 : vector<1x256xf32>
    %317 = arith.divf %315, %316 : vector<1x256xf32>
    %318 = vector.extract_strided_slice %317 {offsets = [0, 0], sizes = [1, 64], strides = [1, 1]} : vector<1x256xf32> to vector<1x64xf32>
    %319 = vector.extract_strided_slice %317 {offsets = [0, 64], sizes = [1, 64], strides = [1, 1]} : vector<1x256xf32> to vector<1x64xf32>
    %320 = vector.extract_strided_slice %317 {offsets = [0, 192], sizes = [1, 64], strides = [1, 1]} : vector<1x256xf32> to vector<1x64xf32>
    %321 = vector.extract_strided_slice %312 {offsets = [0, 128], sizes = [1, 64], strides = [1, 1]} : vector<1x256xf32> to vector<1x64xf32>
    %322 = math.tanh %321 : vector<1x64xf32>
    %323 = arith.mulf %319, %230 : vector<1x64xf32>
    %324 = arith.mulf %318, %322 : vector<1x64xf32>
    %325 = arith.addf %323, %324 : vector<1x64xf32>
    %326 = math.tanh %325 : vector<1x64xf32>
    %327 = arith.mulf %320, %326 : vector<1x64xf32>
    %328 = arith.negf %327 : vector<1x64xf32>
    %329 = math.exp %328 : vector<1x64xf32>
    %cst_112 = arith.constant 1.000000e+00 : f32
    %330 = vector.broadcast %cst_112 : f32 to vector<1x64xf32>
    %331 = arith.addf %330, %329 : vector<1x64xf32>
    %332 = arith.divf %330, %331 : vector<1x64xf32>
    %c3 = arith.constant 3 : index
    %c0_113 = arith.constant 0 : index
    %c0_114 = arith.constant 0 : index
    %333 = vector.load %arg10[%c3, %c0_113, %c0_114] : memref<5x1x64xf32, #tpu.memory_space<vmem>>, vector<1x1x64xf32>
    %334 = vector.shape_cast %333 : vector<1x1x64xf32> to vector<1x64xf32>
    %335 = vector.shape_cast %332 : vector<1x64xf32> to vector<1x1x64xf32>
    tpu.vector_store %arg10[%c3, %c0_113, %c0_114], %335 {strides = array<i32>} : memref<5x1x64xf32, #tpu.memory_space<vmem>>, vector<1x1x64xf32>,
    %c0_115 = arith.constant 0 : index
    %c0_116 = arith.constant 0 : index
    %336 = vector.load %arg5[%c0_115, %c0_116] : memref<64x256xf32, #tpu.memory_space<vmem>>, vector<64x256xf32>
    %cst_117 = arith.constant dense<0.000000e+00> : vector<1x256xf32>
    %337 = tpu.matmul %332, %336, %cst_117 {dimension_numbers = #tpu.dot_dimension_numbers<[1], [0], [0], [1], [0, 0, 1, 1], [], []>} : vector<1x64xf32>, vector<64x256xf32>, vector<1x256xf32> -> vector<1x256xf32>
    %c0_118 = arith.constant 0 : index
    %c0_119 = arith.constant 0 : index
    %338 = vector.load %arg6[%c0_118, %c0_119] : memref<64x256xf32, #tpu.memory_space<vmem>>, vector<64x256xf32>
    %cst_120 = arith.constant dense<0.000000e+00> : vector<1x256xf32>
    %339 = tpu.matmul %260, %338, %cst_120 {dimension_numbers = #tpu.dot_dimension_numbers<[1], [0], [0], [1], [0, 0, 1, 1], [], []>} : vector<1x64xf32>, vector<64x256xf32>, vector<1x256xf32> -> vector<1x256xf32>
    %340 = arith.addf %337, %339 : vector<1x256xf32>
    %341 = arith.negf %340 : vector<1x256xf32>
    %342 = math.exp %341 : vector<1x256xf32>
    %cst_121 = arith.constant 1.000000e+00 : f32
    %343 = vector.broadcast %cst_121 : f32 to vector<1x256xf32>
    %344 = arith.addf %343, %342 : vector<1x256xf32>
    %345 = arith.divf %343, %344 : vector<1x256xf32>
    %346 = vector.extract_strided_slice %345 {offsets = [0, 0], sizes = [1, 64], strides = [1, 1]} : vector<1x256xf32> to vector<1x64xf32>
    %347 = vector.extract_strided_slice %345 {offsets = [0, 64], sizes = [1, 64], strides = [1, 1]} : vector<1x256xf32> to vector<1x64xf32>
    %348 = vector.extract_strided_slice %345 {offsets = [0, 192], sizes = [1, 64], strides = [1, 1]} : vector<1x256xf32> to vector<1x64xf32>
    %349 = vector.extract_strided_slice %340 {offsets = [0, 128], sizes = [1, 64], strides = [1, 1]} : vector<1x256xf32> to vector<1x64xf32>
    %350 = math.tanh %349 : vector<1x64xf32>
    %351 = arith.mulf %347, %258 : vector<1x64xf32>
    %352 = arith.mulf %346, %350 : vector<1x64xf32>
    %353 = arith.addf %351, %352 : vector<1x64xf32>
    %354 = math.tanh %353 : vector<1x64xf32>
    %355 = arith.mulf %348, %354 : vector<1x64xf32>
    %c0_122 = arith.constant 0 : index
    %c0_123 = arith.constant 0 : index
    %356 = vector.load %arg7[%c0_122, %c0_123] : memref<64x256xf32, #tpu.memory_space<vmem>>, vector<64x256xf32>
    %cst_124 = arith.constant dense<0.000000e+00> : vector<1x256xf32>
    %357 = tpu.matmul %355, %356, %cst_124 {dimension_numbers = #tpu.dot_dimension_numbers<[1], [0], [0], [1], [0, 0, 1, 1], [], []>} : vector<1x64xf32>, vector<64x256xf32>, vector<1x256xf32> -> vector<1x256xf32>
    %c0_125 = arith.constant 0 : index
    %c0_126 = arith.constant 0 : index
    %358 = vector.load %arg8[%c0_125, %c0_126] : memref<64x256xf32, #tpu.memory_space<vmem>>, vector<64x256xf32>
    %cst_127 = arith.constant dense<0.000000e+00> : vector<1x256xf32>
    %359 = tpu.matmul %280, %358, %cst_127 {dimension_numbers = #tpu.dot_dimension_numbers<[1], [0], [0], [1], [0, 0, 1, 1], [], []>} : vector<1x64xf32>, vector<64x256xf32>, vector<1x256xf32> -> vector<1x256xf32>
    %360 = arith.addf %357, %359 : vector<1x256xf32>
    %361 = arith.negf %360 : vector<1x256xf32>
    %362 = math.exp %361 : vector<1x256xf32>
    %cst_128 = arith.constant 1.000000e+00 : f32
    %363 = vector.broadcast %cst_128 : f32 to vector<1x256xf32>
    %364 = arith.addf %363, %362 : vector<1x256xf32>
    %365 = arith.divf %363, %364 : vector<1x256xf32>
    %366 = vector.extract_strided_slice %365 {offsets = [0, 0], sizes = [1, 64], strides = [1, 1]} : vector<1x256xf32> to vector<1x64xf32>
    %367 = vector.extract_strided_slice %365 {offsets = [0, 64], sizes = [1, 64], strides = [1, 1]} : vector<1x256xf32> to vector<1x64xf32>
    %368 = vector.extract_strided_slice %365 {offsets = [0, 192], sizes = [1, 64], strides = [1, 1]} : vector<1x256xf32> to vector<1x64xf32>
    %369 = vector.extract_strided_slice %360 {offsets = [0, 128], sizes = [1, 64], strides = [1, 1]} : vector<1x256xf32> to vector<1x64xf32>
    %370 = math.tanh %369 : vector<1x64xf32>
    %371 = arith.mulf %367, %278 : vector<1x64xf32>
    %372 = arith.mulf %366, %370 : vector<1x64xf32>
    %373 = arith.addf %371, %372 : vector<1x64xf32>
    %374 = math.tanh %373 : vector<1x64xf32>
    %375 = arith.mulf %368, %374 : vector<1x64xf32>
    %376 = arith.negf %375 : vector<1x64xf32>
    %377 = math.exp %376 : vector<1x64xf32>
    %cst_129 = arith.constant 1.000000e+00 : f32
    %378 = vector.broadcast %cst_129 : f32 to vector<1x64xf32>
    %379 = arith.addf %378, %377 : vector<1x64xf32>
    %380 = arith.divf %378, %379 : vector<1x64xf32>
    %c3_130 = arith.constant 3 : index
    %c0_131 = arith.constant 0 : index
    %c0_132 = arith.constant 0 : index
    %381 = vector.load %arg9[%c3_130, %c0_131, %c0_132] : memref<5x1x64xf32, #tpu.memory_space<vmem>>, vector<1x1x64xf32>
    %382 = vector.shape_cast %381 : vector<1x1x64xf32> to vector<1x64xf32>
    %383 = vector.shape_cast %380 : vector<1x64xf32> to vector<1x1x64xf32>
    tpu.vector_store %arg9[%c3_130, %c0_131, %c0_132], %383 {strides = array<i32>} : memref<5x1x64xf32, #tpu.memory_space<vmem>>, vector<1x1x64xf32>,
    %384 = vector.extract_strided_slice %2 {offsets = [4, 0], sizes = [1, 256], strides = [1, 1]} : vector<5x256xf32> to vector<1x256xf32>
    %c0_133 = arith.constant 0 : index
    %c0_134 = arith.constant 0 : index
    %385 = vector.load %arg2[%c0_133, %c0_134] : memref<64x256xf32, #tpu.memory_space<vmem>>, vector<64x256xf32>
    %cst_135 = arith.constant dense<0.000000e+00> : vector<1x256xf32>
    %386 = tpu.matmul %307, %385, %cst_135 {dimension_numbers = #tpu.dot_dimension_numbers<[1], [0], [0], [1], [0, 0, 1, 1], [], []>} : vector<1x64xf32>, vector<64x256xf32>, vector<1x256xf32> -> vector<1x256xf32>
    %387 = arith.addf %384, %386 : vector<1x256xf32>
    %388 = arith.negf %387 : vector<1x256xf32>
    %389 = math.exp %388 : vector<1x256xf32>
    %cst_136 = arith.constant 1.000000e+00 : f32
    %390 = vector.broadcast %cst_136 : f32 to vector<1x256xf32>
    %391 = arith.addf %390, %389 : vector<1x256xf32>
    %392 = arith.divf %390, %391 : vector<1x256xf32>
    %393 = vector.extract_strided_slice %392 {offsets = [0, 0], sizes = [1, 64], strides = [1, 1]} : vector<1x256xf32> to vector<1x64xf32>
    %394 = vector.extract_strided_slice %392 {offsets = [0, 64], sizes = [1, 64], strides = [1, 1]} : vector<1x256xf32> to vector<1x64xf32>
    %395 = vector.extract_strided_slice %392 {offsets = [0, 192], sizes = [1, 64], strides = [1, 1]} : vector<1x256xf32> to vector<1x64xf32>
    %396 = vector.extract_strided_slice %387 {offsets = [0, 128], sizes = [1, 64], strides = [1, 1]} : vector<1x256xf32> to vector<1x64xf32>
    %397 = math.tanh %396 : vector<1x64xf32>
    %398 = arith.mulf %394, %305 : vector<1x64xf32>
    %399 = arith.mulf %393, %397 : vector<1x64xf32>
    %400 = arith.addf %398, %399 : vector<1x64xf32>
    %401 = math.tanh %400 : vector<1x64xf32>
    %402 = arith.mulf %395, %401 : vector<1x64xf32>
    %c0_137 = arith.constant 0 : index
    %c0_138 = arith.constant 0 : index
    %403 = vector.load %arg3[%c0_137, %c0_138] : memref<64x256xf32, #tpu.memory_space<vmem>>, vector<64x256xf32>
    %cst_139 = arith.constant dense<0.000000e+00> : vector<1x256xf32>
    %404 = tpu.matmul %402, %403, %cst_139 {dimension_numbers = #tpu.dot_dimension_numbers<[1], [0], [0], [1], [0, 0, 1, 1], [], []>} : vector<1x64xf32>, vector<64x256xf32>, vector<1x256xf32> -> vector<1x256xf32>
    %c0_140 = arith.constant 0 : index
    %c0_141 = arith.constant 0 : index
    %405 = vector.load %arg4[%c0_140, %c0_141] : memref<64x256xf32, #tpu.memory_space<vmem>>, vector<64x256xf32>
    %cst_142 = arith.constant dense<0.000000e+00> : vector<1x256xf32>
    %406 = tpu.matmul %327, %405, %cst_142 {dimension_numbers = #tpu.dot_dimension_numbers<[1], [0], [0], [1], [0, 0, 1, 1], [], []>} : vector<1x64xf32>, vector<64x256xf32>, vector<1x256xf32> -> vector<1x256xf32>
    %407 = arith.addf %404, %406 : vector<1x256xf32>
    %408 = arith.negf %407 : vector<1x256xf32>
    %409 = math.exp %408 : vector<1x256xf32>
    %cst_143 = arith.constant 1.000000e+00 : f32
    %410 = vector.broadcast %cst_143 : f32 to vector<1x256xf32>
    %411 = arith.addf %410, %409 : vector<1x256xf32>
    %412 = arith.divf %410, %411 : vector<1x256xf32>
    %413 = vector.extract_strided_slice %412 {offsets = [0, 0], sizes = [1, 64], strides = [1, 1]} : vector<1x256xf32> to vector<1x64xf32>
    %414 = vector.extract_strided_slice %412 {offsets = [0, 64], sizes = [1, 64], strides = [1, 1]} : vector<1x256xf32> to vector<1x64xf32>
    %415 = vector.extract_strided_slice %412 {offsets = [0, 192], sizes = [1, 64], strides = [1, 1]} : vector<1x256xf32> to vector<1x64xf32>
    %416 = vector.extract_strided_slice %407 {offsets = [0, 128], sizes = [1, 64], strides = [1, 1]} : vector<1x256xf32> to vector<1x64xf32>
    %417 = math.tanh %416 : vector<1x64xf32>
    %418 = arith.mulf %414, %325 : vector<1x64xf32>
    %419 = arith.mulf %413, %417 : vector<1x64xf32>
    %420 = arith.addf %418, %419 : vector<1x64xf32>
    %421 = math.tanh %420 : vector<1x64xf32>
    %422 = arith.mulf %415, %421 : vector<1x64xf32>
    %423 = arith.negf %422 : vector<1x64xf32>
    %424 = math.exp %423 : vector<1x64xf32>
    %cst_144 = arith.constant 1.000000e+00 : f32
    %425 = vector.broadcast %cst_144 : f32 to vector<1x64xf32>
    %426 = arith.addf %425, %424 : vector<1x64xf32>
    %427 = arith.divf %425, %426 : vector<1x64xf32>
    %c4 = arith.constant 4 : index
    %c0_145 = arith.constant 0 : index
    %c0_146 = arith.constant 0 : index
    %428 = vector.load %arg10[%c4, %c0_145, %c0_146] : memref<5x1x64xf32, #tpu.memory_space<vmem>>, vector<1x1x64xf32>
    %429 = vector.shape_cast %428 : vector<1x1x64xf32> to vector<1x64xf32>
    %430 = vector.shape_cast %427 : vector<1x64xf32> to vector<1x1x64xf32>
    tpu.vector_store %arg10[%c4, %c0_145, %c0_146], %430 {strides = array<i32>} : memref<5x1x64xf32, #tpu.memory_space<vmem>>, vector<1x1x64xf32>,
    %c0_147 = arith.constant 0 : index
    %c0_148 = arith.constant 0 : index
    %431 = vector.load %arg5[%c0_147, %c0_148] : memref<64x256xf32, #tpu.memory_space<vmem>>, vector<64x256xf32>
    %cst_149 = arith.constant dense<0.000000e+00> : vector<1x256xf32>
    %432 = tpu.matmul %427, %431, %cst_149 {dimension_numbers = #tpu.dot_dimension_numbers<[1], [0], [0], [1], [0, 0, 1, 1], [], []>} : vector<1x64xf32>, vector<64x256xf32>, vector<1x256xf32> -> vector<1x256xf32>
    %c0_150 = arith.constant 0 : index
    %c0_151 = arith.constant 0 : index
    %433 = vector.load %arg6[%c0_150, %c0_151] : memref<64x256xf32, #tpu.memory_space<vmem>>, vector<64x256xf32>
    %cst_152 = arith.constant dense<0.000000e+00> : vector<1x256xf32>
    %434 = tpu.matmul %355, %433, %cst_152 {dimension_numbers = #tpu.dot_dimension_numbers<[1], [0], [0], [1], [0, 0, 1, 1], [], []>} : vector<1x64xf32>, vector<64x256xf32>, vector<1x256xf32> -> vector<1x256xf32>
    %435 = arith.addf %432, %434 : vector<1x256xf32>
    %436 = arith.negf %435 : vector<1x256xf32>
    %437 = math.exp %436 : vector<1x256xf32>
    %cst_153 = arith.constant 1.000000e+00 : f32
    %438 = vector.broadcast %cst_153 : f32 to vector<1x256xf32>
    %439 = arith.addf %438, %437 : vector<1x256xf32>
    %440 = arith.divf %438, %439 : vector<1x256xf32>
    %441 = vector.extract_strided_slice %440 {offsets = [0, 0], sizes = [1, 64], strides = [1, 1]} : vector<1x256xf32> to vector<1x64xf32>
    %442 = vector.extract_strided_slice %440 {offsets = [0, 64], sizes = [1, 64], strides = [1, 1]} : vector<1x256xf32> to vector<1x64xf32>
    %443 = vector.extract_strided_slice %440 {offsets = [0, 192], sizes = [1, 64], strides = [1, 1]} : vector<1x256xf32> to vector<1x64xf32>
    %444 = vector.extract_strided_slice %435 {offsets = [0, 128], sizes = [1, 64], strides = [1, 1]} : vector<1x256xf32> to vector<1x64xf32>
    %445 = math.tanh %444 : vector<1x64xf32>
    %446 = arith.mulf %442, %353 : vector<1x64xf32>
    %447 = arith.mulf %441, %445 : vector<1x64xf32>
    %448 = arith.addf %446, %447 : vector<1x64xf32>
    %449 = math.tanh %448 : vector<1x64xf32>
    %450 = arith.mulf %443, %449 : vector<1x64xf32>
    %c0_154 = arith.constant 0 : index
    %c0_155 = arith.constant 0 : index
    %451 = vector.load %arg7[%c0_154, %c0_155] : memref<64x256xf32, #tpu.memory_space<vmem>>, vector<64x256xf32>
    %cst_156 = arith.constant dense<0.000000e+00> : vector<1x256xf32>
    %452 = tpu.matmul %450, %451, %cst_156 {dimension_numbers = #tpu.dot_dimension_numbers<[1], [0], [0], [1], [0, 0, 1, 1], [], []>} : vector<1x64xf32>, vector<64x256xf32>, vector<1x256xf32> -> vector<1x256xf32>
    %c0_157 = arith.constant 0 : index
    %c0_158 = arith.constant 0 : index
    %453 = vector.load %arg8[%c0_157, %c0_158] : memref<64x256xf32, #tpu.memory_space<vmem>>, vector<64x256xf32>
    %cst_159 = arith.constant dense<0.000000e+00> : vector<1x256xf32>
    %454 = tpu.matmul %375, %453, %cst_159 {dimension_numbers = #tpu.dot_dimension_numbers<[1], [0], [0], [1], [0, 0, 1, 1], [], []>} : vector<1x64xf32>, vector<64x256xf32>, vector<1x256xf32> -> vector<1x256xf32>
    %455 = arith.addf %452, %454 : vector<1x256xf32>
    %456 = arith.negf %455 : vector<1x256xf32>
    %457 = math.exp %456 : vector<1x256xf32>
    %cst_160 = arith.constant 1.000000e+00 : f32
    %458 = vector.broadcast %cst_160 : f32 to vector<1x256xf32>
    %459 = arith.addf %458, %457 : vector<1x256xf32>
    %460 = arith.divf %458, %459 : vector<1x256xf32>
    %461 = vector.extract_strided_slice %460 {offsets = [0, 0], sizes = [1, 64], strides = [1, 1]} : vector<1x256xf32> to vector<1x64xf32>
    %462 = vector.extract_strided_slice %460 {offsets = [0, 64], sizes = [1, 64], strides = [1, 1]} : vector<1x256xf32> to vector<1x64xf32>
    %463 = vector.extract_strided_slice %460 {offsets = [0, 192], sizes = [1, 64], strides = [1, 1]} : vector<1x256xf32> to vector<1x64xf32>
    %464 = vector.extract_strided_slice %455 {offsets = [0, 128], sizes = [1, 64], strides = [1, 1]} : vector<1x256xf32> to vector<1x64xf32>
    %465 = math.tanh %464 : vector<1x64xf32>
    %466 = arith.mulf %462, %373 : vector<1x64xf32>
    %467 = arith.mulf %461, %465 : vector<1x64xf32>
    %468 = arith.addf %466, %467 : vector<1x64xf32>
    %469 = math.tanh %468 : vector<1x64xf32>
    %470 = arith.mulf %463, %469 : vector<1x64xf32>
    %471 = arith.negf %470 : vector<1x64xf32>
    %472 = math.exp %471 : vector<1x64xf32>
    %cst_161 = arith.constant 1.000000e+00 : f32
    %473 = vector.broadcast %cst_161 : f32 to vector<1x64xf32>
    %474 = arith.addf %473, %472 : vector<1x64xf32>
    %475 = arith.divf %473, %474 : vector<1x64xf32>
    %c4_162 = arith.constant 4 : index
    %c0_163 = arith.constant 0 : index
    %c0_164 = arith.constant 0 : index
    %476 = vector.load %arg9[%c4_162, %c0_163, %c0_164] : memref<5x1x64xf32, #tpu.memory_space<vmem>>, vector<1x1x64xf32>
    %477 = vector.shape_cast %476 : vector<1x1x64xf32> to vector<1x64xf32>
    %478 = vector.shape_cast %475 : vector<1x64xf32> to vector<1x1x64xf32>
    tpu.vector_store %arg9[%c4_162, %c0_163, %c0_164], %478 {strides = array<i32>} : memref<5x1x64xf32, #tpu.memory_space<vmem>>, vector<1x1x64xf32>,
    return
  }
}

</mosaic_0001>

<llo_original>
// kernel: _lambda_.1
$region0: #{_lambda_.1}
  #allocation0 [shape = 'u32[]', space=smem, size = 0x4, offset = 0x4, fixed_abs, tag = 'smem constant byte address 0x4 - core index']
  #allocation1 [shape = 'u32[144,128]{1,0:T(1,128)}', space=vmem, size = 0x12000, scoped, tag = 'internal scratch']
  %s0 = inlined_call_operand.hbm [shape: f32[5,64], index: 0, kind: input, shape index: {}]
  %s1 = inlined_call_operand.hbm [shape: f32[64,256], index: 1, kind: input, shape index: {}]
  %s2 = inlined_call_operand.hbm [shape: f32[64,256], index: 2, kind: input, shape index: {}]
  %s3 = inlined_call_operand.hbm [shape: f32[64,256], index: 3, kind: input, shape index: {}]
  %s4 = inlined_call_operand.hbm [shape: f32[64,256], index: 4, kind: input, shape index: {}]
  %s5 = inlined_call_operand.hbm [shape: f32[64,256], index: 5, kind: input, shape index: {}]
  %s6 = inlined_call_operand.hbm [shape: f32[64,256], index: 6, kind: input, shape index: {}]
  %s7 = inlined_call_operand.hbm [shape: f32[64,256], index: 7, kind: input, shape index: {}]
  %s8 = inlined_call_operand.hbm [shape: f32[64,256], index: 8, kind: input, shape index: {}]
  %s9 = inlined_call_operand.vmem [shape: f32[5,1,64], index: 9, kind: output, shape index: {0}]
  %s10 = inlined_call_operand.hbm [shape: f32[5,1,64], index: 10, kind: output, shape index: {1}]
  %11 = xla_tuple %s9, %s10
  %s12 = sld [smem:[#allocation0]]
  $region90: #{_lambda_.1} parent=0
    _
  %s14 = ssub.s32 1, %s12
  %s15 = scalar_select 0, %s14, %s12
  $region1: #{_lambda_.1} parent=0
    #allocation2 [shape = 'u8[4096]{0}', space=vmem, size = 0x1000, scoped, tag = 'input window, operand 0, single buffered']
    #allocation3 [shape = 's32[1]{0}', space=sflag, size = 0x4, scoped, tag = 'scoped memory for _lambda_.1']
    #allocation4 [shape = 's32[1]{0}', space=sflag, size = 0x4, scoped, tag = 'scoped memory for _lambda_.1']
    #allocation5 [shape = 'u8[65536]{0}', space=vmem, size = 0x10000, scoped, tag = 'input window, operand 1, single buffered']
    #allocation6 [shape = 's32[1]{0}', space=sflag, size = 0x4, scoped, tag = 'scoped memory for _lambda_.1']
    #allocation7 [shape = 'u8[65536]{0}', space=vmem, size = 0x10000, scoped, tag = 'input window, operand 2, single buffered']
    #allocation8 [shape = 'u8[65536]{0}', space=vmem, size = 0x10000, scoped, tag = 'input window, operand 3, single buffered']
    #allocation9 [shape = 's32[1]{0}', space=sflag, size = 0x4, scoped, tag = 'scoped memory for _lambda_.1']
    #allocation10 [shape = 'u8[65536]{0}', space=vmem, size = 0x10000, scoped, tag = 'input window, operand 4, single buffered']
    #allocation11 [shape = 'u8[65536]{0}', space=vmem, size = 0x10000, scoped, tag = 'input window, operand 5, single buffered']
    #allocation12 [shape = 's32[1]{0}', space=sflag, size = 0x4, scoped, tag = 'scoped memory for _lambda_.1']
    #allocation13 [shape = 'u8[65536]{0}', space=vmem, size = 0x10000, scoped, tag = 'input window, operand 6, single buffered']
    #allocation14 [shape = 'u8[65536]{0}', space=vmem, size = 0x10000, scoped, tag = 'input window, operand 7, single buffered']
    #allocation15 [shape = 's32[1]{0}', space=sflag, size = 0x4, scoped, tag = 'scoped memory for _lambda_.1']
    #allocation16 [shape = 'u8[65536]{0}', space=vmem, size = 0x10000, scoped, tag = 'input window, operand 8, single buffered']
    #allocation17 [shape = 'u8[2560]{0}', space=vmem, size = 0xc00, scoped, tag = 'output window, operand 1, single buffered']
    %16 = vsyncpa [#allocation3], 0
    %17 = vsyncpa [#allocation6], 0
    %18 = vsyncpa [#allocation9], 0
    %19 = vsyncpa [#allocation12], 0
    %20 = vsyncpa [#allocation15], 0
    %21 = vsyncpa [#allocation4], 0
    // Predicated region
    $region2: #{_lambda_.1} parent=1 // pred_check
      _
    $region3: #{_lambda_.1} parent=1 // pred_check_branch
      %23 = sbr.rel (0) target = $region5
    $region4: #{_lambda_.1} parent=1 // pred_region
      %s25 = ssub.s32 128, 128
      %26 = vsyncadd [#allocation3], %s25
      %s28 = sshll.u32 [#allocation2], 4
      %s29 = int_to_ptr.vmem [resolvable:$true] %s28
      %31 = dma.hbm_to_vmem [thread:$0]  %s0, 128, %s29, [#allocation3]
    $region5: #{_lambda_.1} parent=1 // pred_fallthru
      _
    // Predicated region
    $region6: #{_lambda_.1} parent=1 // pred_check
      _
    $region7: #{_lambda_.1} parent=1 // pred_check_branch
      %33 = sbr.rel (0) target = $region9
    $region8: #{_lambda_.1} parent=1 // pred_region
      %s35 = ssub.s32 2048, 2048
      %36 = vsyncadd [#allocation6], %s35
      %s37 = sshll.u32 [#allocation5], 4
      %s38 = int_to_ptr.vmem [resolvable:$true] %s37
      %43 = dma.hbm_to_vmem [thread:$0]  %s1, 2048, %s38, [#allocation6], 256, 256, 16
    $region9: #{_lambda_.1} parent=1 // pred_fallthru
      _
    // Predicated region
    $region10: #{_lambda_.1} parent=1 // pred_check
      _
    $region11: #{_lambda_.1} parent=1 // pred_check_branch
      %45 = sbr.rel (0) target = $region13
    $region12: #{_lambda_.1} parent=1 // pred_region
      %s47 = ssub.s32 2048, 2048
      %48 = vsyncadd [#allocation6], %s47
      %s49 = sshll.u32 [#allocation7], 4
      %s50 = int_to_ptr.vmem [resolvable:$true] %s49
      %55 = dma.hbm_to_vmem [thread:$0]  %s2, 2048, %s50, [#allocation6], 256, 256, 16
    $region13: #{_lambda_.1} parent=1 // pred_fallthru
      _
    // Predicated region
    $region14: #{_lambda_.1} parent=1 // pred_check
      _
    $region15: #{_lambda_.1} parent=1 // pred_check_branch
      %57 = sbr.rel (0) target = $region17
    $region16: #{_lambda_.1} parent=1 // pred_region
      %s59 = ssub.s32 2048, 2048
      %60 = vsyncadd [#allocation9], %s59
      %s61 = sshll.u32 [#allocation8], 4
      %s62 = int_to_ptr.vmem [resolvable:$true] %s61
      %67 = dma.hbm_to_vmem [thread:$0]  %s3, 2048, %s62, [#allocation9], 256, 256, 16
    $region17: #{_lambda_.1} parent=1 // pred_fallthru
      _
    // Predicated region
    $region18: #{_lambda_.1} parent=1 // pred_check
      _
    $region19: #{_lambda_.1} parent=1 // pred_check_branch
      %69 = sbr.rel (0) target = $region21
    $region20: #{_lambda_.1} parent=1 // pred_region
      %s71 = ssub.s32 2048, 2048
      %72 = vsyncadd [#allocation9], %s71
      %s73 = sshll.u32 [#allocation10], 4
      %s74 = int_to_ptr.vmem [resolvable:$true] %s73
      %79 = dma.hbm_to_vmem [thread:$0]  %s4, 2048, %s74, [#allocation9], 256, 256, 16
    $region21: #{_lambda_.1} parent=1 // pred_fallthru
      _
    // Predicated region
    $region22: #{_lambda_.1} parent=1 // pred_check
      _
    $region23: #{_lambda_.1} parent=1 // pred_check_branch
      %81 = sbr.rel (0) target = $region25
    $region24: #{_lambda_.1} parent=1 // pred_region
      %s83 = ssub.s32 2048, 2048
      %84 = vsyncadd [#allocation12], %s83
      %s85 = sshll.u32 [#allocation11], 4
      %s86 = int_to_ptr.vmem [resolvable:$true] %s85
      %91 = dma.hbm_to_vmem [thread:$0]  %s5, 2048, %s86, [#allocation12], 256, 256, 16
    $region25: #{_lambda_.1} parent=1 // pred_fallthru
      _
    // Predicated region
    $region26: #{_lambda_.1} parent=1 // pred_check
      _
    $region27: #{_lambda_.1} parent=1 // pred_check_branch
      %93 = sbr.rel (0) target = $region29
    $region28: #{_lambda_.1} parent=1 // pred_region
      %s95 = ssub.s32 2048, 2048
      %96 = vsyncadd [#allocation12], %s95
      %s97 = sshll.u32 [#allocation13], 4
      %s98 = int_to_ptr.vmem [resolvable:$true] %s97
      %103 = dma.hbm_to_vmem [thread:$0]  %s6, 2048, %s98, [#allocation12], 256, 256, 16
    $region29: #{_lambda_.1} parent=1 // pred_fallthru
      _
    // Predicated region
    $region30: #{_lambda_.1} parent=1 // pred_check
      _
    $region31: #{_lambda_.1} parent=1 // pred_check_branch
      %105 = sbr.rel (0) target = $region33
    $region32: #{_lambda_.1} parent=1 // pred_region
      %s107 = ssub.s32 2048, 2048
      %108 = vsyncadd [#allocation15], %s107
      %s109 = sshll.u32 [#allocation14], 4
      %s110 = int_to_ptr.vmem [resolvable:$true] %s109
      %115 = dma.hbm_to_vmem [thread:$0]  %s7, 2048, %s110, [#allocation15], 256, 256, 16
    $region33: #{_lambda_.1} parent=1 // pred_fallthru
      _
    // Predicated region
    $region34: #{_lambda_.1} parent=1 // pred_check
      _
    $region35: #{_lambda_.1} parent=1 // pred_check_branch
      %117 = sbr.rel (0) target = $region37
    $region36: #{_lambda_.1} parent=1 // pred_region
      %s119 = ssub.s32 2048, 2048
      %120 = vsyncadd [#allocation15], %s119
      %s121 = sshll.u32 [#allocation16], 4
      %s122 = int_to_ptr.vmem [resolvable:$true] %s121
      %127 = dma.hbm_to_vmem [thread:$0]  %s8, 2048, %s122, [#allocation15], 256, 256, 16
    $region37: #{_lambda_.1} parent=1 // pred_fallthru
      _
    // Predicated region
    $region38: #{_lambda_.1} parent=1 // pred_check
      _
    $region39: #{_lambda_.1} parent=1 // pred_check_branch
      %129 = sbr.rel (0) target = $region41
    $region40: #{_lambda_.1} parent=1 // pred_region
      %130 = dma.done [#allocation3], 128
    $region41: #{_lambda_.1} parent=1 // pred_fallthru
      _
    // Predicated region
    $region42: #{_lambda_.1} parent=1 // pred_check
      _
    $region43: #{_lambda_.1} parent=1 // pred_check_branch
      %132 = sbr.rel (0) target = $region45
    $region44: #{_lambda_.1} parent=1 // pred_region
      %133 = dma.done [#allocation6], 2048
    $region45: #{_lambda_.1} parent=1 // pred_fallthru
      _
    // Predicated region
    $region46: #{_lambda_.1} parent=1 // pred_check
      _
    $region47: #{_lambda_.1} parent=1 // pred_check_branch
      %135 = sbr.rel (0) target = $region49
    $region48: #{_lambda_.1} parent=1 // pred_region
      %136 = dma.done [#allocation6], 2048
    $region49: #{_lambda_.1} parent=1 // pred_fallthru
      _
    // Predicated region
    $region50: #{_lambda_.1} parent=1 // pred_check
      _
    $region51: #{_lambda_.1} parent=1 // pred_check_branch
      %138 = sbr.rel (0) target = $region53
    $region52: #{_lambda_.1} parent=1 // pred_region
      %139 = dma.done [#allocation9], 2048
    $region53: #{_lambda_.1} parent=1 // pred_fallthru
      _
    // Predicated region
    $region54: #{_lambda_.1} parent=1 // pred_check
      _
    $region55: #{_lambda_.1} parent=1 // pred_check_branch
      %141 = sbr.rel (0) target = $region57
    $region56: #{_lambda_.1} parent=1 // pred_region
      %142 = dma.done [#allocation9], 2048
    $region57: #{_lambda_.1} parent=1 // pred_fallthru
      _
    // Predicated region
    $region58: #{_lambda_.1} parent=1 // pred_check
      _
    $region59: #{_lambda_.1} parent=1 // pred_check_branch
      %144 = sbr.rel (0) target = $region61
    $region60: #{_lambda_.1} parent=1 // pred_region
      %145 = dma.done [#allocation12], 2048
    $region61: #{_lambda_.1} parent=1 // pred_fallthru
      _
    // Predicated region
    $region62: #{_lambda_.1} parent=1 // pred_check
      _
    $region63: #{_lambda_.1} parent=1 // pred_check_branch
      %147 = sbr.rel (0) target = $region65
    $region64: #{_lambda_.1} parent=1 // pred_region
      %148 = dma.done [#allocation12], 2048
    $region65: #{_lambda_.1} parent=1 // pred_fallthru
      _
    // Predicated region
    $region66: #{_lambda_.1} parent=1 // pred_check
      _
    $region67: #{_lambda_.1} parent=1 // pred_check_branch
      %150 = sbr.rel (0) target = $region69
    $region68: #{_lambda_.1} parent=1 // pred_region
      %151 = dma.done [#allocation15], 2048
    $region69: #{_lambda_.1} parent=1 // pred_fallthru
      _
    // Predicated region
    $region70: #{_lambda_.1} parent=1 // pred_check
      _
    $region71: #{_lambda_.1} parent=1 // pred_check_branch
      %153 = sbr.rel (0) target = $region73
    $region72: #{_lambda_.1} parent=1 // pred_region
      %154 = dma.done [#allocation15], 2048
    $region73: #{_lambda_.1} parent=1 // pred_fallthru
      _
    %v155 = vld [vmem:[#allocation2] sm:$0x1f]
    %v156 = vld [vmem:[#allocation5] sm:$0xff]
    %v157 = vld [vmem:[#allocation5 + $0x8] sm:$0xff]
    %v158 = vld [vmem:[#allocation5 + $0x10] sm:$0xff]
    %v159 = vld [vmem:[#allocation5 + $0x18] sm:$0xff]
    %v160 = vld [vmem:[#allocation5 + $0x20] sm:$0xff]
    %v161 = vld [vmem:[#allocation5 + $0x28] sm:$0xff]
    %v162 = vld [vmem:[#allocation5 + $0x30] sm:$0xff]
    %v163 = vld [vmem:[#allocation5 + $0x38] sm:$0xff]
    %v164 = vld [vmem:[#allocation5 + $0x40] sm:$0xff]
    %v165 = vld [vmem:[#allocation5 + $0x48] sm:$0xff]
    %v166 = vld [vmem:[#allocation5 + $0x50] sm:$0xff]
    %v167 = vld [vmem:[#allocation5 + $0x58] sm:$0xff]
    %v168 = vld [vmem:[#allocation5 + $0x60] sm:$0xff]
    %v169 = vld [vmem:[#allocation5 + $0x68] sm:$0xff]
    %v170 = vld [vmem:[#allocation5 + $0x70] sm:$0xff]
    %v171 = vld [vmem:[#allocation5 + $0x78] sm:$0xff]
    %vm172 = vcmask 523264
    %v174 = vsel %vm172, %v155, 0
    %176 = vmatprep.subr.mxu0 %v157
    %177 = vmatpush1.msra.mxu0 %v156
    %178 = vmatprep.subr.mxu0 %v159
    %179 = vmatpush1.msra.mxu0 %v158
    %180 = vmatprep.subr.mxu0 %v161
    %181 = vmatpush1.msra.mxu0 %v160
    %182 = vmatprep.subr.mxu0 %v163
    %183 = vmatpush1.msra.mxu0 %v162
    %184 = vmatprep.subr.mxu0 %v165
    %185 = vmatpush1.msra.mxu0 %v164
    %186 = vmatprep.subr.mxu0 %v167
    %187 = vmatpush1.msra.mxu0 %v166
    %188 = vmatprep.subr.mxu0 %v169
    %189 = vmatpush1.msra.mxu0 %v168
    %190 = vmatprep.subr.mxu0 %v171
    %191 = vmatpush1.msra.mxu0 %v170
    %192 = vmatprep.subr.mxu0 0.0
    %193 = vmatpush1.msra.mxu0 0.0
    %194 = vmatprep.subr.mxu0 0.0
    %195 = vmatpush1.msra.mxu0 0.0
    %196 = vmatprep.subr.mxu0 0.0
    %197 = vmatpush1.msra.mxu0 0.0
    %198 = vmatprep.subr.mxu0 0.0
    %199 = vmatpush1.msra.mxu0 0.0
    %200 = vmatprep.subr.mxu0 0.0
    %201 = vmatpush1.msra.mxu0 0.0
    %202 = vmatprep.subr.mxu0 0.0
    %203 = vmatpush1.msra.mxu0 0.0
    %204 = vmatprep.subr.mxu0 0.0
    %205 = vmatpush1.msra.mxu0 0.0
    %206 = vmatprep.subr.mxu0 0.0
    %207 = vmatpush1.msra.mxu0 0.0
    %208 = vmatprep.subr.mxu0 0.0
    %209 = vmatpush1.msra.mxu0 0.0
    %210 = vmatprep.subr.mxu0 0.0
    %211 = vmatpush1.msra.mxu0 0.0
    %212 = vmatprep.subr.mxu0 0.0
    %213 = vmatpush1.msra.mxu0 0.0
    %214 = vmatprep.subr.mxu0 0.0
    %215 = vmatpush1.msra.mxu0 0.0
    %216 = vmatprep.subr.mxu0 0.0
    %217 = vmatpush1.msra.mxu0 0.0
    %218 = vmatprep.subr.mxu0 0.0
    %219 = vmatpush1.msra.mxu0 0.0
    %220 = vmatprep.subr.mxu0 0.0
    %221 = vmatpush1.msra.mxu0 0.0
    %222 = vmatprep.subr.mxu0 0.0
    %223 = vmatpush1.msra.mxu0 0.0
    %224 = vmatprep.subr.mxu0 0.0
    %225 = vmatpush1.msra.mxu0 0.0
    %226 = vmatprep.subr.mxu0 0.0
    %227 = vmatpush1.msra.mxu0 0.0
    %228 = vmatprep.subr.mxu0 0.0
    %229 = vmatpush1.msra.mxu0 0.0
    %230 = vmatprep.subr.mxu0 0.0
    %231 = vmatpush1.msra.mxu0 0.0
    %232 = vmatprep.subr.mxu0 0.0
    %233 = vmatpush1.msra.mxu0 0.0
    %234 = vmatprep.subr.mxu0 0.0
    %235 = vmatpush1.msra.mxu0 0.0
    %236 = vmatprep.subr.mxu0 0.0
    %237 = vmatpush1.msra.mxu0 0.0
    %238 = vmatprep.subr.mxu0 0.0
    %239 = vmatpush1.msra.mxu0 0.0
    %240 = vmatprep.mubr.f32.mxu0 0.0
    %241 = vmatmul.mubr.f32.gmra.mrb[0].mxu0 %v174
    %v242 = vpop.f32.mrb[0].mxu0
    %v243 = vadd.f32 0.0, %v242
    %v244 = vpop.f32.mrb[0].mxu0
    %v245 = vadd.f32 0.0, %v244
    %246 = vdwg.mxu0
    %v247 = vld [vmem:[#allocation7] sm:$0xff]
    %v248 = vld [vmem:[#allocation7 + $0x8] sm:$0xff]
    %v249 = vld [vmem:[#allocation7 + $0x10] sm:$0xff]
    %v250 = vld [vmem:[#allocation7 + $0x18] sm:$0xff]
    %v251 = vld [vmem:[#allocation7 + $0x20] sm:$0xff]
    %v252 = vld [vmem:[#allocation7 + $0x28] sm:$0xff]
    %v253 = vld [vmem:[#allocation7 + $0x30] sm:$0xff]
    %v254 = vld [vmem:[#allocation7 + $0x38] sm:$0xff]
    %v255 = vld [vmem:[#allocation7 + $0x40] sm:$0xff]
    %v256 = vld [vmem:[#allocation7 + $0x48] sm:$0xff]
    %v257 = vld [vmem:[#allocation7 + $0x50] sm:$0xff]
    %v258 = vld [vmem:[#allocation7 + $0x58] sm:$0xff]
    %v259 = vld [vmem:[#allocation7 + $0x60] sm:$0xff]
    %v260 = vld [vmem:[#allocation7 + $0x68] sm:$0xff]
    %v261 = vld [vmem:[#allocation7 + $0x70] sm:$0xff]
    %v262 = vld [vmem:[#allocation7 + $0x78] sm:$0xff]
    %v264 = vsel %vm172, 0.0, 0
    %266 = vmatprep.subr.mxu0 %v248
    %267 = vmatpush1.msra.mxu0 %v247
    %268 = vmatprep.subr.mxu0 %v250
    %269 = vmatpush1.msra.mxu0 %v249
    %270 = vmatprep.subr.mxu0 %v252
    %271 = vmatpush1.msra.mxu0 %v251
    %272 = vmatprep.subr.mxu0 %v254
    %273 = vmatpush1.msra.mxu0 %v253
    %274 = vmatprep.subr.mxu0 %v256
    %275 = vmatpush1.msra.mxu0 %v255
    %276 = vmatprep.subr.mxu0 %v258
    %277 = vmatpush1.msra.mxu0 %v257
    %278 = vmatprep.subr.mxu0 %v260
    %279 = vmatpush1.msra.mxu0 %v259
    %280 = vmatprep.subr.mxu0 %v262
    %281 = vmatpush1.msra.mxu0 %v261
    %282 = vmatprep.subr.mxu0 0.0
    %283 = vmatpush1.msra.mxu0 0.0
    %284 = vmatprep.subr.mxu0 0.0
    %285 = vmatpush1.msra.mxu0 0.0
    %286 = vmatprep.subr.mxu0 0.0
    %287 = vmatpush1.msra.mxu0 0.0
    %288 = vmatprep.subr.mxu0 0.0
    %289 = vmatpush1.msra.mxu0 0.0
    %290 = vmatprep.subr.mxu0 0.0
    %291 = vmatpush1.msra.mxu0 0.0
    %292 = vmatprep.subr.mxu0 0.0
    %293 = vmatpush1.msra.mxu0 0.0
    %294 = vmatprep.subr.mxu0 0.0
    %295 = vmatpush1.msra.mxu0 0.0
    %296 = vmatprep.subr.mxu0 0.0
    %297 = vmatpush1.msra.mxu0 0.0
    %298 = vmatprep.subr.mxu0 0.0
    %299 = vmatpush1.msra.mxu0 0.0
    %300 = vmatprep.subr.mxu0 0.0
    %301 = vmatpush1.msra.mxu0 0.0
    %302 = vmatprep.subr.mxu0 0.0
    %303 = vmatpush1.msra.mxu0 0.0
    %304 = vmatprep.subr.mxu0 0.0
    %305 = vmatpush1.msra.mxu0 0.0
    %306 = vmatprep.subr.mxu0 0.0
    %307 = vmatpush1.msra.mxu0 0.0
    %308 = vmatprep.subr.mxu0 0.0
    %309 = vmatpush1.msra.mxu0 0.0
    %310 = vmatprep.subr.mxu0 0.0
    %311 = vmatpush1.msra.mxu0 0.0
    %312 = vmatprep.subr.mxu0 0.0
    %313 = vmatpush1.msra.mxu0 0.0
    %314 = vmatprep.subr.mxu0 0.0
    %315 = vmatpush1.msra.mxu0 0.0
    %316 = vmatprep.subr.mxu0 0.0
    %317 = vmatpush1.msra.mxu0 0.0
    %318 = vmatprep.subr.mxu0 0.0
    %319 = vmatpush1.msra.mxu0 0.0
    %320 = vmatprep.subr.mxu0 0.0
    %321 = vmatpush1.msra.mxu0 0.0
    %322 = vmatprep.subr.mxu0 0.0
    %323 = vmatpush1.msra.mxu0 0.0
    %324 = vmatprep.subr.mxu0 0.0
    %325 = vmatpush1.msra.mxu0 0.0
    %326 = vmatprep.subr.mxu0 0.0
    %327 = vmatpush1.msra.mxu0 0.0
    %328 = vmatprep.subr.mxu0 0.0
    %329 = vmatpush1.msra.mxu0 0.0
    %330 = vmatprep.mubr.f32.mxu0 0.0
    %331 = vmatmul.mubr.f32.gmra.mrb[0].mxu0 %v264
    %v332 = vpop.f32.mrb[0].mxu0
    %v333 = vadd.f32 0.0, %v332
    %v334 = vpop.f32.mrb[0].mxu0
    %v335 = vadd.f32 0.0, %v334
    %336 = vdwg.mxu0
    %v337 = vadd.f32 %v243, %v333
    %v338 = vadd.f32 %v245, %v335
    %v339 = vxor.u32 %v337, 2147483648
    %v340 = vxor.u32 %v338, 2147483648
    %v341 = vmul.f32 %v339, 1.442695
    %v342 = vpow.pop %v341
    %v343 = vmul.f32 %v340, 1.442695
    %v344 = vpow.pop %v343
    %v345 = vadd.f32 %v342, 1.0
    %v346 = vadd.f32 %v344, 1.0
    %v347 = vrcp.pop %v345
    %v348 = vmul.f32 1.0, %v347
    %v349 = vrcp.pop %v346
    %v350 = vmul.f32 1.0, %v349
    %v351 = vtanh.pop %v338
    %v352 = vmul.f32 %v348, 0.0
    %v353 = vmul.f32 %v348, %v351
    %355 = vrot.lane.b32.xlu0 %v353, 64
    %v356 = vpop.permute.xlu0 %355
    %v358 = vadd.f32 %v352, %v356
    %v359 = vtanh.pop %v358
    %v360 = vmul.f32 %v350, %v359
    %v361 = vld [vmem:[#allocation8] sm:$0xff]
    %v362 = vld [vmem:[#allocation8 + $0x8] sm:$0xff]
    %v363 = vld [vmem:[#allocation8 + $0x10] sm:$0xff]
    %v364 = vld [vmem:[#allocation8 + $0x18] sm:$0xff]
    %v365 = vld [vmem:[#allocation8 + $0x20] sm:$0xff]
    %v366 = vld [vmem:[#allocation8 + $0x28] sm:$0xff]
    %v367 = vld [vmem:[#allocation8 + $0x30] sm:$0xff]
    %v368 = vld [vmem:[#allocation8 + $0x38] sm:$0xff]
    %v369 = vld [vmem:[#allocation8 + $0x40] sm:$0xff]
    %v370 = vld [vmem:[#allocation8 + $0x48] sm:$0xff]
    %v371 = vld [vmem:[#allocation8 + $0x50] sm:$0xff]
    %v372 = vld [vmem:[#allocation8 + $0x58] sm:$0xff]
    %v373 = vld [vmem:[#allocation8 + $0x60] sm:$0xff]
    %v374 = vld [vmem:[#allocation8 + $0x68] sm:$0xff]
    %v375 = vld [vmem:[#allocation8 + $0x70] sm:$0xff]
    %v376 = vld [vmem:[#allocation8 + $0x78] sm:$0xff]
    %v377 = vld [vmem:[#allocation10] sm:$0xff]
    %v378 = vld [vmem:[#allocation10 + $0x8] sm:$0xff]
    %v379 = vld [vmem:[#allocation10 + $0x10] sm:$0xff]
    %v380 = vld [vmem:[#allocation10 + $0x18] sm:$0xff]
    %v381 = vld [vmem:[#allocation10 + $0x20] sm:$0xff]
    %v382 = vld [vmem:[#allocation10 + $0x28] sm:$0xff]
    %v383 = vld [vmem:[#allocation10 + $0x30] sm:$0xff]
    %v384 = vld [vmem:[#allocation10 + $0x38] sm:$0xff]
    %v385 = vld [vmem:[#allocation10 + $0x40] sm:$0xff]
    %v386 = vld [vmem:[#allocation10 + $0x48] sm:$0xff]
    %v387 = vld [vmem:[#allocation10 + $0x50] sm:$0xff]
    %v388 = vld [vmem:[#allocation10 + $0x58] sm:$0xff]
    %v389 = vld [vmem:[#allocation10 + $0x60] sm:$0xff]
    %v390 = vld [vmem:[#allocation10 + $0x68] sm:$0xff]
    %v391 = vld [vmem:[#allocation10 + $0x70] sm:$0xff]
    %v392 = vld [vmem:[#allocation10 + $0x78] sm:$0xff]
    %393 = vmatprep.subr.mxu0 %v378
    %394 = vmatpush1.msra.mxu0 %v377
    %395 = vmatprep.subr.mxu0 %v380
    %396 = vmatpush1.msra.mxu0 %v379
    %397 = vmatprep.subr.mxu0 %v382
    %398 = vmatpush1.msra.mxu0 %v381
    %399 = vmatprep.subr.mxu0 %v384
    %400 = vmatpush1.msra.mxu0 %v383
    %401 = vmatprep.subr.mxu0 %v386
    %402 = vmatpush1.msra.mxu0 %v385
    %403 = vmatprep.subr.mxu0 %v388
    %404 = vmatpush1.msra.mxu0 %v387
    %405 = vmatprep.subr.mxu0 %v390
    %406 = vmatpush1.msra.mxu0 %v389
    %407 = vmatprep.subr.mxu0 %v392
    %408 = vmatpush1.msra.mxu0 %v391
    %409 = vmatprep.subr.mxu0 0.0
    %410 = vmatpush1.msra.mxu0 0.0
    %411 = vmatprep.subr.mxu0 0.0
    %412 = vmatpush1.msra.mxu0 0.0
    %413 = vmatprep.subr.mxu0 0.0
    %414 = vmatpush1.msra.mxu0 0.0
    %415 = vmatprep.subr.mxu0 0.0
    %416 = vmatpush1.msra.mxu0 0.0
    %417 = vmatprep.subr.mxu0 0.0
    %418 = vmatpush1.msra.mxu0 0.0
    %419 = vmatprep.subr.mxu0 0.0
    %420 = vmatpush1.msra.mxu0 0.0
    %421 = vmatprep.subr.mxu0 0.0
    %422 = vmatpush1.msra.mxu0 0.0
    %423 = vmatprep.subr.mxu0 0.0
    %424 = vmatpush1.msra.mxu0 0.0
    %425 = vmatprep.subr.mxu0 0.0
    %426 = vmatpush1.msra.mxu0 0.0
    %427 = vmatprep.subr.mxu0 0.0
    %428 = vmatpush1.msra.mxu0 0.0
    %429 = vmatprep.subr.mxu0 0.0
    %430 = vmatpush1.msra.mxu0 0.0
    %431 = vmatprep.subr.mxu0 0.0
    %432 = vmatpush1.msra.mxu0 0.0
    %433 = vmatprep.subr.mxu0 0.0
    %434 = vmatpush1.msra.mxu0 0.0
    %435 = vmatprep.subr.mxu0 0.0
    %436 = vmatpush1.msra.mxu0 0.0
    %437 = vmatprep.subr.mxu0 0.0
    %438 = vmatpush1.msra.mxu0 0.0
    %439 = vmatprep.subr.mxu0 0.0
    %440 = vmatpush1.msra.mxu0 0.0
    %441 = vmatprep.subr.mxu0 0.0
    %442 = vmatpush1.msra.mxu0 0.0
    %443 = vmatprep.subr.mxu0 0.0
    %444 = vmatpush1.msra.mxu0 0.0
    %445 = vmatprep.subr.mxu0 0.0
    %446 = vmatpush1.msra.mxu0 0.0
    %447 = vmatprep.subr.mxu0 0.0
    %448 = vmatpush1.msra.mxu0 0.0
    %449 = vmatprep.subr.mxu0 0.0
    %450 = vmatpush1.msra.mxu0 0.0
    %451 = vmatprep.subr.mxu0 0.0
    %452 = vmatpush1.msra.mxu0 0.0
    %453 = vmatprep.subr.mxu0 0.0
    %454 = vmatpush1.msra.mxu0 0.0
    %455 = vmatprep.subr.mxu0 0.0
    %456 = vmatpush1.msra.mxu0 0.0
    %457 = vmatprep.mubr.f32.mxu0 0.0
    %458 = vmatmul.mubr.f32.gmra.mrb[0].mxu0 %v264
    %v459 = vpop.f32.mrb[0].mxu0
    %v460 = vadd.f32 0.0, %v459
    %v461 = vpop.f32.mrb[0].mxu0
    %v462 = vadd.f32 0.0, %v461
    %463 = vdwg.mxu0
    %465 = vrot.lane.b32.xlu0 %v360, 64
    %v466 = vpop.permute.xlu0 %465
    %v467 = vsel %vm172, %v466, 0
    %469 = vmatprep.subr.mxu0 %v362
    %470 = vmatpush1.msra.mxu0 %v361
    %471 = vmatprep.subr.mxu0 %v364
    %472 = vmatpush1.msra.mxu0 %v363
    %473 = vmatprep.subr.mxu0 %v366
    %474 = vmatpush1.msra.mxu0 %v365
    %475 = vmatprep.subr.mxu0 %v368
    %476 = vmatpush1.msra.mxu0 %v367
    %477 = vmatprep.subr.mxu0 %v370
    %478 = vmatpush1.msra.mxu0 %v369
    %479 = vmatprep.subr.mxu0 %v372
    %480 = vmatpush1.msra.mxu0 %v371
    %481 = vmatprep.subr.mxu0 %v374
    %482 = vmatpush1.msra.mxu0 %v373
    %483 = vmatprep.subr.mxu0 %v376
    %484 = vmatpush1.msra.mxu0 %v375
    %485 = vmatprep.subr.mxu0 0.0
    %486 = vmatpush1.msra.mxu0 0.0
    %487 = vmatprep.subr.mxu0 0.0
    %488 = vmatpush1.msra.mxu0 0.0
    %489 = vmatprep.subr.mxu0 0.0
    %490 = vmatpush1.msra.mxu0 0.0
    %491 = vmatprep.subr.mxu0 0.0
    %492 = vmatpush1.msra.mxu0 0.0
    %493 = vmatprep.subr.mxu0 0.0
    %494 = vmatpush1.msra.mxu0 0.0
    %495 = vmatprep.subr.mxu0 0.0
    %496 = vmatpush1.msra.mxu0 0.0
    %497 = vmatprep.subr.mxu0 0.0
    %498 = vmatpush1.msra.mxu0 0.0
    %499 = vmatprep.subr.mxu0 0.0
    %500 = vmatpush1.msra.mxu0 0.0
    %501 = vmatprep.subr.mxu0 0.0
    %502 = vmatpush1.msra.mxu0 0.0
    %503 = vmatprep.subr.mxu0 0.0
    %504 = vmatpush1.msra.mxu0 0.0
    %505 = vmatprep.subr.mxu0 0.0
    %506 = vmatpush1.msra.mxu0 0.0
    %507 = vmatprep.subr.mxu0 0.0
    %508 = vmatpush1.msra.mxu0 0.0
    %509 = vmatprep.subr.mxu0 0.0
    %510 = vmatpush1.msra.mxu0 0.0
    %511 = vmatprep.subr.mxu0 0.0
    %512 = vmatpush1.msra.mxu0 0.0
    %513 = vmatprep.subr.mxu0 0.0
    %514 = vmatpush1.msra.mxu0 0.0
    %515 = vmatprep.subr.mxu0 0.0
    %516 = vmatpush1.msra.mxu0 0.0
    %517 = vmatprep.subr.mxu0 0.0
    %518 = vmatpush1.msra.mxu0 0.0
    %519 = vmatprep.subr.mxu0 0.0
    %520 = vmatpush1.msra.mxu0 0.0
    %521 = vmatprep.subr.mxu0 0.0
    %522 = vmatpush1.msra.mxu0 0.0
    %523 = vmatprep.subr.mxu0 0.0
    %524 = vmatpush1.msra.mxu0 0.0
    %525 = vmatprep.subr.mxu0 0.0
    %526 = vmatpush1.msra.mxu0 0.0
    %527 = vmatprep.subr.mxu0 0.0
    %528 = vmatpush1.msra.mxu0 0.0
    %529 = vmatprep.subr.mxu0 0.0
    %530 = vmatpush1.msra.mxu0 0.0
    %531 = vmatprep.subr.mxu0 0.0
    %532 = vmatpush1.msra.mxu0 0.0
    %533 = vmatprep.mubr.f32.mxu0 0.0
    %534 = vmatmul.mubr.f32.gmra.mrb[0].mxu0 %v467
    %v535 = vpop.f32.mrb[0].mxu0
    %v536 = vadd.f32 %v460, %v535
    %v537 = vpop.f32.mrb[0].mxu0
    %v538 = vadd.f32 %v462, %v537
    %539 = vdwg.mxu0
    %v540 = vxor.u32 %v536, 2147483648
    %v541 = vxor.u32 %v538, 2147483648
    %v542 = vmul.f32 %v540, 1.442695
    %v543 = vpow.pop %v542
    %v544 = vmul.f32 %v541, 1.442695
    %v545 = vpow.pop %v544
    %v546 = vadd.f32 %v543, 1.0
    %v547 = vadd.f32 %v545, 1.0
    %v548 = vrcp.pop %v546
    %v549 = vmul.f32 1.0, %v548
    %v550 = vrcp.pop %v547
    %v551 = vmul.f32 1.0, %v550
    %v552 = vtanh.pop %v538
    %v553 = vmul.f32 %v549, 0.0
    %v554 = vmul.f32 %v549, %v552
    %556 = vrot.lane.b32.xlu0 %v554, 64
    %v557 = vpop.permute.xlu0 %556
    %v559 = vadd.f32 %v553, %v557
    %v560 = vtanh.pop %v559
    %v561 = vmul.f32 %v551, %v560
    %v562 = vxor.u32 %v561, 2147483648
    %v563 = vmul.f32 %v562, 1.442695
    %v564 = vpow.pop %v563
    %v565 = vadd.f32 %v564, 1.0
    %v566 = vrcp.pop %v565
    %v567 = vmul.f32 1.0, %v566
    %569 = vrot.lane.b32.xlu0 %v567, 64
    %v570 = vpop.permute.xlu0 %569
    %vm572 = vcmask 516096
    %573 = vst.msk [vmem:[#allocation17] sm:$0x1] %vm572, %v570
    %v574 = vld [vmem:[#allocation11] sm:$0xff]
    %v575 = vld [vmem:[#allocation11 + $0x8] sm:$0xff]
    %v576 = vld [vmem:[#allocation11 + $0x10] sm:$0xff]
    %v577 = vld [vmem:[#allocation11 + $0x18] sm:$0xff]
    %v578 = vld [vmem:[#allocation11 + $0x20] sm:$0xff]
    %v579 = vld [vmem:[#allocation11 + $0x28] sm:$0xff]
    %v580 = vld [vmem:[#allocation11 + $0x30] sm:$0xff]
    %v581 = vld [vmem:[#allocation11 + $0x38] sm:$0xff]
    %v582 = vld [vmem:[#allocation11 + $0x40] sm:$0xff]
    %v583 = vld [vmem:[#allocation11 + $0x48] sm:$0xff]
    %v584 = vld [vmem:[#allocation11 + $0x50] sm:$0xff]
    %v585 = vld [vmem:[#allocation11 + $0x58] sm:$0xff]
    %v586 = vld [vmem:[#allocation11 + $0x60] sm:$0xff]
    %v587 = vld [vmem:[#allocation11 + $0x68] sm:$0xff]
    %v588 = vld [vmem:[#allocation11 + $0x70] sm:$0xff]
    %v589 = vld [vmem:[#allocation11 + $0x78] sm:$0xff]
    %v590 = vld [vmem:[#allocation13] sm:$0xff]
    %v591 = vld [vmem:[#allocation13 + $0x8] sm:$0xff]
    %v592 = vld [vmem:[#allocation13 + $0x10] sm:$0xff]
    %v593 = vld [vmem:[#allocation13 + $0x18] sm:$0xff]
    %v594 = vld [vmem:[#allocation13 + $0x20] sm:$0xff]
    %v595 = vld [vmem:[#allocation13 + $0x28] sm:$0xff]
    %v596 = vld [vmem:[#allocation13 + $0x30] sm:$0xff]
    %v597 = vld [vmem:[#allocation13 + $0x38] sm:$0xff]
    %v598 = vld [vmem:[#allocation13 + $0x40] sm:$0xff]
    %v599 = vld [vmem:[#allocation13 + $0x48] sm:$0xff]
    %v600 = vld [vmem:[#allocation13 + $0x50] sm:$0xff]
    %v601 = vld [vmem:[#allocation13 + $0x58] sm:$0xff]
    %v602 = vld [vmem:[#allocation13 + $0x60] sm:$0xff]
    %v603 = vld [vmem:[#allocation13 + $0x68] sm:$0xff]
    %v604 = vld [vmem:[#allocation13 + $0x70] sm:$0xff]
    %v605 = vld [vmem:[#allocation13 + $0x78] sm:$0xff]
    %606 = vmatprep.subr.mxu0 %v591
    %607 = vmatpush1.msra.mxu0 %v590
    %608 = vmatprep.subr.mxu0 %v593
    %609 = vmatpush1.msra.mxu0 %v592
    %610 = vmatprep.subr.mxu0 %v595
    %611 = vmatpush1.msra.mxu0 %v594
    %612 = vmatprep.subr.mxu0 %v597
    %613 = vmatpush1.msra.mxu0 %v596
    %614 = vmatprep.subr.mxu0 %v599
    %615 = vmatpush1.msra.mxu0 %v598
    %616 = vmatprep.subr.mxu0 %v601
    %617 = vmatpush1.msra.mxu0 %v600
    %618 = vmatprep.subr.mxu0 %v603
    %619 = vmatpush1.msra.mxu0 %v602
    %620 = vmatprep.subr.mxu0 %v605
    %621 = vmatpush1.msra.mxu0 %v604
    %622 = vmatprep.subr.mxu0 0.0
    %623 = vmatpush1.msra.mxu0 0.0
    %624 = vmatprep.subr.mxu0 0.0
    %625 = vmatpush1.msra.mxu0 0.0
    %626 = vmatprep.subr.mxu0 0.0
    %627 = vmatpush1.msra.mxu0 0.0
    %628 = vmatprep.subr.mxu0 0.0
    %629 = vmatpush1.msra.mxu0 0.0
    %630 = vmatprep.subr.mxu0 0.0
    %631 = vmatpush1.msra.mxu0 0.0
    %632 = vmatprep.subr.mxu0 0.0
    %633 = vmatpush1.msra.mxu0 0.0
    %634 = vmatprep.subr.mxu0 0.0
    %635 = vmatpush1.msra.mxu0 0.0
    %636 = vmatprep.subr.mxu0 0.0
    %637 = vmatpush1.msra.mxu0 0.0
    %638 = vmatprep.subr.mxu0 0.0
    %639 = vmatpush1.msra.mxu0 0.0
    %640 = vmatprep.subr.mxu0 0.0
    %641 = vmatpush1.msra.mxu0 0.0
    %642 = vmatprep.subr.mxu0 0.0
    %643 = vmatpush1.msra.mxu0 0.0
    %644 = vmatprep.subr.mxu0 0.0
    %645 = vmatpush1.msra.mxu0 0.0
    %646 = vmatprep.subr.mxu0 0.0
    %647 = vmatpush1.msra.mxu0 0.0
    %648 = vmatprep.subr.mxu0 0.0
    %649 = vmatpush1.msra.mxu0 0.0
    %650 = vmatprep.subr.mxu0 0.0
    %651 = vmatpush1.msra.mxu0 0.0
    %652 = vmatprep.subr.mxu0 0.0
    %653 = vmatpush1.msra.mxu0 0.0
    %654 = vmatprep.subr.mxu0 0.0
    %655 = vmatpush1.msra.mxu0 0.0
    %656 = vmatprep.subr.mxu0 0.0
    %657 = vmatpush1.msra.mxu0 0.0
    %658 = vmatprep.subr.mxu0 0.0
    %659 = vmatpush1.msra.mxu0 0.0
    %660 = vmatprep.subr.mxu0 0.0
    %661 = vmatpush1.msra.mxu0 0.0
    %662 = vmatprep.subr.mxu0 0.0
    %663 = vmatpush1.msra.mxu0 0.0
    %664 = vmatprep.subr.mxu0 0.0
    %665 = vmatpush1.msra.mxu0 0.0
    %666 = vmatprep.subr.mxu0 0.0
    %667 = vmatpush1.msra.mxu0 0.0
    %668 = vmatprep.subr.mxu0 0.0
    %669 = vmatpush1.msra.mxu0 0.0
    %670 = vmatprep.mubr.f32.mxu0 0.0
    %671 = vmatmul.mubr.f32.gmra.mrb[0].mxu0 %v264
    %v672 = vpop.f32.mrb[0].mxu0
    %v673 = vadd.f32 0.0, %v672
    %v674 = vpop.f32.mrb[0].mxu0
    %v675 = vadd.f32 0.0, %v674
    %676 = vdwg.mxu0
    %v677 = vsel %vm172, %v570, 0
    %679 = vmatprep.subr.mxu0 %v575
    %680 = vmatpush1.msra.mxu0 %v574
    %681 = vmatprep.subr.mxu0 %v577
    %682 = vmatpush1.msra.mxu0 %v576
    %683 = vmatprep.subr.mxu0 %v579
    %684 = vmatpush1.msra.mxu0 %v578
    %685 = vmatprep.subr.mxu0 %v581
    %686 = vmatpush1.msra.mxu0 %v580
    %687 = vmatprep.subr.mxu0 %v583
    %688 = vmatpush1.msra.mxu0 %v582
    %689 = vmatprep.subr.mxu0 %v585
    %690 = vmatpush1.msra.mxu0 %v584
    %691 = vmatprep.subr.mxu0 %v587
    %692 = vmatpush1.msra.mxu0 %v586
    %693 = vmatprep.subr.mxu0 %v589
    %694 = vmatpush1.msra.mxu0 %v588
    %695 = vmatprep.subr.mxu0 0.0
    %696 = vmatpush1.msra.mxu0 0.0
    %697 = vmatprep.subr.mxu0 0.0
    %698 = vmatpush1.msra.mxu0 0.0
    %699 = vmatprep.subr.mxu0 0.0
    %700 = vmatpush1.msra.mxu0 0.0
    %701 = vmatprep.subr.mxu0 0.0
    %702 = vmatpush1.msra.mxu0 0.0
    %703 = vmatprep.subr.mxu0 0.0
    %704 = vmatpush1.msra.mxu0 0.0
    %705 = vmatprep.subr.mxu0 0.0
    %706 = vmatpush1.msra.mxu0 0.0
    %707 = vmatprep.subr.mxu0 0.0
    %708 = vmatpush1.msra.mxu0 0.0
    %709 = vmatprep.subr.mxu0 0.0
    %710 = vmatpush1.msra.mxu0 0.0
    %711 = vmatprep.subr.mxu0 0.0
    %712 = vmatpush1.msra.mxu0 0.0
    %713 = vmatprep.subr.mxu0 0.0
    %714 = vmatpush1.msra.mxu0 0.0
    %715 = vmatprep.subr.mxu0 0.0
    %716 = vmatpush1.msra.mxu0 0.0
    %717 = vmatprep.subr.mxu0 0.0
    %718 = vmatpush1.msra.mxu0 0.0
    %719 = vmatprep.subr.mxu0 0.0
    %720 = vmatpush1.msra.mxu0 0.0
    %721 = vmatprep.subr.mxu0 0.0
    %722 = vmatpush1.msra.mxu0 0.0
    %723 = vmatprep.subr.mxu0 0.0
    %724 = vmatpush1.msra.mxu0 0.0
    %725 = vmatprep.subr.mxu0 0.0
    %726 = vmatpush1.msra.mxu0 0.0
    %727 = vmatprep.subr.mxu0 0.0
    %728 = vmatpush1.msra.mxu0 0.0
    %729 = vmatprep.subr.mxu0 0.0
    %730 = vmatpush1.msra.mxu0 0.0
    %731 = vmatprep.subr.mxu0 0.0
    %732 = vmatpush1.msra.mxu0 0.0
    %733 = vmatprep.subr.mxu0 0.0
    %734 = vmatpush1.msra.mxu0 0.0
    %735 = vmatprep.subr.mxu0 0.0
    %736 = vmatpush1.msra.mxu0 0.0
    %737 = vmatprep.subr.mxu0 0.0
    %738 = vmatpush1.msra.mxu0 0.0
    %739 = vmatprep.subr.mxu0 0.0
    %740 = vmatpush1.msra.mxu0 0.0
    %741 = vmatprep.subr.mxu0 0.0
    %742 = vmatpush1.msra.mxu0 0.0
    %743 = vmatprep.mubr.f32.mxu0 0.0
    %744 = vmatmul.mubr.f32.gmra.mrb[0].mxu0 %v677
    %v745 = vpop.f32.mrb[0].mxu0
    %v746 = vadd.f32 %v673, %v745
    %v747 = vpop.f32.mrb[0].mxu0
    %v748 = vadd.f32 %v675, %v747
    %749 = vdwg.mxu0
    %v750 = vxor.u32 %v746, 2147483648
    %v751 = vxor.u32 %v748, 2147483648
    %v752 = vmul.f32 %v750, 1.442695
    %v753 = vpow.pop %v752
    %v754 = vmul.f32 %v751, 1.442695
    %v755 = vpow.pop %v754
    %v756 = vadd.f32 %v753, 1.0
    %v757 = vadd.f32 %v755, 1.0
    %v758 = vrcp.pop %v756
    %v759 = vmul.f32 1.0, %v758
    %v760 = vrcp.pop %v757
    %v761 = vmul.f32 1.0, %v760
    %v762 = vtanh.pop %v748
    %v763 = vmul.f32 %v759, 0.0
    %v764 = vmul.f32 %v759, %v762
    %766 = vrot.lane.b32.xlu0 %v764, 64
    %v767 = vpop.permute.xlu0 %766
    %v769 = vadd.f32 %v763, %v767
    %v770 = vtanh.pop %v769
    %v771 = vmul.f32 %v761, %v770
    %v772 = vld [vmem:[#allocation14] sm:$0xff]
    %v773 = vld [vmem:[#allocation14 + $0x8] sm:$0xff]
    %v774 = vld [vmem:[#allocation14 + $0x10] sm:$0xff]
    %v775 = vld [vmem:[#allocation14 + $0x18] sm:$0xff]
    %v776 = vld [vmem:[#allocation14 + $0x20] sm:$0xff]
    %v777 = vld [vmem:[#allocation14 + $0x28] sm:$0xff]
    %v778 = vld [vmem:[#allocation14 + $0x30] sm:$0xff]
    %v779 = vld [vmem:[#allocation14 + $0x38] sm:$0xff]
    %v780 = vld [vmem:[#allocation14 + $0x40] sm:$0xff]
    %v781 = vld [vmem:[#allocation14 + $0x48] sm:$0xff]
    %v782 = vld [vmem:[#allocation14 + $0x50] sm:$0xff]
    %v783 = vld [vmem:[#allocation14 + $0x58] sm:$0xff]
    %v784 = vld [vmem:[#allocation14 + $0x60] sm:$0xff]
    %v785 = vld [vmem:[#allocation14 + $0x68] sm:$0xff]
    %v786 = vld [vmem:[#allocation14 + $0x70] sm:$0xff]
    %v787 = vld [vmem:[#allocation14 + $0x78] sm:$0xff]
    %v788 = vld [vmem:[#allocation16] sm:$0xff]
    %v789 = vld [vmem:[#allocation16 + $0x8] sm:$0xff]
    %v790 = vld [vmem:[#allocation16 + $0x10] sm:$0xff]
    %v791 = vld [vmem:[#allocation16 + $0x18] sm:$0xff]
    %v792 = vld [vmem:[#allocation16 + $0x20] sm:$0xff]
    %v793 = vld [vmem:[#allocation16 + $0x28] sm:$0xff]
    %v794 = vld [vmem:[#allocation16 + $0x30] sm:$0xff]
    %v795 = vld [vmem:[#allocation16 + $0x38] sm:$0xff]
    %v796 = vld [vmem:[#allocation16 + $0x40] sm:$0xff]
    %v797 = vld [vmem:[#allocation16 + $0x48] sm:$0xff]
    %v798 = vld [vmem:[#allocation16 + $0x50] sm:$0xff]
    %v799 = vld [vmem:[#allocation16 + $0x58] sm:$0xff]
    %v800 = vld [vmem:[#allocation16 + $0x60] sm:$0xff]
    %v801 = vld [vmem:[#allocation16 + $0x68] sm:$0xff]
    %v802 = vld [vmem:[#allocation16 + $0x70] sm:$0xff]
    %v803 = vld [vmem:[#allocation16 + $0x78] sm:$0xff]
    %804 = vmatprep.subr.mxu0 %v789
    %805 = vmatpush1.msra.mxu0 %v788
    %806 = vmatprep.subr.mxu0 %v791
    %807 = vmatpush1.msra.mxu0 %v790
    %808 = vmatprep.subr.mxu0 %v793
    %809 = vmatpush1.msra.mxu0 %v792
    %810 = vmatprep.subr.mxu0 %v795
    %811 = vmatpush1.msra.mxu0 %v794
    %812 = vmatprep.subr.mxu0 %v797
    %813 = vmatpush1.msra.mxu0 %v796
    %814 = vmatprep.subr.mxu0 %v799
    %815 = vmatpush1.msra.mxu0 %v798
    %816 = vmatprep.subr.mxu0 %v801
    %817 = vmatpush1.msra.mxu0 %v800
    %818 = vmatprep.subr.mxu0 %v803
    %819 = vmatpush1.msra.mxu0 %v802
    %820 = vmatprep.subr.mxu0 0.0
    %821 = vmatpush1.msra.mxu0 0.0
    %822 = vmatprep.subr.mxu0 0.0
    %823 = vmatpush1.msra.mxu0 0.0
    %824 = vmatprep.subr.mxu0 0.0
    %825 = vmatpush1.msra.mxu0 0.0
    %826 = vmatprep.subr.mxu0 0.0
    %827 = vmatpush1.msra.mxu0 0.0
    %828 = vmatprep.subr.mxu0 0.0
    %829 = vmatpush1.msra.mxu0 0.0
    %830 = vmatprep.subr.mxu0 0.0
    %831 = vmatpush1.msra.mxu0 0.0
    %832 = vmatprep.subr.mxu0 0.0
    %833 = vmatpush1.msra.mxu0 0.0
    %834 = vmatprep.subr.mxu0 0.0
    %835 = vmatpush1.msra.mxu0 0.0
    %836 = vmatprep.subr.mxu0 0.0
    %837 = vmatpush1.msra.mxu0 0.0
    %838 = vmatprep.subr.mxu0 0.0
    %839 = vmatpush1.msra.mxu0 0.0
    %840 = vmatprep.subr.mxu0 0.0
    %841 = vmatpush1.msra.mxu0 0.0
    %842 = vmatprep.subr.mxu0 0.0
    %843 = vmatpush1.msra.mxu0 0.0
    %844 = vmatprep.subr.mxu0 0.0
    %845 = vmatpush1.msra.mxu0 0.0
    %846 = vmatprep.subr.mxu0 0.0
    %847 = vmatpush1.msra.mxu0 0.0
    %848 = vmatprep.subr.mxu0 0.0
    %849 = vmatpush1.msra.mxu0 0.0
    %850 = vmatprep.subr.mxu0 0.0
    %851 = vmatpush1.msra.mxu0 0.0
    %852 = vmatprep.subr.mxu0 0.0
    %853 = vmatpush1.msra.mxu0 0.0
    %854 = vmatprep.subr.mxu0 0.0
    %855 = vmatpush1.msra.mxu0 0.0
    %856 = vmatprep.subr.mxu0 0.0
    %857 = vmatpush1.msra.mxu0 0.0
    %858 = vmatprep.subr.mxu0 0.0
    %859 = vmatpush1.msra.mxu0 0.0
    %860 = vmatprep.subr.mxu0 0.0
    %861 = vmatpush1.msra.mxu0 0.0
    %862 = vmatprep.subr.mxu0 0.0
    %863 = vmatpush1.msra.mxu0 0.0
    %864 = vmatprep.subr.mxu0 0.0
    %865 = vmatpush1.msra.mxu0 0.0
    %866 = vmatprep.subr.mxu0 0.0
    %867 = vmatpush1.msra.mxu0 0.0
    %868 = vmatprep.mubr.f32.mxu0 0.0
    %869 = vmatmul.mubr.f32.gmra.mrb[0].mxu0 %v264
    %v870 = vpop.f32.mrb[0].mxu0
    %v871 = vadd.f32 0.0, %v870
    %v872 = vpop.f32.mrb[0].mxu0
    %v873 = vadd.f32 0.0, %v872
    %874 = vdwg.mxu0
    %876 = vrot.lane.b32.xlu0 %v771, 64
    %v877 = vpop.permute.xlu0 %876
    %v878 = vsel %vm172, %v877, 0
    %880 = vmatprep.subr.mxu0 %v773
    %881 = vmatpush1.msra.mxu0 %v772
    %882 = vmatprep.subr.mxu0 %v775
    %883 = vmatpush1.msra.mxu0 %v774
    %884 = vmatprep.subr.mxu0 %v777
    %885 = vmatpush1.msra.mxu0 %v776
    %886 = vmatprep.subr.mxu0 %v779
    %887 = vmatpush1.msra.mxu0 %v778
    %888 = vmatprep.subr.mxu0 %v781
    %889 = vmatpush1.msra.mxu0 %v780
    %890 = vmatprep.subr.mxu0 %v783
    %891 = vmatpush1.msra.mxu0 %v782
    %892 = vmatprep.subr.mxu0 %v785
    %893 = vmatpush1.msra.mxu0 %v784
    %894 = vmatprep.subr.mxu0 %v787
    %895 = vmatpush1.msra.mxu0 %v786
    %896 = vmatprep.subr.mxu0 0.0
    %897 = vmatpush1.msra.mxu0 0.0
    %898 = vmatprep.subr.mxu0 0.0
    %899 = vmatpush1.msra.mxu0 0.0
    %900 = vmatprep.subr.mxu0 0.0
    %901 = vmatpush1.msra.mxu0 0.0
    %902 = vmatprep.subr.mxu0 0.0
    %903 = vmatpush1.msra.mxu0 0.0
    %904 = vmatprep.subr.mxu0 0.0
    %905 = vmatpush1.msra.mxu0 0.0
    %906 = vmatprep.subr.mxu0 0.0
    %907 = vmatpush1.msra.mxu0 0.0
    %908 = vmatprep.subr.mxu0 0.0
    %909 = vmatpush1.msra.mxu0 0.0
    %910 = vmatprep.subr.mxu0 0.0
    %911 = vmatpush1.msra.mxu0 0.0
    %912 = vmatprep.subr.mxu0 0.0
    %913 = vmatpush1.msra.mxu0 0.0
    %914 = vmatprep.subr.mxu0 0.0
    %915 = vmatpush1.msra.mxu0 0.0
    %916 = vmatprep.subr.mxu0 0.0
    %917 = vmatpush1.msra.mxu0 0.0
    %918 = vmatprep.subr.mxu0 0.0
    %919 = vmatpush1.msra.mxu0 0.0
    %920 = vmatprep.subr.mxu0 0.0
    %921 = vmatpush1.msra.mxu0 0.0
    %922 = vmatprep.subr.mxu0 0.0
    %923 = vmatpush1.msra.mxu0 0.0
    %924 = vmatprep.subr.mxu0 0.0
    %925 = vmatpush1.msra.mxu0 0.0
    %926 = vmatprep.subr.mxu0 0.0
    %927 = vmatpush1.msra.mxu0 0.0
    %928 = vmatprep.subr.mxu0 0.0
    %929 = vmatpush1.msra.mxu0 0.0
    %930 = vmatprep.subr.mxu0 0.0
    %931 = vmatpush1.msra.mxu0 0.0
    %932 = vmatprep.subr.mxu0 0.0
    %933 = vmatpush1.msra.mxu0 0.0
    %934 = vmatprep.subr.mxu0 0.0
    %935 = vmatpush1.msra.mxu0 0.0
    %936 = vmatprep.subr.mxu0 0.0
    %937 = vmatpush1.msra.mxu0 0.0
    %938 = vmatprep.subr.mxu0 0.0
    %939 = vmatpush1.msra.mxu0 0.0
    %940 = vmatprep.subr.mxu0 0.0
    %941 = vmatpush1.msra.mxu0 0.0
    %942 = vmatprep.subr.mxu0 0.0
    %943 = vmatpush1.msra.mxu0 0.0
    %944 = vmatprep.mubr.f32.mxu0 0.0
    %945 = vmatmul.mubr.f32.gmra.mrb[0].mxu0 %v878
    %v946 = vpop.f32.mrb[0].mxu0
    %v947 = vadd.f32 %v871, %v946
    %v948 = vpop.f32.mrb[0].mxu0
    %v949 = vadd.f32 %v873, %v948
    %950 = vdwg.mxu0
    %v951 = vxor.u32 %v947, 2147483648
    %v952 = vxor.u32 %v949, 2147483648
    %v953 = vmul.f32 %v951, 1.442695
    %v954 = vpow.pop %v953
    %v955 = vmul.f32 %v952, 1.442695
    %v956 = vpow.pop %v955
    %v957 = vadd.f32 %v954, 1.0
    %v958 = vadd.f32 %v956, 1.0
    %v959 = vrcp.pop %v957
    %v960 = vmul.f32 1.0, %v959
    %v961 = vrcp.pop %v958
    %v962 = vmul.f32 1.0, %v961
    %v963 = vtanh.pop %v949
    %v964 = vmul.f32 %v960, 0.0
    %v965 = vmul.f32 %v960, %v963
    %967 = vrot.lane.b32.xlu0 %v965, 64
    %v968 = vpop.permute.xlu0 %967
    %v970 = vadd.f32 %v964, %v968
    %v971 = vtanh.pop %v970
    %v972 = vmul.f32 %v962, %v971
    %v973 = vxor.u32 %v972, 2147483648
    %v974 = vmul.f32 %v973, 1.442695
    %v975 = vpow.pop %v974
    %v976 = vadd.f32 %v975, 1.0
    %v977 = vrcp.pop %v976
    %v978 = vmul.f32 1.0, %v977
    %980 = vrot.lane.b32.xlu0 %v978, 64
    %v981 = vpop.permute.xlu0 %980
    %983 = vst.msk [vmem:[%s9] sm:$0x1] %vm572, %v981
    %v984 = vld [vmem:[#allocation7] sm:$0xff]
    %v985 = vld [vmem:[#allocation7 + $0x8] sm:$0xff]
    %v986 = vld [vmem:[#allocation7 + $0x10] sm:$0xff]
    %v987 = vld [vmem:[#allocation7 + $0x18] sm:$0xff]
    %v988 = vld [vmem:[#allocation7 + $0x20] sm:$0xff]
    %v989 = vld [vmem:[#allocation7 + $0x28] sm:$0xff]
    %v990 = vld [vmem:[#allocation7 + $0x30] sm:$0xff]
    %v991 = vld [vmem:[#allocation7 + $0x38] sm:$0xff]
    %v992 = vld [vmem:[#allocation7 + $0x40] sm:$0xff]
    %v993 = vld [vmem:[#allocation7 + $0x48] sm:$0xff]
    %v994 = vld [vmem:[#allocation7 + $0x50] sm:$0xff]
    %v995 = vld [vmem:[#allocation7 + $0x58] sm:$0xff]
    %v996 = vld [vmem:[#allocation7 + $0x60] sm:$0xff]
    %v997 = vld [vmem:[#allocation7 + $0x68] sm:$0xff]
    %v998 = vld [vmem:[#allocation7 + $0x70] sm:$0xff]
    %v999 = vld [vmem:[#allocation7 + $0x78] sm:$0xff]
    %1000 = vmatprep.subr.mxu0 %v985
    %1001 = vmatpush1.msra.mxu0 %v984
    %1002 = vmatprep.subr.mxu0 %v987
    %1003 = vmatpush1.msra.mxu0 %v986
    %1004 = vmatprep.subr.mxu0 %v989
    %1005 = vmatpush1.msra.mxu0 %v988
    %1006 = vmatprep.subr.mxu0 %v991
    %1007 = vmatpush1.msra.mxu0 %v990
    %1008 = vmatprep.subr.mxu0 %v993
    %1009 = vmatpush1.msra.mxu0 %v992
    %1010 = vmatprep.subr.mxu0 %v995
    %1011 = vmatpush1.msra.mxu0 %v994
    %1012 = vmatprep.subr.mxu0 %v997
    %1013 = vmatpush1.msra.mxu0 %v996
    %1014 = vmatprep.subr.mxu0 %v999
    %1015 = vmatpush1.msra.mxu0 %v998
    %1016 = vmatprep.subr.mxu0 0.0
    %1017 = vmatpush1.msra.mxu0 0.0
    %1018 = vmatprep.subr.mxu0 0.0
    %1019 = vmatpush1.msra.mxu0 0.0
    %1020 = vmatprep.subr.mxu0 0.0
    %1021 = vmatpush1.msra.mxu0 0.0
    %1022 = vmatprep.subr.mxu0 0.0
    %1023 = vmatpush1.msra.mxu0 0.0
    %1024 = vmatprep.subr.mxu0 0.0
    %1025 = vmatpush1.msra.mxu0 0.0
    %1026 = vmatprep.subr.mxu0 0.0
    %1027 = vmatpush1.msra.mxu0 0.0
    %1028 = vmatprep.subr.mxu0 0.0
    %1029 = vmatpush1.msra.mxu0 0.0
    %1030 = vmatprep.subr.mxu0 0.0
    %1031 = vmatpush1.msra.mxu0 0.0
    %1032 = vmatprep.subr.mxu0 0.0
    %1033 = vmatpush1.msra.mxu0 0.0
    %1034 = vmatprep.subr.mxu0 0.0
    %1035 = vmatpush1.msra.mxu0 0.0
    %1036 = vmatprep.subr.mxu0 0.0
    %1037 = vmatpush1.msra.mxu0 0.0
    %1038 = vmatprep.subr.mxu0 0.0
    %1039 = vmatpush1.msra.mxu0 0.0
    %1040 = vmatprep.subr.mxu0 0.0
    %1041 = vmatpush1.msra.mxu0 0.0
    %1042 = vmatprep.subr.mxu0 0.0
    %1043 = vmatpush1.msra.mxu0 0.0
    %1044 = vmatprep.subr.mxu0 0.0
    %1045 = vmatpush1.msra.mxu0 0.0
    %1046 = vmatprep.subr.mxu0 0.0
    %1047 = vmatpush1.msra.mxu0 0.0
    %1048 = vmatprep.subr.mxu0 0.0
    %1049 = vmatpush1.msra.mxu0 0.0
    %1050 = vmatprep.subr.mxu0 0.0
    %1051 = vmatpush1.msra.mxu0 0.0
    %1052 = vmatprep.subr.mxu0 0.0
    %1053 = vmatpush1.msra.mxu0 0.0
    %1054 = vmatprep.subr.mxu0 0.0
    %1055 = vmatpush1.msra.mxu0 0.0
    %1056 = vmatprep.subr.mxu0 0.0
    %1057 = vmatpush1.msra.mxu0 0.0
    %1058 = vmatprep.subr.mxu0 0.0
    %1059 = vmatpush1.msra.mxu0 0.0
    %1060 = vmatprep.subr.mxu0 0.0
    %1061 = vmatpush1.msra.mxu0 0.0
    %1062 = vmatprep.subr.mxu0 0.0
    %1063 = vmatpush1.msra.mxu0 0.0
    %1064 = vmatprep.mubr.f32.mxu0 0.0
    %1065 = vmatmul.mubr.f32.gmra.mrb[0].mxu0 %v467
    %v1066 = vpop.f32.mrb[0].mxu0
    %v1067 = vadd.f32 0.0, %v1066
    %v1068 = vpop.f32.mrb[0].mxu0
    %v1069 = vadd.f32 0.0, %v1068
    %1070 = vdwg.mxu0
    %v1073 = vrot.slane %v1067, 7
    %v1074 = vrot.slane %v1069, 7
    %v1077 = vadd.f32 %v243, %v1073
    %v1078 = vadd.f32 %v245, %v1074
    %v1079 = vxor.u32 %v1077, 2147483648
    %v1080 = vxor.u32 %v1078, 2147483648
    %v1081 = vmul.f32 %v1079, 1.442695
    %v1082 = vpow.pop %v1081
    %v1083 = vmul.f32 %v1080, 1.442695
    %v1084 = vpow.pop %v1083
    %v1085 = vadd.f32 %v1082, 1.0
    %v1086 = vadd.f32 %v1084, 1.0
    %v1087 = vrcp.pop %v1085
    %v1088 = vmul.f32 1.0, %v1087
    %v1089 = vrcp.pop %v1086
    %v1090 = vmul.f32 1.0, %v1089
    %v1091 = vtanh.pop %v1078
    %v1093 = vrot.slane %v358, 7
    %v1095 = vmul.f32 %v1088, %v1093
    %v1096 = vmul.f32 %v1088, %v1091
    %1098 = vrot.lane.b32.xlu0 %v1096, 64
    %v1099 = vpop.permute.xlu0 %1098
    %v1101 = vadd.f32 %v1095, %v1099
    %v1102 = vtanh.pop %v1101
    %v1103 = vmul.f32 %v1090, %v1102
    %v1104 = vld [vmem:[#allocation8] sm:$0xff]
    %v1105 = vld [vmem:[#allocation8 + $0x8] sm:$0xff]
    %v1106 = vld [vmem:[#allocation8 + $0x10] sm:$0xff]
    %v1107 = vld [vmem:[#allocation8 + $0x18] sm:$0xff]
    %v1108 = vld [vmem:[#allocation8 + $0x20] sm:$0xff]
    %v1109 = vld [vmem:[#allocation8 + $0x28] sm:$0xff]
    %v1110 = vld [vmem:[#allocation8 + $0x30] sm:$0xff]
    %v1111 = vld [vmem:[#allocation8 + $0x38] sm:$0xff]
    %v1112 = vld [vmem:[#allocation8 + $0x40] sm:$0xff]
    %v1113 = vld [vmem:[#allocation8 + $0x48] sm:$0xff]
    %v1114 = vld [vmem:[#allocation8 + $0x50] sm:$0xff]
    %v1115 = vld [vmem:[#allocation8 + $0x58] sm:$0xff]
    %v1116 = vld [vmem:[#allocation8 + $0x60] sm:$0xff]
    %v1117 = vld [vmem:[#allocation8 + $0x68] sm:$0xff]
    %v1118 = vld [vmem:[#allocation8 + $0x70] sm:$0xff]
    %v1119 = vld [vmem:[#allocation8 + $0x78] sm:$0xff]
    %v1120 = vld [vmem:[#allocation10] sm:$0xff]
    %v1121 = vld [vmem:[#allocation10 + $0x8] sm:$0xff]
    %v1122 = vld [vmem:[#allocation10 + $0x10] sm:$0xff]
    %v1123 = vld [vmem:[#allocation10 + $0x18] sm:$0xff]
    %v1124 = vld [vmem:[#allocation10 + $0x20] sm:$0xff]
    %v1125 = vld [vmem:[#allocation10 + $0x28] sm:$0xff]
    %v1126 = vld [vmem:[#allocation10 + $0x30] sm:$0xff]
    %v1127 = vld [vmem:[#allocation10 + $0x38] sm:$0xff]
    %v1128 = vld [vmem:[#allocation10 + $0x40] sm:$0xff]
    %v1129 = vld [vmem:[#allocation10 + $0x48] sm:$0xff]
    %v1130 = vld [vmem:[#allocation10 + $0x50] sm:$0xff]
    %v1131 = vld [vmem:[#allocation10 + $0x58] sm:$0xff]
    %v1132 = vld [vmem:[#allocation10 + $0x60] sm:$0xff]
    %v1133 = vld [vmem:[#allocation10 + $0x68] sm:$0xff]
    %v1134 = vld [vmem:[#allocation10 + $0x70] sm:$0xff]
    %v1135 = vld [vmem:[#allocation10 + $0x78] sm:$0xff]
    %1137 = vrot.lane.b32.xlu0 %v561, 64
    %v1138 = vpop.permute.xlu0 %1137
    %v1139 = vsel %vm172, %v1138, 0
    %1141 = vmatprep.subr.mxu0 %v1121
    %1142 = vmatpush1.msra.mxu0 %v1120
    %1143 = vmatprep.subr.mxu0 %v1123
    %1144 = vmatpush1.msra.mxu0 %v1122
    %1145 = vmatprep.subr.mxu0 %v1125
    %1146 = vmatpush1.msra.mxu0 %v1124
    %1147 = vmatprep.subr.mxu0 %v1127
    %1148 = vmatpush1.msra.mxu0 %v1126
    %1149 = vmatprep.subr.mxu0 %v1129
    %1150 = vmatpush1.msra.mxu0 %v1128
    %1151 = vmatprep.subr.mxu0 %v1131
    %1152 = vmatpush1.msra.mxu0 %v1130
    %1153 = vmatprep.subr.mxu0 %v1133
    %1154 = vmatpush1.msra.mxu0 %v1132
    %1155 = vmatprep.subr.mxu0 %v1135
    %1156 = vmatpush1.msra.mxu0 %v1134
    %1157 = vmatprep.subr.mxu0 0.0
    %1158 = vmatpush1.msra.mxu0 0.0
    %1159 = vmatprep.subr.mxu0 0.0
    %1160 = vmatpush1.msra.mxu0 0.0
    %1161 = vmatprep.subr.mxu0 0.0
    %1162 = vmatpush1.msra.mxu0 0.0
    %1163 = vmatprep.subr.mxu0 0.0
    %1164 = vmatpush1.msra.mxu0 0.0
    %1165 = vmatprep.subr.mxu0 0.0
    %1166 = vmatpush1.msra.mxu0 0.0
    %1167 = vmatprep.subr.mxu0 0.0
    %1168 = vmatpush1.msra.mxu0 0.0
    %1169 = vmatprep.subr.mxu0 0.0
    %1170 = vmatpush1.msra.mxu0 0.0
    %1171 = vmatprep.subr.mxu0 0.0
    %1172 = vmatpush1.msra.mxu0 0.0
    %1173 = vmatprep.subr.mxu0 0.0
    %1174 = vmatpush1.msra.mxu0 0.0
    %1175 = vmatprep.subr.mxu0 0.0
    %1176 = vmatpush1.msra.mxu0 0.0
    %1177 = vmatprep.subr.mxu0 0.0
    %1178 = vmatpush1.msra.mxu0 0.0
    %1179 = vmatprep.subr.mxu0 0.0
    %1180 = vmatpush1.msra.mxu0 0.0
    %1181 = vmatprep.subr.mxu0 0.0
    %1182 = vmatpush1.msra.mxu0 0.0
    %1183 = vmatprep.subr.mxu0 0.0
    %1184 = vmatpush1.msra.mxu0 0.0
    %1185 = vmatprep.subr.mxu0 0.0
    %1186 = vmatpush1.msra.mxu0 0.0
    %1187 = vmatprep.subr.mxu0 0.0
    %1188 = vmatpush1.msra.mxu0 0.0
    %1189 = vmatprep.subr.mxu0 0.0
    %1190 = vmatpush1.msra.mxu0 0.0
    %1191 = vmatprep.subr.mxu0 0.0
    %1192 = vmatpush1.msra.mxu0 0.0
    %1193 = vmatprep.subr.mxu0 0.0
    %1194 = vmatpush1.msra.mxu0 0.0
    %1195 = vmatprep.subr.mxu0 0.0
    %1196 = vmatpush1.msra.mxu0 0.0
    %1197 = vmatprep.subr.mxu0 0.0
    %1198 = vmatpush1.msra.mxu0 0.0
    %1199 = vmatprep.subr.mxu0 0.0
    %1200 = vmatpush1.msra.mxu0 0.0
    %1201 = vmatprep.subr.mxu0 0.0
    %1202 = vmatpush1.msra.mxu0 0.0
    %1203 = vmatprep.subr.mxu0 0.0
    %1204 = vmatpush1.msra.mxu0 0.0
    %1205 = vmatprep.mubr.f32.mxu0 0.0
    %1206 = vmatmul.mubr.f32.gmra.mrb[0].mxu0 %v1139
    %v1207 = vpop.f32.mrb[0].mxu0
    %v1208 = vadd.f32 0.0, %v1207
    %v1209 = vpop.f32.mrb[0].mxu0
    %v1210 = vadd.f32 0.0, %v1209
    %1211 = vdwg.mxu0
    %v1213 = vrot.slane %v1103, 1
    %1214 = vrot.lane.b32.xlu0 %v1213, 64
    %v1215 = vpop.permute.xlu0 %1214
    %v1216 = vsel %vm172, %v1215, 0
    %1218 = vmatprep.subr.mxu0 %v1105
    %1219 = vmatpush1.msra.mxu0 %v1104
    %1220 = vmatprep.subr.mxu0 %v1107
    %1221 = vmatpush1.msra.mxu0 %v1106
    %1222 = vmatprep.subr.mxu0 %v1109
    %1223 = vmatpush1.msra.mxu0 %v1108
    %1224 = vmatprep.subr.mxu0 %v1111
    %1225 = vmatpush1.msra.mxu0 %v1110
    %1226 = vmatprep.subr.mxu0 %v1113
    %1227 = vmatpush1.msra.mxu0 %v1112
    %1228 = vmatprep.subr.mxu0 %v1115
    %1229 = vmatpush1.msra.mxu0 %v1114
    %1230 = vmatprep.subr.mxu0 %v1117
    %1231 = vmatpush1.msra.mxu0 %v1116
    %1232 = vmatprep.subr.mxu0 %v1119
    %1233 = vmatpush1.msra.mxu0 %v1118
    %1234 = vmatprep.subr.mxu0 0.0
    %1235 = vmatpush1.msra.mxu0 0.0
    %1236 = vmatprep.subr.mxu0 0.0
    %1237 = vmatpush1.msra.mxu0 0.0
    %1238 = vmatprep.subr.mxu0 0.0
    %1239 = vmatpush1.msra.mxu0 0.0
    %1240 = vmatprep.subr.mxu0 0.0
    %1241 = vmatpush1.msra.mxu0 0.0
    %1242 = vmatprep.subr.mxu0 0.0
    %1243 = vmatpush1.msra.mxu0 0.0
    %1244 = vmatprep.subr.mxu0 0.0
    %1245 = vmatpush1.msra.mxu0 0.0
    %1246 = vmatprep.subr.mxu0 0.0
    %1247 = vmatpush1.msra.mxu0 0.0
    %1248 = vmatprep.subr.mxu0 0.0
    %1249 = vmatpush1.msra.mxu0 0.0
    %1250 = vmatprep.subr.mxu0 0.0
    %1251 = vmatpush1.msra.mxu0 0.0
    %1252 = vmatprep.subr.mxu0 0.0
    %1253 = vmatpush1.msra.mxu0 0.0
    %1254 = vmatprep.subr.mxu0 0.0
    %1255 = vmatpush1.msra.mxu0 0.0
    %1256 = vmatprep.subr.mxu0 0.0
    %1257 = vmatpush1.msra.mxu0 0.0
    %1258 = vmatprep.subr.mxu0 0.0
    %1259 = vmatpush1.msra.mxu0 0.0
    %1260 = vmatprep.subr.mxu0 0.0
    %1261 = vmatpush1.msra.mxu0 0.0
    %1262 = vmatprep.subr.mxu0 0.0
    %1263 = vmatpush1.msra.mxu0 0.0
    %1264 = vmatprep.subr.mxu0 0.0
    %1265 = vmatpush1.msra.mxu0 0.0
    %1266 = vmatprep.subr.mxu0 0.0
    %1267 = vmatpush1.msra.mxu0 0.0
    %1268 = vmatprep.subr.mxu0 0.0
    %1269 = vmatpush1.msra.mxu0 0.0
    %1270 = vmatprep.subr.mxu0 0.0
    %1271 = vmatpush1.msra.mxu0 0.0
    %1272 = vmatprep.subr.mxu0 0.0
    %1273 = vmatpush1.msra.mxu0 0.0
    %1274 = vmatprep.subr.mxu0 0.0
    %1275 = vmatpush1.msra.mxu0 0.0
    %1276 = vmatprep.subr.mxu0 0.0
    %1277 = vmatpush1.msra.mxu0 0.0
    %1278 = vmatprep.subr.mxu0 0.0
    %1279 = vmatpush1.msra.mxu0 0.0
    %1280 = vmatprep.subr.mxu0 0.0
    %1281 = vmatpush1.msra.mxu0 0.0
    %1282 = vmatprep.mubr.f32.mxu0 0.0
    %1283 = vmatmul.mubr.f32.gmra.mrb[0].mxu0 %v1216
    %v1284 = vpop.f32.mrb[0].mxu0
    %v1285 = vadd.f32 %v1208, %v1284
    %v1286 = vpop.f32.mrb[0].mxu0
    %v1287 = vadd.f32 %v1210, %v1286
    %1288 = vdwg.mxu0
    %v1289 = vxor.u32 %v1285, 2147483648
    %v1290 = vxor.u32 %v1287, 2147483648
    %v1291 = vmul.f32 %v1289, 1.442695
    %v1292 = vpow.pop %v1291
    %v1293 = vmul.f32 %v1290, 1.442695
    %v1294 = vpow.pop %v1293
    %v1295 = vadd.f32 %v1292, 1.0
    %v1296 = vadd.f32 %v1294, 1.0
    %v1297 = vrcp.pop %v1295
    %v1298 = vmul.f32 1.0, %v1297
    %v1299 = vrcp.pop %v1296
    %v1300 = vmul.f32 1.0, %v1299
    %v1301 = vtanh.pop %v1287
    %v1302 = vmul.f32 %v1298, %v559
    %v1303 = vmul.f32 %v1298, %v1301
    %1305 = vrot.lane.b32.xlu0 %v1303, 64
    %v1306 = vpop.permute.xlu0 %1305
    %v1308 = vadd.f32 %v1302, %v1306
    %v1309 = vtanh.pop %v1308
    %v1310 = vmul.f32 %v1300, %v1309
    %v1311 = vxor.u32 %v1310, 2147483648
    %v1312 = vmul.f32 %v1311, 1.442695
    %v1313 = vpow.pop %v1312
    %v1314 = vadd.f32 %v1313, 1.0
    %v1315 = vrcp.pop %v1314
    %v1316 = vmul.f32 1.0, %v1315
    %1318 = vrot.lane.b32.xlu0 %v1316, 64
    %v1319 = vpop.permute.xlu0 %1318
    %s1321 = scalar_lea.vmem [#allocation17], 1
    %1322 = vst.msk [vmem:[%s1321] sm:$0x1] %vm572, %v1319
    %v1323 = vld [vmem:[#allocation11] sm:$0xff]
    %v1324 = vld [vmem:[#allocation11 + $0x8] sm:$0xff]
    %v1325 = vld [vmem:[#allocation11 + $0x10] sm:$0xff]
    %v1326 = vld [vmem:[#allocation11 + $0x18] sm:$0xff]
    %v1327 = vld [vmem:[#allocation11 + $0x20] sm:$0xff]
    %v1328 = vld [vmem:[#allocation11 + $0x28] sm:$0xff]
    %v1329 = vld [vmem:[#allocation11 + $0x30] sm:$0xff]
    %v1330 = vld [vmem:[#allocation11 + $0x38] sm:$0xff]
    %v1331 = vld [vmem:[#allocation11 + $0x40] sm:$0xff]
    %v1332 = vld [vmem:[#allocation11 + $0x48] sm:$0xff]
    %v1333 = vld [vmem:[#allocation11 + $0x50] sm:$0xff]
    %v1334 = vld [vmem:[#allocation11 + $0x58] sm:$0xff]
    %v1335 = vld [vmem:[#allocation11 + $0x60] sm:$0xff]
    %v1336 = vld [vmem:[#allocation11 + $0x68] sm:$0xff]
    %v1337 = vld [vmem:[#allocation11 + $0x70] sm:$0xff]
    %v1338 = vld [vmem:[#allocation11 + $0x78] sm:$0xff]
    %v1339 = vld [vmem:[#allocation13] sm:$0xff]
    %v1340 = vld [vmem:[#allocation13 + $0x8] sm:$0xff]
    %v1341 = vld [vmem:[#allocation13 + $0x10] sm:$0xff]
    %v1342 = vld [vmem:[#allocation13 + $0x18] sm:$0xff]
    %v1343 = vld [vmem:[#allocation13 + $0x20] sm:$0xff]
    %v1344 = vld [vmem:[#allocation13 + $0x28] sm:$0xff]
    %v1345 = vld [vmem:[#allocation13 + $0x30] sm:$0xff]
    %v1346 = vld [vmem:[#allocation13 + $0x38] sm:$0xff]
    %v1347 = vld [vmem:[#allocation13 + $0x40] sm:$0xff]
    %v1348 = vld [vmem:[#allocation13 + $0x48] sm:$0xff]
    %v1349 = vld [vmem:[#allocation13 + $0x50] sm:$0xff]
    %v1350 = vld [vmem:[#allocation13 + $0x58] sm:$0xff]
    %v1351 = vld [vmem:[#allocation13 + $0x60] sm:$0xff]
    %v1352 = vld [vmem:[#allocation13 + $0x68] sm:$0xff]
    %v1353 = vld [vmem:[#allocation13 + $0x70] sm:$0xff]
    %v1354 = vld [vmem:[#allocation13 + $0x78] sm:$0xff]
    %1355 = vmatprep.subr.mxu0 %v1340
    %1356 = vmatpush1.msra.mxu0 %v1339
    %1357 = vmatprep.subr.mxu0 %v1342
    %1358 = vmatpush1.msra.mxu0 %v1341
    %1359 = vmatprep.subr.mxu0 %v1344
    %1360 = vmatpush1.msra.mxu0 %v1343
    %1361 = vmatprep.subr.mxu0 %v1346
    %1362 = vmatpush1.msra.mxu0 %v1345
    %1363 = vmatprep.subr.mxu0 %v1348
    %1364 = vmatpush1.msra.mxu0 %v1347
    %1365 = vmatprep.subr.mxu0 %v1350
    %1366 = vmatpush1.msra.mxu0 %v1349
    %1367 = vmatprep.subr.mxu0 %v1352
    %1368 = vmatpush1.msra.mxu0 %v1351
    %1369 = vmatprep.subr.mxu0 %v1354
    %1370 = vmatpush1.msra.mxu0 %v1353
    %1371 = vmatprep.subr.mxu0 0.0
    %1372 = vmatpush1.msra.mxu0 0.0
    %1373 = vmatprep.subr.mxu0 0.0
    %1374 = vmatpush1.msra.mxu0 0.0
    %1375 = vmatprep.subr.mxu0 0.0
    %1376 = vmatpush1.msra.mxu0 0.0
    %1377 = vmatprep.subr.mxu0 0.0
    %1378 = vmatpush1.msra.mxu0 0.0
    %1379 = vmatprep.subr.mxu0 0.0
    %1380 = vmatpush1.msra.mxu0 0.0
    %1381 = vmatprep.subr.mxu0 0.0
    %1382 = vmatpush1.msra.mxu0 0.0
    %1383 = vmatprep.subr.mxu0 0.0
    %1384 = vmatpush1.msra.mxu0 0.0
    %1385 = vmatprep.subr.mxu0 0.0
    %1386 = vmatpush1.msra.mxu0 0.0
    %1387 = vmatprep.subr.mxu0 0.0
    %1388 = vmatpush1.msra.mxu0 0.0
    %1389 = vmatprep.subr.mxu0 0.0
    %1390 = vmatpush1.msra.mxu0 0.0
    %1391 = vmatprep.subr.mxu0 0.0
    %1392 = vmatpush1.msra.mxu0 0.0
    %1393 = vmatprep.subr.mxu0 0.0
    %1394 = vmatpush1.msra.mxu0 0.0
    %1395 = vmatprep.subr.mxu0 0.0
    %1396 = vmatpush1.msra.mxu0 0.0
    %1397 = vmatprep.subr.mxu0 0.0
    %1398 = vmatpush1.msra.mxu0 0.0
    %1399 = vmatprep.subr.mxu0 0.0
    %1400 = vmatpush1.msra.mxu0 0.0
    %1401 = vmatprep.subr.mxu0 0.0
    %1402 = vmatpush1.msra.mxu0 0.0
    %1403 = vmatprep.subr.mxu0 0.0
    %1404 = vmatpush1.msra.mxu0 0.0
    %1405 = vmatprep.subr.mxu0 0.0
    %1406 = vmatpush1.msra.mxu0 0.0
    %1407 = vmatprep.subr.mxu0 0.0
    %1408 = vmatpush1.msra.mxu0 0.0
    %1409 = vmatprep.subr.mxu0 0.0
    %1410 = vmatpush1.msra.mxu0 0.0
    %1411 = vmatprep.subr.mxu0 0.0
    %1412 = vmatpush1.msra.mxu0 0.0
    %1413 = vmatprep.subr.mxu0 0.0
    %1414 = vmatpush1.msra.mxu0 0.0
    %1415 = vmatprep.subr.mxu0 0.0
    %1416 = vmatpush1.msra.mxu0 0.0
    %1417 = vmatprep.subr.mxu0 0.0
    %1418 = vmatpush1.msra.mxu0 0.0
    %1419 = vmatprep.mubr.f32.mxu0 0.0
    %1420 = vmatmul.mubr.f32.gmra.mrb[0].mxu0 %v878
    %v1421 = vpop.f32.mrb[0].mxu0
    %v1422 = vadd.f32 0.0, %v1421
    %v1423 = vpop.f32.mrb[0].mxu0
    %v1424 = vadd.f32 0.0, %v1423
    %1425 = vdwg.mxu0
    %v1426 = vsel %vm172, %v1319, 0
    %1428 = vmatprep.subr.mxu0 %v1324
    %1429 = vmatpush1.msra.mxu0 %v1323
    %1430 = vmatprep.subr.mxu0 %v1326
    %1431 = vmatpush1.msra.mxu0 %v1325
    %1432 = vmatprep.subr.mxu0 %v1328
    %1433 = vmatpush1.msra.mxu0 %v1327
    %1434 = vmatprep.subr.mxu0 %v1330
    %1435 = vmatpush1.msra.mxu0 %v1329
    %1436 = vmatprep.subr.mxu0 %v1332
    %1437 = vmatpush1.msra.mxu0 %v1331
    %1438 = vmatprep.subr.mxu0 %v1334
    %1439 = vmatpush1.msra.mxu0 %v1333
    %1440 = vmatprep.subr.mxu0 %v1336
    %1441 = vmatpush1.msra.mxu0 %v1335
    %1442 = vmatprep.subr.mxu0 %v1338
    %1443 = vmatpush1.msra.mxu0 %v1337
    %1444 = vmatprep.subr.mxu0 0.0
    %1445 = vmatpush1.msra.mxu0 0.0
    %1446 = vmatprep.subr.mxu0 0.0
    %1447 = vmatpush1.msra.mxu0 0.0
    %1448 = vmatprep.subr.mxu0 0.0
    %1449 = vmatpush1.msra.mxu0 0.0
    %1450 = vmatprep.subr.mxu0 0.0
    %1451 = vmatpush1.msra.mxu0 0.0
    %1452 = vmatprep.subr.mxu0 0.0
    %1453 = vmatpush1.msra.mxu0 0.0
    %1454 = vmatprep.subr.mxu0 0.0
    %1455 = vmatpush1.msra.mxu0 0.0
    %1456 = vmatprep.subr.mxu0 0.0
    %1457 = vmatpush1.msra.mxu0 0.0
    %1458 = vmatprep.subr.mxu0 0.0
    %1459 = vmatpush1.msra.mxu0 0.0
    %1460 = vmatprep.subr.mxu0 0.0
    %1461 = vmatpush1.msra.mxu0 0.0
    %1462 = vmatprep.subr.mxu0 0.0
    %1463 = vmatpush1.msra.mxu0 0.0
    %1464 = vmatprep.subr.mxu0 0.0
    %1465 = vmatpush1.msra.mxu0 0.0
    %1466 = vmatprep.subr.mxu0 0.0
    %1467 = vmatpush1.msra.mxu0 0.0
    %1468 = vmatprep.subr.mxu0 0.0
    %1469 = vmatpush1.msra.mxu0 0.0
    %1470 = vmatprep.subr.mxu0 0.0
    %1471 = vmatpush1.msra.mxu0 0.0
    %1472 = vmatprep.subr.mxu0 0.0
    %1473 = vmatpush1.msra.mxu0 0.0
    %1474 = vmatprep.subr.mxu0 0.0
    %1475 = vmatpush1.msra.mxu0 0.0
    %1476 = vmatprep.subr.mxu0 0.0
    %1477 = vmatpush1.msra.mxu0 0.0
    %1478 = vmatprep.subr.mxu0 0.0
    %1479 = vmatpush1.msra.mxu0 0.0
    %1480 = vmatprep.subr.mxu0 0.0
    %1481 = vmatpush1.msra.mxu0 0.0
    %1482 = vmatprep.subr.mxu0 0.0
    %1483 = vmatpush1.msra.mxu0 0.0
    %1484 = vmatprep.subr.mxu0 0.0
    %1485 = vmatpush1.msra.mxu0 0.0
    %1486 = vmatprep.subr.mxu0 0.0
    %1487 = vmatpush1.msra.mxu0 0.0
    %1488 = vmatprep.subr.mxu0 0.0
    %1489 = vmatpush1.msra.mxu0 0.0
    %1490 = vmatprep.subr.mxu0 0.0
    %1491 = vmatpush1.msra.mxu0 0.0
    %1492 = vmatprep.mubr.f32.mxu0 0.0
    %1493 = vmatmul.mubr.f32.gmra.mrb[0].mxu0 %v1426
    %v1494 = vpop.f32.mrb[0].mxu0
    %v1495 = vadd.f32 %v1422, %v1494
    %v1496 = vpop.f32.mrb[0].mxu0
    %v1497 = vadd.f32 %v1424, %v1496
    %1498 = vdwg.mxu0
    %v1499 = vxor.u32 %v1495, 2147483648
    %v1500 = vxor.u32 %v1497, 2147483648
    %v1501 = vmul.f32 %v1499, 1.442695
    %v1502 = vpow.pop %v1501
    %v1503 = vmul.f32 %v1500, 1.442695
    %v1504 = vpow.pop %v1503
    %v1505 = vadd.f32 %v1502, 1.0
    %v1506 = vadd.f32 %v1504, 1.0
    %v1507 = vrcp.pop %v1505
    %v1508 = vmul.f32 1.0, %v1507
    %v1509 = vrcp.pop %v1506
    %v1510 = vmul.f32 1.0, %v1509
    %v1511 = vtanh.pop %v1497
    %v1512 = vmul.f32 %v1508, %v769
    %v1513 = vmul.f32 %v1508, %v1511
    %1515 = vrot.lane.b32.xlu0 %v1513, 64
    %v1516 = vpop.permute.xlu0 %1515
    %v1518 = vadd.f32 %v1512, %v1516
    %v1519 = vtanh.pop %v1518
    %v1520 = vmul.f32 %v1510, %v1519
    %v1521 = vld [vmem:[#allocation14] sm:$0xff]
    %v1522 = vld [vmem:[#allocation14 + $0x8] sm:$0xff]
    %v1523 = vld [vmem:[#allocation14 + $0x10] sm:$0xff]
    %v1524 = vld [vmem:[#allocation14 + $0x18] sm:$0xff]
    %v1525 = vld [vmem:[#allocation14 + $0x20] sm:$0xff]
    %v1526 = vld [vmem:[#allocation14 + $0x28] sm:$0xff]
    %v1527 = vld [vmem:[#allocation14 + $0x30] sm:$0xff]
    %v1528 = vld [vmem:[#allocation14 + $0x38] sm:$0xff]
    %v1529 = vld [vmem:[#allocation14 + $0x40] sm:$0xff]
    %v1530 = vld [vmem:[#allocation14 + $0x48] sm:$0xff]
    %v1531 = vld [vmem:[#allocation14 + $0x50] sm:$0xff]
    %v1532 = vld [vmem:[#allocation14 + $0x58] sm:$0xff]
    %v1533 = vld [vmem:[#allocation14 + $0x60] sm:$0xff]
    %v1534 = vld [vmem:[#allocation14 + $0x68] sm:$0xff]
    %v1535 = vld [vmem:[#allocation14 + $0x70] sm:$0xff]
    %v1536 = vld [vmem:[#allocation14 + $0x78] sm:$0xff]
    %v1537 = vld [vmem:[#allocation16] sm:$0xff]
    %v1538 = vld [vmem:[#allocation16 + $0x8] sm:$0xff]
    %v1539 = vld [vmem:[#allocation16 + $0x10] sm:$0xff]
    %v1540 = vld [vmem:[#allocation16 + $0x18] sm:$0xff]
    %v1541 = vld [vmem:[#allocation16 + $0x20] sm:$0xff]
    %v1542 = vld [vmem:[#allocation16 + $0x28] sm:$0xff]
    %v1543 = vld [vmem:[#allocation16 + $0x30] sm:$0xff]
    %v1544 = vld [vmem:[#allocation16 + $0x38] sm:$0xff]
    %v1545 = vld [vmem:[#allocation16 + $0x40] sm:$0xff]
    %v1546 = vld [vmem:[#allocation16 + $0x48] sm:$0xff]
    %v1547 = vld [vmem:[#allocation16 + $0x50] sm:$0xff]
    %v1548 = vld [vmem:[#allocation16 + $0x58] sm:$0xff]
    %v1549 = vld [vmem:[#allocation16 + $0x60] sm:$0xff]
    %v1550 = vld [vmem:[#allocation16 + $0x68] sm:$0xff]
    %v1551 = vld [vmem:[#allocation16 + $0x70] sm:$0xff]
    %v1552 = vld [vmem:[#allocation16 + $0x78] sm:$0xff]
    %1554 = vrot.lane.b32.xlu0 %v972, 64
    %v1555 = vpop.permute.xlu0 %1554
    %v1556 = vsel %vm172, %v1555, 0
    %1558 = vmatprep.subr.mxu0 %v1538
    %1559 = vmatpush1.msra.mxu0 %v1537
    %1560 = vmatprep.subr.mxu0 %v1540
    %1561 = vmatpush1.msra.mxu0 %v1539
    %1562 = vmatprep.subr.mxu0 %v1542
    %1563 = vmatpush1.msra.mxu0 %v1541
    %1564 = vmatprep.subr.mxu0 %v1544
    %1565 = vmatpush1.msra.mxu0 %v1543
    %1566 = vmatprep.subr.mxu0 %v1546
    %1567 = vmatpush1.msra.mxu0 %v1545
    %1568 = vmatprep.subr.mxu0 %v1548
    %1569 = vmatpush1.msra.mxu0 %v1547
    %1570 = vmatprep.subr.mxu0 %v1550
    %1571 = vmatpush1.msra.mxu0 %v1549
    %1572 = vmatprep.subr.mxu0 %v1552
    %1573 = vmatpush1.msra.mxu0 %v1551
    %1574 = vmatprep.subr.mxu0 0.0
    %1575 = vmatpush1.msra.mxu0 0.0
    %1576 = vmatprep.subr.mxu0 0.0
    %1577 = vmatpush1.msra.mxu0 0.0
    %1578 = vmatprep.subr.mxu0 0.0
    %1579 = vmatpush1.msra.mxu0 0.0
    %1580 = vmatprep.subr.mxu0 0.0
    %1581 = vmatpush1.msra.mxu0 0.0
    %1582 = vmatprep.subr.mxu0 0.0
    %1583 = vmatpush1.msra.mxu0 0.0
    %1584 = vmatprep.subr.mxu0 0.0
    %1585 = vmatpush1.msra.mxu0 0.0
    %1586 = vmatprep.subr.mxu0 0.0
    %1587 = vmatpush1.msra.mxu0 0.0
    %1588 = vmatprep.subr.mxu0 0.0
    %1589 = vmatpush1.msra.mxu0 0.0
    %1590 = vmatprep.subr.mxu0 0.0
    %1591 = vmatpush1.msra.mxu0 0.0
    %1592 = vmatprep.subr.mxu0 0.0
    %1593 = vmatpush1.msra.mxu0 0.0
    %1594 = vmatprep.subr.mxu0 0.0
    %1595 = vmatpush1.msra.mxu0 0.0
    %1596 = vmatprep.subr.mxu0 0.0
    %1597 = vmatpush1.msra.mxu0 0.0
    %1598 = vmatprep.subr.mxu0 0.0
    %1599 = vmatpush1.msra.mxu0 0.0
    %1600 = vmatprep.subr.mxu0 0.0
    %1601 = vmatpush1.msra.mxu0 0.0
    %1602 = vmatprep.subr.mxu0 0.0
    %1603 = vmatpush1.msra.mxu0 0.0
    %1604 = vmatprep.subr.mxu0 0.0
    %1605 = vmatpush1.msra.mxu0 0.0
    %1606 = vmatprep.subr.mxu0 0.0
    %1607 = vmatpush1.msra.mxu0 0.0
    %1608 = vmatprep.subr.mxu0 0.0
    %1609 = vmatpush1.msra.mxu0 0.0
    %1610 = vmatprep.subr.mxu0 0.0
    %1611 = vmatpush1.msra.mxu0 0.0
    %1612 = vmatprep.subr.mxu0 0.0
    %1613 = vmatpush1.msra.mxu0 0.0
    %1614 = vmatprep.subr.mxu0 0.0
    %1615 = vmatpush1.msra.mxu0 0.0
    %1616 = vmatprep.subr.mxu0 0.0
    %1617 = vmatpush1.msra.mxu0 0.0
    %1618 = vmatprep.subr.mxu0 0.0
    %1619 = vmatpush1.msra.mxu0 0.0
    %1620 = vmatprep.subr.mxu0 0.0
    %1621 = vmatpush1.msra.mxu0 0.0
    %1622 = vmatprep.mubr.f32.mxu0 0.0
    %1623 = vmatmul.mubr.f32.gmra.mrb[0].mxu0 %v1556
    %v1624 = vpop.f32.mrb[0].mxu0
    %v1625 = vadd.f32 0.0, %v1624
    %v1626 = vpop.f32.mrb[0].mxu0
    %v1627 = vadd.f32 0.0, %v1626
    %1628 = vdwg.mxu0
    %1630 = vrot.lane.b32.xlu0 %v1520, 64
    %v1631 = vpop.permute.xlu0 %1630
    %v1632 = vsel %vm172, %v1631, 0
    %1634 = vmatprep.subr.mxu0 %v1522
    %1635 = vmatpush1.msra.mxu0 %v1521
    %1636 = vmatprep.subr.mxu0 %v1524
    %1637 = vmatpush1.msra.mxu0 %v1523
    %1638 = vmatprep.subr.mxu0 %v1526
    %1639 = vmatpush1.msra.mxu0 %v1525
    %1640 = vmatprep.subr.mxu0 %v1528
    %1641 = vmatpush1.msra.mxu0 %v1527
    %1642 = vmatprep.subr.mxu0 %v1530
    %1643 = vmatpush1.msra.mxu0 %v1529
    %1644 = vmatprep.subr.mxu0 %v1532
    %1645 = vmatpush1.msra.mxu0 %v1531
    %1646 = vmatprep.subr.mxu0 %v1534
    %1647 = vmatpush1.msra.mxu0 %v1533
    %1648 = vmatprep.subr.mxu0 %v1536
    %1649 = vmatpush1.msra.mxu0 %v1535
    %1650 = vmatprep.subr.mxu0 0.0
    %1651 = vmatpush1.msra.mxu0 0.0
    %1652 = vmatprep.subr.mxu0 0.0
    %1653 = vmatpush1.msra.mxu0 0.0
    %1654 = vmatprep.subr.mxu0 0.0
    %1655 = vmatpush1.msra.mxu0 0.0
    %1656 = vmatprep.subr.mxu0 0.0
    %1657 = vmatpush1.msra.mxu0 0.0
    %1658 = vmatprep.subr.mxu0 0.0
    %1659 = vmatpush1.msra.mxu0 0.0
    %1660 = vmatprep.subr.mxu0 0.0
    %1661 = vmatpush1.msra.mxu0 0.0
    %1662 = vmatprep.subr.mxu0 0.0
    %1663 = vmatpush1.msra.mxu0 0.0
    %1664 = vmatprep.subr.mxu0 0.0
    %1665 = vmatpush1.msra.mxu0 0.0
    %1666 = vmatprep.subr.mxu0 0.0
    %1667 = vmatpush1.msra.mxu0 0.0
    %1668 = vmatprep.subr.mxu0 0.0
    %1669 = vmatpush1.msra.mxu0 0.0
    %1670 = vmatprep.subr.mxu0 0.0
    %1671 = vmatpush1.msra.mxu0 0.0
    %1672 = vmatprep.subr.mxu0 0.0
    %1673 = vmatpush1.msra.mxu0 0.0
    %1674 = vmatprep.subr.mxu0 0.0
    %1675 = vmatpush1.msra.mxu0 0.0
    %1676 = vmatprep.subr.mxu0 0.0
    %1677 = vmatpush1.msra.mxu0 0.0
    %1678 = vmatprep.subr.mxu0 0.0
    %1679 = vmatpush1.msra.mxu0 0.0
    %1680 = vmatprep.subr.mxu0 0.0
    %1681 = vmatpush1.msra.mxu0 0.0
    %1682 = vmatprep.subr.mxu0 0.0
    %1683 = vmatpush1.msra.mxu0 0.0
    %1684 = vmatprep.subr.mxu0 0.0
    %1685 = vmatpush1.msra.mxu0 0.0
    %1686 = vmatprep.subr.mxu0 0.0
    %1687 = vmatpush1.msra.mxu0 0.0
    %1688 = vmatprep.subr.mxu0 0.0
    %1689 = vmatpush1.msra.mxu0 0.0
    %1690 = vmatprep.subr.mxu0 0.0
    %1691 = vmatpush1.msra.mxu0 0.0
    %1692 = vmatprep.subr.mxu0 0.0
    %1693 = vmatpush1.msra.mxu0 0.0
    %1694 = vmatprep.subr.mxu0 0.0
    %1695 = vmatpush1.msra.mxu0 0.0
    %1696 = vmatprep.subr.mxu0 0.0
    %1697 = vmatpush1.msra.mxu0 0.0
    %1698 = vmatprep.mubr.f32.mxu0 0.0
    %1699 = vmatmul.mubr.f32.gmra.mrb[0].mxu0 %v1632
    %v1700 = vpop.f32.mrb[0].mxu0
    %v1701 = vadd.f32 %v1625, %v1700
    %v1702 = vpop.f32.mrb[0].mxu0
    %v1703 = vadd.f32 %v1627, %v1702
    %1704 = vdwg.mxu0
    %v1705 = vxor.u32 %v1701, 2147483648
    %v1706 = vxor.u32 %v1703, 2147483648
    %v1707 = vmul.f32 %v1705, 1.442695
    %v1708 = vpow.pop %v1707
    %v1709 = vmul.f32 %v1706, 1.442695
    %v1710 = vpow.pop %v1709
    %v1711 = vadd.f32 %v1708, 1.0
    %v1712 = vadd.f32 %v1710, 1.0
    %v1713 = vrcp.pop %v1711
    %v1714 = vmul.f32 1.0, %v1713
    %v1715 = vrcp.pop %v1712
    %v1716 = vmul.f32 1.0, %v1715
    %v1717 = vtanh.pop %v1703
    %v1718 = vmul.f32 %v1714, %v970
    %v1719 = vmul.f32 %v1714, %v1717
    %1721 = vrot.lane.b32.xlu0 %v1719, 64
    %v1722 = vpop.permute.xlu0 %1721
    %v1724 = vadd.f32 %v1718, %v1722
    %v1725 = vtanh.pop %v1724
    %v1726 = vmul.f32 %v1716, %v1725
    %v1727 = vxor.u32 %v1726, 2147483648
    %v1728 = vmul.f32 %v1727, 1.442695
    %v1729 = vpow.pop %v1728
    %v1730 = vadd.f32 %v1729, 1.0
    %v1731 = vrcp.pop %v1730
    %v1732 = vmul.f32 1.0, %v1731
    %1734 = vrot.lane.b32.xlu0 %v1732, 64
    %v1735 = vpop.permute.xlu0 %1734
    %s1737 = scalar_lea.vmem %s9, 1
    %1738 = vst.msk [vmem:[%s1737] sm:$0x1] %vm572, %v1735
    %v1739 = vld [vmem:[#allocation7] sm:$0xff]
    %v1740 = vld [vmem:[#allocation7 + $0x8] sm:$0xff]
    %v1741 = vld [vmem:[#allocation7 + $0x10] sm:$0xff]
    %v1742 = vld [vmem:[#allocation7 + $0x18] sm:$0xff]
    %v1743 = vld [vmem:[#allocation7 + $0x20] sm:$0xff]
    %v1744 = vld [vmem:[#allocation7 + $0x28] sm:$0xff]
    %v1745 = vld [vmem:[#allocation7 + $0x30] sm:$0xff]
    %v1746 = vld [vmem:[#allocation7 + $0x38] sm:$0xff]
    %v1747 = vld [vmem:[#allocation7 + $0x40] sm:$0xff]
    %v1748 = vld [vmem:[#allocation7 + $0x48] sm:$0xff]
    %v1749 = vld [vmem:[#allocation7 + $0x50] sm:$0xff]
    %v1750 = vld [vmem:[#allocation7 + $0x58] sm:$0xff]
    %v1751 = vld [vmem:[#allocation7 + $0x60] sm:$0xff]
    %v1752 = vld [vmem:[#allocation7 + $0x68] sm:$0xff]
    %v1753 = vld [vmem:[#allocation7 + $0x70] sm:$0xff]
    %v1754 = vld [vmem:[#allocation7 + $0x78] sm:$0xff]
    %1755 = vmatprep.subr.mxu0 %v1740
    %1756 = vmatpush1.msra.mxu0 %v1739
    %1757 = vmatprep.subr.mxu0 %v1742
    %1758 = vmatpush1.msra.mxu0 %v1741
    %1759 = vmatprep.subr.mxu0 %v1744
    %1760 = vmatpush1.msra.mxu0 %v1743
    %1761 = vmatprep.subr.mxu0 %v1746
    %1762 = vmatpush1.msra.mxu0 %v1745
    %1763 = vmatprep.subr.mxu0 %v1748
    %1764 = vmatpush1.msra.mxu0 %v1747
    %1765 = vmatprep.subr.mxu0 %v1750
    %1766 = vmatpush1.msra.mxu0 %v1749
    %1767 = vmatprep.subr.mxu0 %v1752
    %1768 = vmatpush1.msra.mxu0 %v1751
    %1769 = vmatprep.subr.mxu0 %v1754
    %1770 = vmatpush1.msra.mxu0 %v1753
    %1771 = vmatprep.subr.mxu0 0.0
    %1772 = vmatpush1.msra.mxu0 0.0
    %1773 = vmatprep.subr.mxu0 0.0
    %1774 = vmatpush1.msra.mxu0 0.0
    %1775 = vmatprep.subr.mxu0 0.0
    %1776 = vmatpush1.msra.mxu0 0.0
    %1777 = vmatprep.subr.mxu0 0.0
    %1778 = vmatpush1.msra.mxu0 0.0
    %1779 = vmatprep.subr.mxu0 0.0
    %1780 = vmatpush1.msra.mxu0 0.0
    %1781 = vmatprep.subr.mxu0 0.0
    %1782 = vmatpush1.msra.mxu0 0.0
    %1783 = vmatprep.subr.mxu0 0.0
    %1784 = vmatpush1.msra.mxu0 0.0
    %1785 = vmatprep.subr.mxu0 0.0
    %1786 = vmatpush1.msra.mxu0 0.0
    %1787 = vmatprep.subr.mxu0 0.0
    %1788 = vmatpush1.msra.mxu0 0.0
    %1789 = vmatprep.subr.mxu0 0.0
    %1790 = vmatpush1.msra.mxu0 0.0
    %1791 = vmatprep.subr.mxu0 0.0
    %1792 = vmatpush1.msra.mxu0 0.0
    %1793 = vmatprep.subr.mxu0 0.0
    %1794 = vmatpush1.msra.mxu0 0.0
    %1795 = vmatprep.subr.mxu0 0.0
    %1796 = vmatpush1.msra.mxu0 0.0
    %1797 = vmatprep.subr.mxu0 0.0
    %1798 = vmatpush1.msra.mxu0 0.0
    %1799 = vmatprep.subr.mxu0 0.0
    %1800 = vmatpush1.msra.mxu0 0.0
    %1801 = vmatprep.subr.mxu0 0.0
    %1802 = vmatpush1.msra.mxu0 0.0
    %1803 = vmatprep.subr.mxu0 0.0
    %1804 = vmatpush1.msra.mxu0 0.0
    %1805 = vmatprep.subr.mxu0 0.0
    %1806 = vmatpush1.msra.mxu0 0.0
    %1807 = vmatprep.subr.mxu0 0.0
    %1808 = vmatpush1.msra.mxu0 0.0
    %1809 = vmatprep.subr.mxu0 0.0
    %1810 = vmatpush1.msra.mxu0 0.0
    %1811 = vmatprep.subr.mxu0 0.0
    %1812 = vmatpush1.msra.mxu0 0.0
    %1813 = vmatprep.subr.mxu0 0.0
    %1814 = vmatpush1.msra.mxu0 0.0
    %1815 = vmatprep.subr.mxu0 0.0
    %1816 = vmatpush1.msra.mxu0 0.0
    %1817 = vmatprep.subr.mxu0 0.0
    %1818 = vmatpush1.msra.mxu0 0.0
    %1819 = vmatprep.mubr.f32.mxu0 0.0
    %1820 = vmatmul.mubr.f32.gmra.mrb[0].mxu0 %v1216
    %v1821 = vpop.f32.mrb[0].mxu0
    %v1822 = vadd.f32 0.0, %v1821
    %v1823 = vpop.f32.mrb[0].mxu0
    %v1824 = vadd.f32 0.0, %v1823
    %1825 = vdwg.mxu0
    %v1828 = vrot.slane %v1822, 6
    %v1829 = vrot.slane %v1824, 6
    %v1832 = vadd.f32 %v243, %v1828
    %v1833 = vadd.f32 %v245, %v1829
    %v1834 = vxor.u32 %v1832, 2147483648
    %v1835 = vxor.u32 %v1833, 2147483648
    %v1836 = vmul.f32 %v1834, 1.442695
    %v1837 = vpow.pop %v1836
    %v1838 = vmul.f32 %v1835, 1.442695
    %v1839 = vpow.pop %v1838
    %v1840 = vadd.f32 %v1837, 1.0
    %v1841 = vadd.f32 %v1839, 1.0
    %v1842 = vrcp.pop %v1840
    %v1843 = vmul.f32 1.0, %v1842
    %v1844 = vrcp.pop %v1841
    %v1845 = vmul.f32 1.0, %v1844
    %v1846 = vtanh.pop %v1833
    %v1848 = vrot.slane %v1101, 7
    %v1850 = vmul.f32 %v1843, %v1848
    %v1851 = vmul.f32 %v1843, %v1846
    %1853 = vrot.lane.b32.xlu0 %v1851, 64
    %v1854 = vpop.permute.xlu0 %1853
    %v1856 = vadd.f32 %v1850, %v1854
    %v1857 = vtanh.pop %v1856
    %v1858 = vmul.f32 %v1845, %v1857
    %v1859 = vld [vmem:[#allocation8] sm:$0xff]
    %v1860 = vld [vmem:[#allocation8 + $0x8] sm:$0xff]
    %v1861 = vld [vmem:[#allocation8 + $0x10] sm:$0xff]
    %v1862 = vld [vmem:[#allocation8 + $0x18] sm:$0xff]
    %v1863 = vld [vmem:[#allocation8 + $0x20] sm:$0xff]
    %v1864 = vld [vmem:[#allocation8 + $0x28] sm:$0xff]
    %v1865 = vld [vmem:[#allocation8 + $0x30] sm:$0xff]
    %v1866 = vld [vmem:[#allocation8 + $0x38] sm:$0xff]
    %v1867 = vld [vmem:[#allocation8 + $0x40] sm:$0xff]
    %v1868 = vld [vmem:[#allocation8 + $0x48] sm:$0xff]
    %v1869 = vld [vmem:[#allocation8 + $0x50] sm:$0xff]
    %v1870 = vld [vmem:[#allocation8 + $0x58] sm:$0xff]
    %v1871 = vld [vmem:[#allocation8 + $0x60] sm:$0xff]
    %v1872 = vld [vmem:[#allocation8 + $0x68] sm:$0xff]
    %v1873 = vld [vmem:[#allocation8 + $0x70] sm:$0xff]
    %v1874 = vld [vmem:[#allocation8 + $0x78] sm:$0xff]
    %v1875 = vld [vmem:[#allocation10] sm:$0xff]
    %v1876 = vld [vmem:[#allocation10 + $0x8] sm:$0xff]
    %v1877 = vld [vmem:[#allocation10 + $0x10] sm:$0xff]
    %v1878 = vld [vmem:[#allocation10 + $0x18] sm:$0xff]
    %v1879 = vld [vmem:[#allocation10 + $0x20] sm:$0xff]
    %v1880 = vld [vmem:[#allocation10 + $0x28] sm:$0xff]
    %v1881 = vld [vmem:[#allocation10 + $0x30] sm:$0xff]
    %v1882 = vld [vmem:[#allocation10 + $0x38] sm:$0xff]
    %v1883 = vld [vmem:[#allocation10 + $0x40] sm:$0xff]
    %v1884 = vld [vmem:[#allocation10 + $0x48] sm:$0xff]
    %v1885 = vld [vmem:[#allocation10 + $0x50] sm:$0xff]
    %v1886 = vld [vmem:[#allocation10 + $0x58] sm:$0xff]
    %v1887 = vld [vmem:[#allocation10 + $0x60] sm:$0xff]
    %v1888 = vld [vmem:[#allocation10 + $0x68] sm:$0xff]
    %v1889 = vld [vmem:[#allocation10 + $0x70] sm:$0xff]
    %v1890 = vld [vmem:[#allocation10 + $0x78] sm:$0xff]
    %1892 = vrot.lane.b32.xlu0 %v1310, 64
    %v1893 = vpop.permute.xlu0 %1892
    %v1894 = vsel %vm172, %v1893, 0
    %1896 = vmatprep.subr.mxu0 %v1876
    %1897 = vmatpush1.msra.mxu0 %v1875
    %1898 = vmatprep.subr.mxu0 %v1878
    %1899 = vmatpush1.msra.mxu0 %v1877
    %1900 = vmatprep.subr.mxu0 %v1880
    %1901 = vmatpush1.msra.mxu0 %v1879
    %1902 = vmatprep.subr.mxu0 %v1882
    %1903 = vmatpush1.msra.mxu0 %v1881
    %1904 = vmatprep.subr.mxu0 %v1884
    %1905 = vmatpush1.msra.mxu0 %v1883
    %1906 = vmatprep.subr.mxu0 %v1886
    %1907 = vmatpush1.msra.mxu0 %v1885
    %1908 = vmatprep.subr.mxu0 %v1888
    %1909 = vmatpush1.msra.mxu0 %v1887
    %1910 = vmatprep.subr.mxu0 %v1890
    %1911 = vmatpush1.msra.mxu0 %v1889
    %1912 = vmatprep.subr.mxu0 0.0
    %1913 = vmatpush1.msra.mxu0 0.0
    %1914 = vmatprep.subr.mxu0 0.0
    %1915 = vmatpush1.msra.mxu0 0.0
    %1916 = vmatprep.subr.mxu0 0.0
    %1917 = vmatpush1.msra.mxu0 0.0
    %1918 = vmatprep.subr.mxu0 0.0
    %1919 = vmatpush1.msra.mxu0 0.0
    %1920 = vmatprep.subr.mxu0 0.0
    %1921 = vmatpush1.msra.mxu0 0.0
    %1922 = vmatprep.subr.mxu0 0.0
    %1923 = vmatpush1.msra.mxu0 0.0
    %1924 = vmatprep.subr.mxu0 0.0
    %1925 = vmatpush1.msra.mxu0 0.0
    %1926 = vmatprep.subr.mxu0 0.0
    %1927 = vmatpush1.msra.mxu0 0.0
    %1928 = vmatprep.subr.mxu0 0.0
    %1929 = vmatpush1.msra.mxu0 0.0
    %1930 = vmatprep.subr.mxu0 0.0
    %1931 = vmatpush1.msra.mxu0 0.0
    %1932 = vmatprep.subr.mxu0 0.0
    %1933 = vmatpush1.msra.mxu0 0.0
    %1934 = vmatprep.subr.mxu0 0.0
    %1935 = vmatpush1.msra.mxu0 0.0
    %1936 = vmatprep.subr.mxu0 0.0
    %1937 = vmatpush1.msra.mxu0 0.0
    %1938 = vmatprep.subr.mxu0 0.0
    %1939 = vmatpush1.msra.mxu0 0.0
    %1940 = vmatprep.subr.mxu0 0.0
    %1941 = vmatpush1.msra.mxu0 0.0
    %1942 = vmatprep.subr.mxu0 0.0
    %1943 = vmatpush1.msra.mxu0 0.0
    %1944 = vmatprep.subr.mxu0 0.0
    %1945 = vmatpush1.msra.mxu0 0.0
    %1946 = vmatprep.subr.mxu0 0.0
    %1947 = vmatpush1.msra.mxu0 0.0
    %1948 = vmatprep.subr.mxu0 0.0
    %1949 = vmatpush1.msra.mxu0 0.0
    %1950 = vmatprep.subr.mxu0 0.0
    %1951 = vmatpush1.msra.mxu0 0.0
    %1952 = vmatprep.subr.mxu0 0.0
    %1953 = vmatpush1.msra.mxu0 0.0
    %1954 = vmatprep.subr.mxu0 0.0
    %1955 = vmatpush1.msra.mxu0 0.0
    %1956 = vmatprep.subr.mxu0 0.0
    %1957 = vmatpush1.msra.mxu0 0.0
    %1958 = vmatprep.subr.mxu0 0.0
    %1959 = vmatpush1.msra.mxu0 0.0
    %1960 = vmatprep.mubr.f32.mxu0 0.0
    %1961 = vmatmul.mubr.f32.gmra.mrb[0].mxu0 %v1894
    %v1962 = vpop.f32.mrb[0].mxu0
    %v1963 = vadd.f32 0.0, %v1962
    %v1964 = vpop.f32.mrb[0].mxu0
    %v1965 = vadd.f32 0.0, %v1964
    %1966 = vdwg.mxu0
    %v1968 = vrot.slane %v1858, 2
    %1969 = vrot.lane.b32.xlu0 %v1968, 64
    %v1970 = vpop.permute.xlu0 %1969
    %v1971 = vsel %vm172, %v1970, 0
    %1973 = vmatprep.subr.mxu0 %v1860
    %1974 = vmatpush1.msra.mxu0 %v1859
    %1975 = vmatprep.subr.mxu0 %v1862
    %1976 = vmatpush1.msra.mxu0 %v1861
    %1977 = vmatprep.subr.mxu0 %v1864
    %1978 = vmatpush1.msra.mxu0 %v1863
    %1979 = vmatprep.subr.mxu0 %v1866
    %1980 = vmatpush1.msra.mxu0 %v1865
    %1981 = vmatprep.subr.mxu0 %v1868
    %1982 = vmatpush1.msra.mxu0 %v1867
    %1983 = vmatprep.subr.mxu0 %v1870
    %1984 = vmatpush1.msra.mxu0 %v1869
    %1985 = vmatprep.subr.mxu0 %v1872
    %1986 = vmatpush1.msra.mxu0 %v1871
    %1987 = vmatprep.subr.mxu0 %v1874
    %1988 = vmatpush1.msra.mxu0 %v1873
    %1989 = vmatprep.subr.mxu0 0.0
    %1990 = vmatpush1.msra.mxu0 0.0
    %1991 = vmatprep.subr.mxu0 0.0
    %1992 = vmatpush1.msra.mxu0 0.0
    %1993 = vmatprep.subr.mxu0 0.0
    %1994 = vmatpush1.msra.mxu0 0.0
    %1995 = vmatprep.subr.mxu0 0.0
    %1996 = vmatpush1.msra.mxu0 0.0
    %1997 = vmatprep.subr.mxu0 0.0
    %1998 = vmatpush1.msra.mxu0 0.0
    %1999 = vmatprep.subr.mxu0 0.0
    %2000 = vmatpush1.msra.mxu0 0.0
    %2001 = vmatprep.subr.mxu0 0.0
    %2002 = vmatpush1.msra.mxu0 0.0
    %2003 = vmatprep.subr.mxu0 0.0
    %2004 = vmatpush1.msra.mxu0 0.0
    %2005 = vmatprep.subr.mxu0 0.0
    %2006 = vmatpush1.msra.mxu0 0.0
    %2007 = vmatprep.subr.mxu0 0.0
    %2008 = vmatpush1.msra.mxu0 0.0
    %2009 = vmatprep.subr.mxu0 0.0
    %2010 = vmatpush1.msra.mxu0 0.0
    %2011 = vmatprep.subr.mxu0 0.0
    %2012 = vmatpush1.msra.mxu0 0.0
    %2013 = vmatprep.subr.mxu0 0.0
    %2014 = vmatpush1.msra.mxu0 0.0
    %2015 = vmatprep.subr.mxu0 0.0
    %2016 = vmatpush1.msra.mxu0 0.0
    %2017 = vmatprep.subr.mxu0 0.0
    %2018 = vmatpush1.msra.mxu0 0.0
    %2019 = vmatprep.subr.mxu0 0.0
    %2020 = vmatpush1.msra.mxu0 0.0
    %2021 = vmatprep.subr.mxu0 0.0
    %2022 = vmatpush1.msra.mxu0 0.0
    %2023 = vmatprep.subr.mxu0 0.0
    %2024 = vmatpush1.msra.mxu0 0.0
    %2025 = vmatprep.subr.mxu0 0.0
    %2026 = vmatpush1.msra.mxu0 0.0
    %2027 = vmatprep.subr.mxu0 0.0
    %2028 = vmatpush1.msra.mxu0 0.0
    %2029 = vmatprep.subr.mxu0 0.0
    %2030 = vmatpush1.msra.mxu0 0.0
    %2031 = vmatprep.subr.mxu0 0.0
    %2032 = vmatpush1.msra.mxu0 0.0
    %2033 = vmatprep.subr.mxu0 0.0
    %2034 = vmatpush1.msra.mxu0 0.0
    %2035 = vmatprep.subr.mxu0 0.0
    %2036 = vmatpush1.msra.mxu0 0.0
    %2037 = vmatprep.mubr.f32.mxu0 0.0
    %2038 = vmatmul.mubr.f32.gmra.mrb[0].mxu0 %v1971
    %v2039 = vpop.f32.mrb[0].mxu0
    %v2040 = vadd.f32 %v1963, %v2039
    %v2041 = vpop.f32.mrb[0].mxu0
    %v2042 = vadd.f32 %v1965, %v2041
    %2043 = vdwg.mxu0
    %v2044 = vxor.u32 %v2040, 2147483648
    %v2045 = vxor.u32 %v2042, 2147483648
    %v2046 = vmul.f32 %v2044, 1.442695
    %v2047 = vpow.pop %v2046
    %v2048 = vmul.f32 %v2045, 1.442695
    %v2049 = vpow.pop %v2048
    %v2050 = vadd.f32 %v2047, 1.0
    %v2051 = vadd.f32 %v2049, 1.0
    %v2052 = vrcp.pop %v2050
    %v2053 = vmul.f32 1.0, %v2052
    %v2054 = vrcp.pop %v2051
    %v2055 = vmul.f32 1.0, %v2054
    %v2056 = vtanh.pop %v2042
    %v2057 = vmul.f32 %v2053, %v1308
    %v2058 = vmul.f32 %v2053, %v2056
    %2060 = vrot.lane.b32.xlu0 %v2058, 64
    %v2061 = vpop.permute.xlu0 %2060
    %v2063 = vadd.f32 %v2057, %v2061
    %v2064 = vtanh.pop %v2063
    %v2065 = vmul.f32 %v2055, %v2064
    %v2066 = vxor.u32 %v2065, 2147483648
    %v2067 = vmul.f32 %v2066, 1.442695
    %v2068 = vpow.pop %v2067
    %v2069 = vadd.f32 %v2068, 1.0
    %v2070 = vrcp.pop %v2069
    %v2071 = vmul.f32 1.0, %v2070
    %2073 = vrot.lane.b32.xlu0 %v2071, 64
    %v2074 = vpop.permute.xlu0 %2073
    %s2076 = scalar_lea.vmem [#allocation17], 2
    %2077 = vst.msk [vmem:[%s2076] sm:$0x1] %vm572, %v2074
    %v2078 = vld [vmem:[#allocation11] sm:$0xff]
    %v2079 = vld [vmem:[#allocation11 + $0x8] sm:$0xff]
    %v2080 = vld [vmem:[#allocation11 + $0x10] sm:$0xff]
    %v2081 = vld [vmem:[#allocation11 + $0x18] sm:$0xff]
    %v2082 = vld [vmem:[#allocation11 + $0x20] sm:$0xff]
    %v2083 = vld [vmem:[#allocation11 + $0x28] sm:$0xff]
    %v2084 = vld [vmem:[#allocation11 + $0x30] sm:$0xff]
    %v2085 = vld [vmem:[#allocation11 + $0x38] sm:$0xff]
    %v2086 = vld [vmem:[#allocation11 + $0x40] sm:$0xff]
    %v2087 = vld [vmem:[#allocation11 + $0x48] sm:$0xff]
    %v2088 = vld [vmem:[#allocation11 + $0x50] sm:$0xff]
    %v2089 = vld [vmem:[#allocation11 + $0x58] sm:$0xff]
    %v2090 = vld [vmem:[#allocation11 + $0x60] sm:$0xff]
    %v2091 = vld [vmem:[#allocation11 + $0x68] sm:$0xff]
    %v2092 = vld [vmem:[#allocation11 + $0x70] sm:$0xff]
    %v2093 = vld [vmem:[#allocation11 + $0x78] sm:$0xff]
    %v2094 = vld [vmem:[#allocation13] sm:$0xff]
    %v2095 = vld [vmem:[#allocation13 + $0x8] sm:$0xff]
    %v2096 = vld [vmem:[#allocation13 + $0x10] sm:$0xff]
    %v2097 = vld [vmem:[#allocation13 + $0x18] sm:$0xff]
    %v2098 = vld [vmem:[#allocation13 + $0x20] sm:$0xff]
    %v2099 = vld [vmem:[#allocation13 + $0x28] sm:$0xff]
    %v2100 = vld [vmem:[#allocation13 + $0x30] sm:$0xff]
    %v2101 = vld [vmem:[#allocation13 + $0x38] sm:$0xff]
    %v2102 = vld [vmem:[#allocation13 + $0x40] sm:$0xff]
    %v2103 = vld [vmem:[#allocation13 + $0x48] sm:$0xff]
    %v2104 = vld [vmem:[#allocation13 + $0x50] sm:$0xff]
    %v2105 = vld [vmem:[#allocation13 + $0x58] sm:$0xff]
    %v2106 = vld [vmem:[#allocation13 + $0x60] sm:$0xff]
    %v2107 = vld [vmem:[#allocation13 + $0x68] sm:$0xff]
    %v2108 = vld [vmem:[#allocation13 + $0x70] sm:$0xff]
    %v2109 = vld [vmem:[#allocation13 + $0x78] sm:$0xff]
    %2110 = vmatprep.subr.mxu0 %v2095
    %2111 = vmatpush1.msra.mxu0 %v2094
    %2112 = vmatprep.subr.mxu0 %v2097
    %2113 = vmatpush1.msra.mxu0 %v2096
    %2114 = vmatprep.subr.mxu0 %v2099
    %2115 = vmatpush1.msra.mxu0 %v2098
    %2116 = vmatprep.subr.mxu0 %v2101
    %2117 = vmatpush1.msra.mxu0 %v2100
    %2118 = vmatprep.subr.mxu0 %v2103
    %2119 = vmatpush1.msra.mxu0 %v2102
    %2120 = vmatprep.subr.mxu0 %v2105
    %2121 = vmatpush1.msra.mxu0 %v2104
    %2122 = vmatprep.subr.mxu0 %v2107
    %2123 = vmatpush1.msra.mxu0 %v2106
    %2124 = vmatprep.subr.mxu0 %v2109
    %2125 = vmatpush1.msra.mxu0 %v2108
    %2126 = vmatprep.subr.mxu0 0.0
    %2127 = vmatpush1.msra.mxu0 0.0
    %2128 = vmatprep.subr.mxu0 0.0
    %2129 = vmatpush1.msra.mxu0 0.0
    %2130 = vmatprep.subr.mxu0 0.0
    %2131 = vmatpush1.msra.mxu0 0.0
    %2132 = vmatprep.subr.mxu0 0.0
    %2133 = vmatpush1.msra.mxu0 0.0
    %2134 = vmatprep.subr.mxu0 0.0
    %2135 = vmatpush1.msra.mxu0 0.0
    %2136 = vmatprep.subr.mxu0 0.0
    %2137 = vmatpush1.msra.mxu0 0.0
    %2138 = vmatprep.subr.mxu0 0.0
    %2139 = vmatpush1.msra.mxu0 0.0
    %2140 = vmatprep.subr.mxu0 0.0
    %2141 = vmatpush1.msra.mxu0 0.0
    %2142 = vmatprep.subr.mxu0 0.0
    %2143 = vmatpush1.msra.mxu0 0.0
    %2144 = vmatprep.subr.mxu0 0.0
    %2145 = vmatpush1.msra.mxu0 0.0
    %2146 = vmatprep.subr.mxu0 0.0
    %2147 = vmatpush1.msra.mxu0 0.0
    %2148 = vmatprep.subr.mxu0 0.0
    %2149 = vmatpush1.msra.mxu0 0.0
    %2150 = vmatprep.subr.mxu0 0.0
    %2151 = vmatpush1.msra.mxu0 0.0
    %2152 = vmatprep.subr.mxu0 0.0
    %2153 = vmatpush1.msra.mxu0 0.0
    %2154 = vmatprep.subr.mxu0 0.0
    %2155 = vmatpush1.msra.mxu0 0.0
    %2156 = vmatprep.subr.mxu0 0.0
    %2157 = vmatpush1.msra.mxu0 0.0
    %2158 = vmatprep.subr.mxu0 0.0
    %2159 = vmatpush1.msra.mxu0 0.0
    %2160 = vmatprep.subr.mxu0 0.0
    %2161 = vmatpush1.msra.mxu0 0.0
    %2162 = vmatprep.subr.mxu0 0.0
    %2163 = vmatpush1.msra.mxu0 0.0
    %2164 = vmatprep.subr.mxu0 0.0
    %2165 = vmatpush1.msra.mxu0 0.0
    %2166 = vmatprep.subr.mxu0 0.0
    %2167 = vmatpush1.msra.mxu0 0.0
    %2168 = vmatprep.subr.mxu0 0.0
    %2169 = vmatpush1.msra.mxu0 0.0
    %2170 = vmatprep.subr.mxu0 0.0
    %2171 = vmatpush1.msra.mxu0 0.0
    %2172 = vmatprep.subr.mxu0 0.0
    %2173 = vmatpush1.msra.mxu0 0.0
    %2174 = vmatprep.mubr.f32.mxu0 0.0
    %2175 = vmatmul.mubr.f32.gmra.mrb[0].mxu0 %v1632
    %v2176 = vpop.f32.mrb[0].mxu0
    %v2177 = vadd.f32 0.0, %v2176
    %v2178 = vpop.f32.mrb[0].mxu0
    %v2179 = vadd.f32 0.0, %v2178
    %2180 = vdwg.mxu0
    %v2181 = vsel %vm172, %v2074, 0
    %2183 = vmatprep.subr.mxu0 %v2079
    %2184 = vmatpush1.msra.mxu0 %v2078
    %2185 = vmatprep.subr.mxu0 %v2081
    %2186 = vmatpush1.msra.mxu0 %v2080
    %2187 = vmatprep.subr.mxu0 %v2083
    %2188 = vmatpush1.msra.mxu0 %v2082
    %2189 = vmatprep.subr.mxu0 %v2085
    %2190 = vmatpush1.msra.mxu0 %v2084
    %2191 = vmatprep.subr.mxu0 %v2087
    %2192 = vmatpush1.msra.mxu0 %v2086
    %2193 = vmatprep.subr.mxu0 %v2089
    %2194 = vmatpush1.msra.mxu0 %v2088
    %2195 = vmatprep.subr.mxu0 %v2091
    %2196 = vmatpush1.msra.mxu0 %v2090
    %2197 = vmatprep.subr.mxu0 %v2093
    %2198 = vmatpush1.msra.mxu0 %v2092
    %2199 = vmatprep.subr.mxu0 0.0
    %2200 = vmatpush1.msra.mxu0 0.0
    %2201 = vmatprep.subr.mxu0 0.0
    %2202 = vmatpush1.msra.mxu0 0.0
    %2203 = vmatprep.subr.mxu0 0.0
    %2204 = vmatpush1.msra.mxu0 0.0
    %2205 = vmatprep.subr.mxu0 0.0
    %2206 = vmatpush1.msra.mxu0 0.0
    %2207 = vmatprep.subr.mxu0 0.0
    %2208 = vmatpush1.msra.mxu0 0.0
    %2209 = vmatprep.subr.mxu0 0.0
    %2210 = vmatpush1.msra.mxu0 0.0
    %2211 = vmatprep.subr.mxu0 0.0
    %2212 = vmatpush1.msra.mxu0 0.0
    %2213 = vmatprep.subr.mxu0 0.0
    %2214 = vmatpush1.msra.mxu0 0.0
    %2215 = vmatprep.subr.mxu0 0.0
    %2216 = vmatpush1.msra.mxu0 0.0
    %2217 = vmatprep.subr.mxu0 0.0
    %2218 = vmatpush1.msra.mxu0 0.0
    %2219 = vmatprep.subr.mxu0 0.0
    %2220 = vmatpush1.msra.mxu0 0.0
    %2221 = vmatprep.subr.mxu0 0.0
    %2222 = vmatpush1.msra.mxu0 0.0
    %2223 = vmatprep.subr.mxu0 0.0
    %2224 = vmatpush1.msra.mxu0 0.0
    %2225 = vmatprep.subr.mxu0 0.0
    %2226 = vmatpush1.msra.mxu0 0.0
    %2227 = vmatprep.subr.mxu0 0.0
    %2228 = vmatpush1.msra.mxu0 0.0
    %2229 = vmatprep.subr.mxu0 0.0
    %2230 = vmatpush1.msra.mxu0 0.0
    %2231 = vmatprep.subr.mxu0 0.0
    %2232 = vmatpush1.msra.mxu0 0.0
    %2233 = vmatprep.subr.mxu0 0.0
    %2234 = vmatpush1.msra.mxu0 0.0
    %2235 = vmatprep.subr.mxu0 0.0
    %2236 = vmatpush1.msra.mxu0 0.0
    %2237 = vmatprep.subr.mxu0 0.0
    %2238 = vmatpush1.msra.mxu0 0.0
    %2239 = vmatprep.subr.mxu0 0.0
    %2240 = vmatpush1.msra.mxu0 0.0
    %2241 = vmatprep.subr.mxu0 0.0
    %2242 = vmatpush1.msra.mxu0 0.0
    %2243 = vmatprep.subr.mxu0 0.0
    %2244 = vmatpush1.msra.mxu0 0.0
    %2245 = vmatprep.subr.mxu0 0.0
    %2246 = vmatpush1.msra.mxu0 0.0
    %2247 = vmatprep.mubr.f32.mxu0 0.0
    %2248 = vmatmul.mubr.f32.gmra.mrb[0].mxu0 %v2181
    %v2249 = vpop.f32.mrb[0].mxu0
    %v2250 = vadd.f32 %v2177, %v2249
    %v2251 = vpop.f32.mrb[0].mxu0
    %v2252 = vadd.f32 %v2179, %v2251
    %2253 = vdwg.mxu0
    %v2254 = vxor.u32 %v2250, 2147483648
    %v2255 = vxor.u32 %v2252, 2147483648
    %v2256 = vmul.f32 %v2254, 1.442695
    %v2257 = vpow.pop %v2256
    %v2258 = vmul.f32 %v2255, 1.442695
    %v2259 = vpow.pop %v2258
    %v2260 = vadd.f32 %v2257, 1.0
    %v2261 = vadd.f32 %v2259, 1.0
    %v2262 = vrcp.pop %v2260
    %v2263 = vmul.f32 1.0, %v2262
    %v2264 = vrcp.pop %v2261
    %v2265 = vmul.f32 1.0, %v2264
    %v2266 = vtanh.pop %v2252
    %v2267 = vmul.f32 %v2263, %v1518
    %v2268 = vmul.f32 %v2263, %v2266
    %2270 = vrot.lane.b32.xlu0 %v2268, 64
    %v2271 = vpop.permute.xlu0 %2270
    %v2273 = vadd.f32 %v2267, %v2271
    %v2274 = vtanh.pop %v2273
    %v2275 = vmul.f32 %v2265, %v2274
    %v2276 = vld [vmem:[#allocation14] sm:$0xff]
    %v2277 = vld [vmem:[#allocation14 + $0x8] sm:$0xff]
    %v2278 = vld [vmem:[#allocation14 + $0x10] sm:$0xff]
    %v2279 = vld [vmem:[#allocation14 + $0x18] sm:$0xff]
    %v2280 = vld [vmem:[#allocation14 + $0x20] sm:$0xff]
    %v2281 = vld [vmem:[#allocation14 + $0x28] sm:$0xff]
    %v2282 = vld [vmem:[#allocation14 + $0x30] sm:$0xff]
    %v2283 = vld [vmem:[#allocation14 + $0x38] sm:$0xff]
    %v2284 = vld [vmem:[#allocation14 + $0x40] sm:$0xff]
    %v2285 = vld [vmem:[#allocation14 + $0x48] sm:$0xff]
    %v2286 = vld [vmem:[#allocation14 + $0x50] sm:$0xff]
    %v2287 = vld [vmem:[#allocation14 + $0x58] sm:$0xff]
    %v2288 = vld [vmem:[#allocation14 + $0x60] sm:$0xff]
    %v2289 = vld [vmem:[#allocation14 + $0x68] sm:$0xff]
    %v2290 = vld [vmem:[#allocation14 + $0x70] sm:$0xff]
    %v2291 = vld [vmem:[#allocation14 + $0x78] sm:$0xff]
    %v2292 = vld [vmem:[#allocation16] sm:$0xff]
    %v2293 = vld [vmem:[#allocation16 + $0x8] sm:$0xff]
    %v2294 = vld [vmem:[#allocation16 + $0x10] sm:$0xff]
    %v2295 = vld [vmem:[#allocation16 + $0x18] sm:$0xff]
    %v2296 = vld [vmem:[#allocation16 + $0x20] sm:$0xff]
    %v2297 = vld [vmem:[#allocation16 + $0x28] sm:$0xff]
    %v2298 = vld [vmem:[#allocation16 + $0x30] sm:$0xff]
    %v2299 = vld [vmem:[#allocation16 + $0x38] sm:$0xff]
    %v2300 = vld [vmem:[#allocation16 + $0x40] sm:$0xff]
    %v2301 = vld [vmem:[#allocation16 + $0x48] sm:$0xff]
    %v2302 = vld [vmem:[#allocation16 + $0x50] sm:$0xff]
    %v2303 = vld [vmem:[#allocation16 + $0x58] sm:$0xff]
    %v2304 = vld [vmem:[#allocation16 + $0x60] sm:$0xff]
    %v2305 = vld [vmem:[#allocation16 + $0x68] sm:$0xff]
    %v2306 = vld [vmem:[#allocation16 + $0x70] sm:$0xff]
    %v2307 = vld [vmem:[#allocation16 + $0x78] sm:$0xff]
    %2309 = vrot.lane.b32.xlu0 %v1726, 64
    %v2310 = vpop.permute.xlu0 %2309
    %v2311 = vsel %vm172, %v2310, 0
    %2313 = vmatprep.subr.mxu0 %v2293
    %2314 = vmatpush1.msra.mxu0 %v2292
    %2315 = vmatprep.subr.mxu0 %v2295
    %2316 = vmatpush1.msra.mxu0 %v2294
    %2317 = vmatprep.subr.mxu0 %v2297
    %2318 = vmatpush1.msra.mxu0 %v2296
    %2319 = vmatprep.subr.mxu0 %v2299
    %2320 = vmatpush1.msra.mxu0 %v2298
    %2321 = vmatprep.subr.mxu0 %v2301
    %2322 = vmatpush1.msra.mxu0 %v2300
    %2323 = vmatprep.subr.mxu0 %v2303
    %2324 = vmatpush1.msra.mxu0 %v2302
    %2325 = vmatprep.subr.mxu0 %v2305
    %2326 = vmatpush1.msra.mxu0 %v2304
    %2327 = vmatprep.subr.mxu0 %v2307
    %2328 = vmatpush1.msra.mxu0 %v2306
    %2329 = vmatprep.subr.mxu0 0.0
    %2330 = vmatpush1.msra.mxu0 0.0
    %2331 = vmatprep.subr.mxu0 0.0
    %2332 = vmatpush1.msra.mxu0 0.0
    %2333 = vmatprep.subr.mxu0 0.0
    %2334 = vmatpush1.msra.mxu0 0.0
    %2335 = vmatprep.subr.mxu0 0.0
    %2336 = vmatpush1.msra.mxu0 0.0
    %2337 = vmatprep.subr.mxu0 0.0
    %2338 = vmatpush1.msra.mxu0 0.0
    %2339 = vmatprep.subr.mxu0 0.0
    %2340 = vmatpush1.msra.mxu0 0.0
    %2341 = vmatprep.subr.mxu0 0.0
    %2342 = vmatpush1.msra.mxu0 0.0
    %2343 = vmatprep.subr.mxu0 0.0
    %2344 = vmatpush1.msra.mxu0 0.0
    %2345 = vmatprep.subr.mxu0 0.0
    %2346 = vmatpush1.msra.mxu0 0.0
    %2347 = vmatprep.subr.mxu0 0.0
    %2348 = vmatpush1.msra.mxu0 0.0
    %2349 = vmatprep.subr.mxu0 0.0
    %2350 = vmatpush1.msra.mxu0 0.0
    %2351 = vmatprep.subr.mxu0 0.0
    %2352 = vmatpush1.msra.mxu0 0.0
    %2353 = vmatprep.subr.mxu0 0.0
    %2354 = vmatpush1.msra.mxu0 0.0
    %2355 = vmatprep.subr.mxu0 0.0
    %2356 = vmatpush1.msra.mxu0 0.0
    %2357 = vmatprep.subr.mxu0 0.0
    %2358 = vmatpush1.msra.mxu0 0.0
    %2359 = vmatprep.subr.mxu0 0.0
    %2360 = vmatpush1.msra.mxu0 0.0
    %2361 = vmatprep.subr.mxu0 0.0
    %2362 = vmatpush1.msra.mxu0 0.0
    %2363 = vmatprep.subr.mxu0 0.0
    %2364 = vmatpush1.msra.mxu0 0.0
    %2365 = vmatprep.subr.mxu0 0.0
    %2366 = vmatpush1.msra.mxu0 0.0
    %2367 = vmatprep.subr.mxu0 0.0
    %2368 = vmatpush1.msra.mxu0 0.0
    %2369 = vmatprep.subr.mxu0 0.0
    %2370 = vmatpush1.msra.mxu0 0.0
    %2371 = vmatprep.subr.mxu0 0.0
    %2372 = vmatpush1.msra.mxu0 0.0
    %2373 = vmatprep.subr.mxu0 0.0
    %2374 = vmatpush1.msra.mxu0 0.0
    %2375 = vmatprep.subr.mxu0 0.0
    %2376 = vmatpush1.msra.mxu0 0.0
    %2377 = vmatprep.mubr.f32.mxu0 0.0
    %2378 = vmatmul.mubr.f32.gmra.mrb[0].mxu0 %v2311
    %v2379 = vpop.f32.mrb[0].mxu0
    %v2380 = vadd.f32 0.0, %v2379
    %v2381 = vpop.f32.mrb[0].mxu0
    %v2382 = vadd.f32 0.0, %v2381
    %2383 = vdwg.mxu0
    %2385 = vrot.lane.b32.xlu0 %v2275, 64
    %v2386 = vpop.permute.xlu0 %2385
    %v2387 = vsel %vm172, %v2386, 0
    %2389 = vmatprep.subr.mxu0 %v2277
    %2390 = vmatpush1.msra.mxu0 %v2276
    %2391 = vmatprep.subr.mxu0 %v2279
    %2392 = vmatpush1.msra.mxu0 %v2278
    %2393 = vmatprep.subr.mxu0 %v2281
    %2394 = vmatpush1.msra.mxu0 %v2280
    %2395 = vmatprep.subr.mxu0 %v2283
    %2396 = vmatpush1.msra.mxu0 %v2282
    %2397 = vmatprep.subr.mxu0 %v2285
    %2398 = vmatpush1.msra.mxu0 %v2284
    %2399 = vmatprep.subr.mxu0 %v2287
    %2400 = vmatpush1.msra.mxu0 %v2286
    %2401 = vmatprep.subr.mxu0 %v2289
    %2402 = vmatpush1.msra.mxu0 %v2288
    %2403 = vmatprep.subr.mxu0 %v2291
    %2404 = vmatpush1.msra.mxu0 %v2290
    %2405 = vmatprep.subr.mxu0 0.0
    %2406 = vmatpush1.msra.mxu0 0.0
    %2407 = vmatprep.subr.mxu0 0.0
    %2408 = vmatpush1.msra.mxu0 0.0
    %2409 = vmatprep.subr.mxu0 0.0
    %2410 = vmatpush1.msra.mxu0 0.0
    %2411 = vmatprep.subr.mxu0 0.0
    %2412 = vmatpush1.msra.mxu0 0.0
    %2413 = vmatprep.subr.mxu0 0.0
    %2414 = vmatpush1.msra.mxu0 0.0
    %2415 = vmatprep.subr.mxu0 0.0
    %2416 = vmatpush1.msra.mxu0 0.0
    %2417 = vmatprep.subr.mxu0 0.0
    %2418 = vmatpush1.msra.mxu0 0.0
    %2419 = vmatprep.subr.mxu0 0.0
    %2420 = vmatpush1.msra.mxu0 0.0
    %2421 = vmatprep.subr.mxu0 0.0
    %2422 = vmatpush1.msra.mxu0 0.0
    %2423 = vmatprep.subr.mxu0 0.0
    %2424 = vmatpush1.msra.mxu0 0.0
    %2425 = vmatprep.subr.mxu0 0.0
    %2426 = vmatpush1.msra.mxu0 0.0
    %2427 = vmatprep.subr.mxu0 0.0
    %2428 = vmatpush1.msra.mxu0 0.0
    %2429 = vmatprep.subr.mxu0 0.0
    %2430 = vmatpush1.msra.mxu0 0.0
    %2431 = vmatprep.subr.mxu0 0.0
    %2432 = vmatpush1.msra.mxu0 0.0
    %2433 = vmatprep.subr.mxu0 0.0
    %2434 = vmatpush1.msra.mxu0 0.0
    %2435 = vmatprep.subr.mxu0 0.0
    %2436 = vmatpush1.msra.mxu0 0.0
    %2437 = vmatprep.subr.mxu0 0.0
    %2438 = vmatpush1.msra.mxu0 0.0
    %2439 = vmatprep.subr.mxu0 0.0
    %2440 = vmatpush1.msra.mxu0 0.0
    %2441 = vmatprep.subr.mxu0 0.0
    %2442 = vmatpush1.msra.mxu0 0.0
    %2443 = vmatprep.subr.mxu0 0.0
    %2444 = vmatpush1.msra.mxu0 0.0
    %2445 = vmatprep.subr.mxu0 0.0
    %2446 = vmatpush1.msra.mxu0 0.0
    %2447 = vmatprep.subr.mxu0 0.0
    %2448 = vmatpush1.msra.mxu0 0.0
    %2449 = vmatprep.subr.mxu0 0.0
    %2450 = vmatpush1.msra.mxu0 0.0
    %2451 = vmatprep.subr.mxu0 0.0
    %2452 = vmatpush1.msra.mxu0 0.0
    %2453 = vmatprep.mubr.f32.mxu0 0.0
    %2454 = vmatmul.mubr.f32.gmra.mrb[0].mxu0 %v2387
    %v2455 = vpop.f32.mrb[0].mxu0
    %v2456 = vadd.f32 %v2380, %v2455
    %v2457 = vpop.f32.mrb[0].mxu0
    %v2458 = vadd.f32 %v2382, %v2457
    %2459 = vdwg.mxu0
    %v2460 = vxor.u32 %v2456, 2147483648
    %v2461 = vxor.u32 %v2458, 2147483648
    %v2462 = vmul.f32 %v2460, 1.442695
    %v2463 = vpow.pop %v2462
    %v2464 = vmul.f32 %v2461, 1.442695
    %v2465 = vpow.pop %v2464
    %v2466 = vadd.f32 %v2463, 1.0
    %v2467 = vadd.f32 %v2465, 1.0
    %v2468 = vrcp.pop %v2466
    %v2469 = vmul.f32 1.0, %v2468
    %v2470 = vrcp.pop %v2467
    %v2471 = vmul.f32 1.0, %v2470
    %v2472 = vtanh.pop %v2458
    %v2473 = vmul.f32 %v2469, %v1724
    %v2474 = vmul.f32 %v2469, %v2472
    %2476 = vrot.lane.b32.xlu0 %v2474, 64
    %v2477 = vpop.permute.xlu0 %2476
    %v2479 = vadd.f32 %v2473, %v2477
    %v2480 = vtanh.pop %v2479
    %v2481 = vmul.f32 %v2471, %v2480
    %v2482 = vxor.u32 %v2481, 2147483648
    %v2483 = vmul.f32 %v2482, 1.442695
    %v2484 = vpow.pop %v2483
    %v2485 = vadd.f32 %v2484, 1.0
    %v2486 = vrcp.pop %v2485
    %v2487 = vmul.f32 1.0, %v2486
    %2489 = vrot.lane.b32.xlu0 %v2487, 64
    %v2490 = vpop.permute.xlu0 %2489
    %s2492 = scalar_lea.vmem %s9, 2
    %2493 = vst.msk [vmem:[%s2492] sm:$0x1] %vm572, %v2490
    %v2494 = vld [vmem:[#allocation7] sm:$0xff]
    %v2495 = vld [vmem:[#allocation7 + $0x8] sm:$0xff]
    %v2496 = vld [vmem:[#allocation7 + $0x10] sm:$0xff]
    %v2497 = vld [vmem:[#allocation7 + $0x18] sm:$0xff]
    %v2498 = vld [vmem:[#allocation7 + $0x20] sm:$0xff]
    %v2499 = vld [vmem:[#allocation7 + $0x28] sm:$0xff]
    %v2500 = vld [vmem:[#allocation7 + $0x30] sm:$0xff]
    %v2501 = vld [vmem:[#allocation7 + $0x38] sm:$0xff]
    %v2502 = vld [vmem:[#allocation7 + $0x40] sm:$0xff]
    %v2503 = vld [vmem:[#allocation7 + $0x48] sm:$0xff]
    %v2504 = vld [vmem:[#allocation7 + $0x50] sm:$0xff]
    %v2505 = vld [vmem:[#allocation7 + $0x58] sm:$0xff]
    %v2506 = vld [vmem:[#allocation7 + $0x60] sm:$0xff]
    %v2507 = vld [vmem:[#allocation7 + $0x68] sm:$0xff]
    %v2508 = vld [vmem:[#allocation7 + $0x70] sm:$0xff]
    %v2509 = vld [vmem:[#allocation7 + $0x78] sm:$0xff]
    %2510 = vmatprep.subr.mxu0 %v2495
    %2511 = vmatpush1.msra.mxu0 %v2494
    %2512 = vmatprep.subr.mxu0 %v2497
    %2513 = vmatpush1.msra.mxu0 %v2496
    %2514 = vmatprep.subr.mxu0 %v2499
    %2515 = vmatpush1.msra.mxu0 %v2498
    %2516 = vmatprep.subr.mxu0 %v2501
    %2517 = vmatpush1.msra.mxu0 %v2500
    %2518 = vmatprep.subr.mxu0 %v2503
    %2519 = vmatpush1.msra.mxu0 %v2502
    %2520 = vmatprep.subr.mxu0 %v2505
    %2521 = vmatpush1.msra.mxu0 %v2504
    %2522 = vmatprep.subr.mxu0 %v2507
    %2523 = vmatpush1.msra.mxu0 %v2506
    %2524 = vmatprep.subr.mxu0 %v2509
    %2525 = vmatpush1.msra.mxu0 %v2508
    %2526 = vmatprep.subr.mxu0 0.0
    %2527 = vmatpush1.msra.mxu0 0.0
    %2528 = vmatprep.subr.mxu0 0.0
    %2529 = vmatpush1.msra.mxu0 0.0
    %2530 = vmatprep.subr.mxu0 0.0
    %2531 = vmatpush1.msra.mxu0 0.0
    %2532 = vmatprep.subr.mxu0 0.0
    %2533 = vmatpush1.msra.mxu0 0.0
    %2534 = vmatprep.subr.mxu0 0.0
    %2535 = vmatpush1.msra.mxu0 0.0
    %2536 = vmatprep.subr.mxu0 0.0
    %2537 = vmatpush1.msra.mxu0 0.0
    %2538 = vmatprep.subr.mxu0 0.0
    %2539 = vmatpush1.msra.mxu0 0.0
    %2540 = vmatprep.subr.mxu0 0.0
    %2541 = vmatpush1.msra.mxu0 0.0
    %2542 = vmatprep.subr.mxu0 0.0
    %2543 = vmatpush1.msra.mxu0 0.0
    %2544 = vmatprep.subr.mxu0 0.0
    %2545 = vmatpush1.msra.mxu0 0.0
    %2546 = vmatprep.subr.mxu0 0.0
    %2547 = vmatpush1.msra.mxu0 0.0
    %2548 = vmatprep.subr.mxu0 0.0
    %2549 = vmatpush1.msra.mxu0 0.0
    %2550 = vmatprep.subr.mxu0 0.0
    %2551 = vmatpush1.msra.mxu0 0.0
    %2552 = vmatprep.subr.mxu0 0.0
    %2553 = vmatpush1.msra.mxu0 0.0
    %2554 = vmatprep.subr.mxu0 0.0
    %2555 = vmatpush1.msra.mxu0 0.0
    %2556 = vmatprep.subr.mxu0 0.0
    %2557 = vmatpush1.msra.mxu0 0.0
    %2558 = vmatprep.subr.mxu0 0.0
    %2559 = vmatpush1.msra.mxu0 0.0
    %2560 = vmatprep.subr.mxu0 0.0
    %2561 = vmatpush1.msra.mxu0 0.0
    %2562 = vmatprep.subr.mxu0 0.0
    %2563 = vmatpush1.msra.mxu0 0.0
    %2564 = vmatprep.subr.mxu0 0.0
    %2565 = vmatpush1.msra.mxu0 0.0
    %2566 = vmatprep.subr.mxu0 0.0
    %2567 = vmatpush1.msra.mxu0 0.0
    %2568 = vmatprep.subr.mxu0 0.0
    %2569 = vmatpush1.msra.mxu0 0.0
    %2570 = vmatprep.subr.mxu0 0.0
    %2571 = vmatpush1.msra.mxu0 0.0
    %2572 = vmatprep.subr.mxu0 0.0
    %2573 = vmatpush1.msra.mxu0 0.0
    %2574 = vmatprep.mubr.f32.mxu0 0.0
    %2575 = vmatmul.mubr.f32.gmra.mrb[0].mxu0 %v1971
    %v2576 = vpop.f32.mrb[0].mxu0
    %v2577 = vadd.f32 0.0, %v2576
    %v2578 = vpop.f32.mrb[0].mxu0
    %v2579 = vadd.f32 0.0, %v2578
    %2580 = vdwg.mxu0
    %v2583 = vrot.slane %v2577, 5
    %v2584 = vrot.slane %v2579, 5
    %v2587 = vadd.f32 %v243, %v2583
    %v2588 = vadd.f32 %v245, %v2584
    %v2589 = vxor.u32 %v2587, 2147483648
    %v2590 = vxor.u32 %v2588, 2147483648
    %v2591 = vmul.f32 %v2589, 1.442695
    %v2592 = vpow.pop %v2591
    %v2593 = vmul.f32 %v2590, 1.442695
    %v2594 = vpow.pop %v2593
    %v2595 = vadd.f32 %v2592, 1.0
    %v2596 = vadd.f32 %v2594, 1.0
    %v2597 = vrcp.pop %v2595
    %v2598 = vmul.f32 1.0, %v2597
    %v2599 = vrcp.pop %v2596
    %v2600 = vmul.f32 1.0, %v2599
    %v2601 = vtanh.pop %v2588
    %v2603 = vrot.slane %v1856, 7
    %v2605 = vmul.f32 %v2598, %v2603
    %v2606 = vmul.f32 %v2598, %v2601
    %2608 = vrot.lane.b32.xlu0 %v2606, 64
    %v2609 = vpop.permute.xlu0 %2608
    %v2611 = vadd.f32 %v2605, %v2609
    %v2612 = vtanh.pop %v2611
    %v2613 = vmul.f32 %v2600, %v2612
    %v2614 = vld [vmem:[#allocation8] sm:$0xff]
    %v2615 = vld [vmem:[#allocation8 + $0x8] sm:$0xff]
    %v2616 = vld [vmem:[#allocation8 + $0x10] sm:$0xff]
    %v2617 = vld [vmem:[#allocation8 + $0x18] sm:$0xff]
    %v2618 = vld [vmem:[#allocation8 + $0x20] sm:$0xff]
    %v2619 = vld [vmem:[#allocation8 + $0x28] sm:$0xff]
    %v2620 = vld [vmem:[#allocation8 + $0x30] sm:$0xff]
    %v2621 = vld [vmem:[#allocation8 + $0x38] sm:$0xff]
    %v2622 = vld [vmem:[#allocation8 + $0x40] sm:$0xff]
    %v2623 = vld [vmem:[#allocation8 + $0x48] sm:$0xff]
    %v2624 = vld [vmem:[#allocation8 + $0x50] sm:$0xff]
    %v2625 = vld [vmem:[#allocation8 + $0x58] sm:$0xff]
    %v2626 = vld [vmem:[#allocation8 + $0x60] sm:$0xff]
    %v2627 = vld [vmem:[#allocation8 + $0x68] sm:$0xff]
    %v2628 = vld [vmem:[#allocation8 + $0x70] sm:$0xff]
    %v2629 = vld [vmem:[#allocation8 + $0x78] sm:$0xff]
    %v2630 = vld [vmem:[#allocation10] sm:$0xff]
    %v2631 = vld [vmem:[#allocation10 + $0x8] sm:$0xff]
    %v2632 = vld [vmem:[#allocation10 + $0x10] sm:$0xff]
    %v2633 = vld [vmem:[#allocation10 + $0x18] sm:$0xff]
    %v2634 = vld [vmem:[#allocation10 + $0x20] sm:$0xff]
    %v2635 = vld [vmem:[#allocation10 + $0x28] sm:$0xff]
    %v2636 = vld [vmem:[#allocation10 + $0x30] sm:$0xff]
    %v2637 = vld [vmem:[#allocation10 + $0x38] sm:$0xff]
    %v2638 = vld [vmem:[#allocation10 + $0x40] sm:$0xff]
    %v2639 = vld [vmem:[#allocation10 + $0x48] sm:$0xff]
    %v2640 = vld [vmem:[#allocation10 + $0x50] sm:$0xff]
    %v2641 = vld [vmem:[#allocation10 + $0x58] sm:$0xff]
    %v2642 = vld [vmem:[#allocation10 + $0x60] sm:$0xff]
    %v2643 = vld [vmem:[#allocation10 + $0x68] sm:$0xff]
    %v2644 = vld [vmem:[#allocation10 + $0x70] sm:$0xff]
    %v2645 = vld [vmem:[#allocation10 + $0x78] sm:$0xff]
    %2647 = vrot.lane.b32.xlu0 %v2065, 64
    %v2648 = vpop.permute.xlu0 %2647
    %v2649 = vsel %vm172, %v2648, 0
    %2651 = vmatprep.subr.mxu0 %v2631
    %2652 = vmatpush1.msra.mxu0 %v2630
    %2653 = vmatprep.subr.mxu0 %v2633
    %2654 = vmatpush1.msra.mxu0 %v2632
    %2655 = vmatprep.subr.mxu0 %v2635
    %2656 = vmatpush1.msra.mxu0 %v2634
    %2657 = vmatprep.subr.mxu0 %v2637
    %2658 = vmatpush1.msra.mxu0 %v2636
    %2659 = vmatprep.subr.mxu0 %v2639
    %2660 = vmatpush1.msra.mxu0 %v2638
    %2661 = vmatprep.subr.mxu0 %v2641
    %2662 = vmatpush1.msra.mxu0 %v2640
    %2663 = vmatprep.subr.mxu0 %v2643
    %2664 = vmatpush1.msra.mxu0 %v2642
    %2665 = vmatprep.subr.mxu0 %v2645
    %2666 = vmatpush1.msra.mxu0 %v2644
    %2667 = vmatprep.subr.mxu0 0.0
    %2668 = vmatpush1.msra.mxu0 0.0
    %2669 = vmatprep.subr.mxu0 0.0
    %2670 = vmatpush1.msra.mxu0 0.0
    %2671 = vmatprep.subr.mxu0 0.0
    %2672 = vmatpush1.msra.mxu0 0.0
    %2673 = vmatprep.subr.mxu0 0.0
    %2674 = vmatpush1.msra.mxu0 0.0
    %2675 = vmatprep.subr.mxu0 0.0
    %2676 = vmatpush1.msra.mxu0 0.0
    %2677 = vmatprep.subr.mxu0 0.0
    %2678 = vmatpush1.msra.mxu0 0.0
    %2679 = vmatprep.subr.mxu0 0.0
    %2680 = vmatpush1.msra.mxu0 0.0
    %2681 = vmatprep.subr.mxu0 0.0
    %2682 = vmatpush1.msra.mxu0 0.0
    %2683 = vmatprep.subr.mxu0 0.0
    %2684 = vmatpush1.msra.mxu0 0.0
    %2685 = vmatprep.subr.mxu0 0.0
    %2686 = vmatpush1.msra.mxu0 0.0
    %2687 = vmatprep.subr.mxu0 0.0
    %2688 = vmatpush1.msra.mxu0 0.0
    %2689 = vmatprep.subr.mxu0 0.0
    %2690 = vmatpush1.msra.mxu0 0.0
    %2691 = vmatprep.subr.mxu0 0.0
    %2692 = vmatpush1.msra.mxu0 0.0
    %2693 = vmatprep.subr.mxu0 0.0
    %2694 = vmatpush1.msra.mxu0 0.0
    %2695 = vmatprep.subr.mxu0 0.0
    %2696 = vmatpush1.msra.mxu0 0.0
    %2697 = vmatprep.subr.mxu0 0.0
    %2698 = vmatpush1.msra.mxu0 0.0
    %2699 = vmatprep.subr.mxu0 0.0
    %2700 = vmatpush1.msra.mxu0 0.0
    %2701 = vmatprep.subr.mxu0 0.0
    %2702 = vmatpush1.msra.mxu0 0.0
    %2703 = vmatprep.subr.mxu0 0.0
    %2704 = vmatpush1.msra.mxu0 0.0
    %2705 = vmatprep.subr.mxu0 0.0
    %2706 = vmatpush1.msra.mxu0 0.0
    %2707 = vmatprep.subr.mxu0 0.0
    %2708 = vmatpush1.msra.mxu0 0.0
    %2709 = vmatprep.subr.mxu0 0.0
    %2710 = vmatpush1.msra.mxu0 0.0
    %2711 = vmatprep.subr.mxu0 0.0
    %2712 = vmatpush1.msra.mxu0 0.0
    %2713 = vmatprep.subr.mxu0 0.0
    %2714 = vmatpush1.msra.mxu0 0.0
    %2715 = vmatprep.mubr.f32.mxu0 0.0
    %2716 = vmatmul.mubr.f32.gmra.mrb[0].mxu0 %v2649
    %v2717 = vpop.f32.mrb[0].mxu0
    %v2718 = vadd.f32 0.0, %v2717
    %v2719 = vpop.f32.mrb[0].mxu0
    %v2720 = vadd.f32 0.0, %v2719
    %2721 = vdwg.mxu0
    %v2723 = vrot.slane %v2613, 3
    %2724 = vrot.lane.b32.xlu0 %v2723, 64
    %v2725 = vpop.permute.xlu0 %2724
    %v2726 = vsel %vm172, %v2725, 0
    %2728 = vmatprep.subr.mxu0 %v2615
    %2729 = vmatpush1.msra.mxu0 %v2614
    %2730 = vmatprep.subr.mxu0 %v2617
    %2731 = vmatpush1.msra.mxu0 %v2616
    %2732 = vmatprep.subr.mxu0 %v2619
    %2733 = vmatpush1.msra.mxu0 %v2618
    %2734 = vmatprep.subr.mxu0 %v2621
    %2735 = vmatpush1.msra.mxu0 %v2620
    %2736 = vmatprep.subr.mxu0 %v2623
    %2737 = vmatpush1.msra.mxu0 %v2622
    %2738 = vmatprep.subr.mxu0 %v2625
    %2739 = vmatpush1.msra.mxu0 %v2624
    %2740 = vmatprep.subr.mxu0 %v2627
    %2741 = vmatpush1.msra.mxu0 %v2626
    %2742 = vmatprep.subr.mxu0 %v2629
    %2743 = vmatpush1.msra.mxu0 %v2628
    %2744 = vmatprep.subr.mxu0 0.0
    %2745 = vmatpush1.msra.mxu0 0.0
    %2746 = vmatprep.subr.mxu0 0.0
    %2747 = vmatpush1.msra.mxu0 0.0
    %2748 = vmatprep.subr.mxu0 0.0
    %2749 = vmatpush1.msra.mxu0 0.0
    %2750 = vmatprep.subr.mxu0 0.0
    %2751 = vmatpush1.msra.mxu0 0.0
    %2752 = vmatprep.subr.mxu0 0.0
    %2753 = vmatpush1.msra.mxu0 0.0
    %2754 = vmatprep.subr.mxu0 0.0
    %2755 = vmatpush1.msra.mxu0 0.0
    %2756 = vmatprep.subr.mxu0 0.0
    %2757 = vmatpush1.msra.mxu0 0.0
    %2758 = vmatprep.subr.mxu0 0.0
    %2759 = vmatpush1.msra.mxu0 0.0
    %2760 = vmatprep.subr.mxu0 0.0
    %2761 = vmatpush1.msra.mxu0 0.0
    %2762 = vmatprep.subr.mxu0 0.0
    %2763 = vmatpush1.msra.mxu0 0.0
    %2764 = vmatprep.subr.mxu0 0.0
    %2765 = vmatpush1.msra.mxu0 0.0
    %2766 = vmatprep.subr.mxu0 0.0
    %2767 = vmatpush1.msra.mxu0 0.0
    %2768 = vmatprep.subr.mxu0 0.0
    %2769 = vmatpush1.msra.mxu0 0.0
    %2770 = vmatprep.subr.mxu0 0.0
    %2771 = vmatpush1.msra.mxu0 0.0
    %2772 = vmatprep.subr.mxu0 0.0
    %2773 = vmatpush1.msra.mxu0 0.0
    %2774 = vmatprep.subr.mxu0 0.0
    %2775 = vmatpush1.msra.mxu0 0.0
    %2776 = vmatprep.subr.mxu0 0.0
    %2777 = vmatpush1.msra.mxu0 0.0
    %2778 = vmatprep.subr.mxu0 0.0
    %2779 = vmatpush1.msra.mxu0 0.0
    %2780 = vmatprep.subr.mxu0 0.0
    %2781 = vmatpush1.msra.mxu0 0.0
    %2782 = vmatprep.subr.mxu0 0.0
    %2783 = vmatpush1.msra.mxu0 0.0
    %2784 = vmatprep.subr.mxu0 0.0
    %2785 = vmatpush1.msra.mxu0 0.0
    %2786 = vmatprep.subr.mxu0 0.0
    %2787 = vmatpush1.msra.mxu0 0.0
    %2788 = vmatprep.subr.mxu0 0.0
    %2789 = vmatpush1.msra.mxu0 0.0
    %2790 = vmatprep.subr.mxu0 0.0
    %2791 = vmatpush1.msra.mxu0 0.0
    %2792 = vmatprep.mubr.f32.mxu0 0.0
    %2793 = vmatmul.mubr.f32.gmra.mrb[0].mxu0 %v2726
    %v2794 = vpop.f32.mrb[0].mxu0
    %v2795 = vadd.f32 %v2718, %v2794
    %v2796 = vpop.f32.mrb[0].mxu0
    %v2797 = vadd.f32 %v2720, %v2796
    %2798 = vdwg.mxu0
    %v2799 = vxor.u32 %v2795, 2147483648
    %v2800 = vxor.u32 %v2797, 2147483648
    %v2801 = vmul.f32 %v2799, 1.442695
    %v2802 = vpow.pop %v2801
    %v2803 = vmul.f32 %v2800, 1.442695
    %v2804 = vpow.pop %v2803
    %v2805 = vadd.f32 %v2802, 1.0
    %v2806 = vadd.f32 %v2804, 1.0
    %v2807 = vrcp.pop %v2805
    %v2808 = vmul.f32 1.0, %v2807
    %v2809 = vrcp.pop %v2806
    %v2810 = vmul.f32 1.0, %v2809
    %v2811 = vtanh.pop %v2797
    %v2812 = vmul.f32 %v2808, %v2063
    %v2813 = vmul.f32 %v2808, %v2811
    %2815 = vrot.lane.b32.xlu0 %v2813, 64
    %v2816 = vpop.permute.xlu0 %2815
    %v2818 = vadd.f32 %v2812, %v2816
    %v2819 = vtanh.pop %v2818
    %v2820 = vmul.f32 %v2810, %v2819
    %v2821 = vxor.u32 %v2820, 2147483648
    %v2822 = vmul.f32 %v2821, 1.442695
    %v2823 = vpow.pop %v2822
    %v2824 = vadd.f32 %v2823, 1.0
    %v2825 = vrcp.pop %v2824
    %v2826 = vmul.f32 1.0, %v2825
    %2828 = vrot.lane.b32.xlu0 %v2826, 64
    %v2829 = vpop.permute.xlu0 %2828
    %s2831 = scalar_lea.vmem [#allocation17], 3
    %2832 = vst.msk [vmem:[%s2831] sm:$0x1] %vm572, %v2829
    %v2833 = vld [vmem:[#allocation11] sm:$0xff]
    %v2834 = vld [vmem:[#allocation11 + $0x8] sm:$0xff]
    %v2835 = vld [vmem:[#allocation11 + $0x10] sm:$0xff]
    %v2836 = vld [vmem:[#allocation11 + $0x18] sm:$0xff]
    %v2837 = vld [vmem:[#allocation11 + $0x20] sm:$0xff]
    %v2838 = vld [vmem:[#allocation11 + $0x28] sm:$0xff]
    %v2839 = vld [vmem:[#allocation11 + $0x30] sm:$0xff]
    %v2840 = vld [vmem:[#allocation11 + $0x38] sm:$0xff]
    %v2841 = vld [vmem:[#allocation11 + $0x40] sm:$0xff]
    %v2842 = vld [vmem:[#allocation11 + $0x48] sm:$0xff]
    %v2843 = vld [vmem:[#allocation11 + $0x50] sm:$0xff]
    %v2844 = vld [vmem:[#allocation11 + $0x58] sm:$0xff]
    %v2845 = vld [vmem:[#allocation11 + $0x60] sm:$0xff]
    %v2846 = vld [vmem:[#allocation11 + $0x68] sm:$0xff]
    %v2847 = vld [vmem:[#allocation11 + $0x70] sm:$0xff]
    %v2848 = vld [vmem:[#allocation11 + $0x78] sm:$0xff]
    %v2849 = vld [vmem:[#allocation13] sm:$0xff]
    %v2850 = vld [vmem:[#allocation13 + $0x8] sm:$0xff]
    %v2851 = vld [vmem:[#allocation13 + $0x10] sm:$0xff]
    %v2852 = vld [vmem:[#allocation13 + $0x18] sm:$0xff]
    %v2853 = vld [vmem:[#allocation13 + $0x20] sm:$0xff]
    %v2854 = vld [vmem:[#allocation13 + $0x28] sm:$0xff]
    %v2855 = vld [vmem:[#allocation13 + $0x30] sm:$0xff]
    %v2856 = vld [vmem:[#allocation13 + $0x38] sm:$0xff]
    %v2857 = vld [vmem:[#allocation13 + $0x40] sm:$0xff]
    %v2858 = vld [vmem:[#allocation13 + $0x48] sm:$0xff]
    %v2859 = vld [vmem:[#allocation13 + $0x50] sm:$0xff]
    %v2860 = vld [vmem:[#allocation13 + $0x58] sm:$0xff]
    %v2861 = vld [vmem:[#allocation13 + $0x60] sm:$0xff]
    %v2862 = vld [vmem:[#allocation13 + $0x68] sm:$0xff]
    %v2863 = vld [vmem:[#allocation13 + $0x70] sm:$0xff]
    %v2864 = vld [vmem:[#allocation13 + $0x78] sm:$0xff]
    %2865 = vmatprep.subr.mxu0 %v2850
    %2866 = vmatpush1.msra.mxu0 %v2849
    %2867 = vmatprep.subr.mxu0 %v2852
    %2868 = vmatpush1.msra.mxu0 %v2851
    %2869 = vmatprep.subr.mxu0 %v2854
    %2870 = vmatpush1.msra.mxu0 %v2853
    %2871 = vmatprep.subr.mxu0 %v2856
    %2872 = vmatpush1.msra.mxu0 %v2855
    %2873 = vmatprep.subr.mxu0 %v2858
    %2874 = vmatpush1.msra.mxu0 %v2857
    %2875 = vmatprep.subr.mxu0 %v2860
    %2876 = vmatpush1.msra.mxu0 %v2859
    %2877 = vmatprep.subr.mxu0 %v2862
    %2878 = vmatpush1.msra.mxu0 %v2861
    %2879 = vmatprep.subr.mxu0 %v2864
    %2880 = vmatpush1.msra.mxu0 %v2863
    %2881 = vmatprep.subr.mxu0 0.0
    %2882 = vmatpush1.msra.mxu0 0.0
    %2883 = vmatprep.subr.mxu0 0.0
    %2884 = vmatpush1.msra.mxu0 0.0
    %2885 = vmatprep.subr.mxu0 0.0
    %2886 = vmatpush1.msra.mxu0 0.0
    %2887 = vmatprep.subr.mxu0 0.0
    %2888 = vmatpush1.msra.mxu0 0.0
    %2889 = vmatprep.subr.mxu0 0.0
    %2890 = vmatpush1.msra.mxu0 0.0
    %2891 = vmatprep.subr.mxu0 0.0
    %2892 = vmatpush1.msra.mxu0 0.0
    %2893 = vmatprep.subr.mxu0 0.0
    %2894 = vmatpush1.msra.mxu0 0.0
    %2895 = vmatprep.subr.mxu0 0.0
    %2896 = vmatpush1.msra.mxu0 0.0
    %2897 = vmatprep.subr.mxu0 0.0
    %2898 = vmatpush1.msra.mxu0 0.0
    %2899 = vmatprep.subr.mxu0 0.0
    %2900 = vmatpush1.msra.mxu0 0.0
    %2901 = vmatprep.subr.mxu0 0.0
    %2902 = vmatpush1.msra.mxu0 0.0
    %2903 = vmatprep.subr.mxu0 0.0
    %2904 = vmatpush1.msra.mxu0 0.0
    %2905 = vmatprep.subr.mxu0 0.0
    %2906 = vmatpush1.msra.mxu0 0.0
    %2907 = vmatprep.subr.mxu0 0.0
    %2908 = vmatpush1.msra.mxu0 0.0
    %2909 = vmatprep.subr.mxu0 0.0
    %2910 = vmatpush1.msra.mxu0 0.0
    %2911 = vmatprep.subr.mxu0 0.0
    %2912 = vmatpush1.msra.mxu0 0.0
    %2913 = vmatprep.subr.mxu0 0.0
    %2914 = vmatpush1.msra.mxu0 0.0
    %2915 = vmatprep.subr.mxu0 0.0
    %2916 = vmatpush1.msra.mxu0 0.0
    %2917 = vmatprep.subr.mxu0 0.0
    %2918 = vmatpush1.msra.mxu0 0.0
    %2919 = vmatprep.subr.mxu0 0.0
    %2920 = vmatpush1.msra.mxu0 0.0
    %2921 = vmatprep.subr.mxu0 0.0
    %2922 = vmatpush1.msra.mxu0 0.0
    %2923 = vmatprep.subr.mxu0 0.0
    %2924 = vmatpush1.msra.mxu0 0.0
    %2925 = vmatprep.subr.mxu0 0.0
    %2926 = vmatpush1.msra.mxu0 0.0
    %2927 = vmatprep.subr.mxu0 0.0
    %2928 = vmatpush1.msra.mxu0 0.0
    %2929 = vmatprep.mubr.f32.mxu0 0.0
    %2930 = vmatmul.mubr.f32.gmra.mrb[0].mxu0 %v2387
    %v2931 = vpop.f32.mrb[0].mxu0
    %v2932 = vadd.f32 0.0, %v2931
    %v2933 = vpop.f32.mrb[0].mxu0
    %v2934 = vadd.f32 0.0, %v2933
    %2935 = vdwg.mxu0
    %v2936 = vsel %vm172, %v2829, 0
    %2938 = vmatprep.subr.mxu0 %v2834
    %2939 = vmatpush1.msra.mxu0 %v2833
    %2940 = vmatprep.subr.mxu0 %v2836
    %2941 = vmatpush1.msra.mxu0 %v2835
    %2942 = vmatprep.subr.mxu0 %v2838
    %2943 = vmatpush1.msra.mxu0 %v2837
    %2944 = vmatprep.subr.mxu0 %v2840
    %2945 = vmatpush1.msra.mxu0 %v2839
    %2946 = vmatprep.subr.mxu0 %v2842
    %2947 = vmatpush1.msra.mxu0 %v2841
    %2948 = vmatprep.subr.mxu0 %v2844
    %2949 = vmatpush1.msra.mxu0 %v2843
    %2950 = vmatprep.subr.mxu0 %v2846
    %2951 = vmatpush1.msra.mxu0 %v2845
    %2952 = vmatprep.subr.mxu0 %v2848
    %2953 = vmatpush1.msra.mxu0 %v2847
    %2954 = vmatprep.subr.mxu0 0.0
    %2955 = vmatpush1.msra.mxu0 0.0
    %2956 = vmatprep.subr.mxu0 0.0
    %2957 = vmatpush1.msra.mxu0 0.0
    %2958 = vmatprep.subr.mxu0 0.0
    %2959 = vmatpush1.msra.mxu0 0.0
    %2960 = vmatprep.subr.mxu0 0.0
    %2961 = vmatpush1.msra.mxu0 0.0
    %2962 = vmatprep.subr.mxu0 0.0
    %2963 = vmatpush1.msra.mxu0 0.0
    %2964 = vmatprep.subr.mxu0 0.0
    %2965 = vmatpush1.msra.mxu0 0.0
    %2966 = vmatprep.subr.mxu0 0.0
    %2967 = vmatpush1.msra.mxu0 0.0
    %2968 = vmatprep.subr.mxu0 0.0
    %2969 = vmatpush1.msra.mxu0 0.0
    %2970 = vmatprep.subr.mxu0 0.0
    %2971 = vmatpush1.msra.mxu0 0.0
    %2972 = vmatprep.subr.mxu0 0.0
    %2973 = vmatpush1.msra.mxu0 0.0
    %2974 = vmatprep.subr.mxu0 0.0
    %2975 = vmatpush1.msra.mxu0 0.0
    %2976 = vmatprep.subr.mxu0 0.0
    %2977 = vmatpush1.msra.mxu0 0.0
    %2978 = vmatprep.subr.mxu0 0.0
    %2979 = vmatpush1.msra.mxu0 0.0
    %2980 = vmatprep.subr.mxu0 0.0
    %2981 = vmatpush1.msra.mxu0 0.0
    %2982 = vmatprep.subr.mxu0 0.0
    %2983 = vmatpush1.msra.mxu0 0.0
    %2984 = vmatprep.subr.mxu0 0.0
    %2985 = vmatpush1.msra.mxu0 0.0
    %2986 = vmatprep.subr.mxu0 0.0
    %2987 = vmatpush1.msra.mxu0 0.0
    %2988 = vmatprep.subr.mxu0 0.0
    %2989 = vmatpush1.msra.mxu0 0.0
    %2990 = vmatprep.subr.mxu0 0.0
    %2991 = vmatpush1.msra.mxu0 0.0
    %2992 = vmatprep.subr.mxu0 0.0
    %2993 = vmatpush1.msra.mxu0 0.0
    %2994 = vmatprep.subr.mxu0 0.0
    %2995 = vmatpush1.msra.mxu0 0.0
    %2996 = vmatprep.subr.mxu0 0.0
    %2997 = vmatpush1.msra.mxu0 0.0
    %2998 = vmatprep.subr.mxu0 0.0
    %2999 = vmatpush1.msra.mxu0 0.0
    %3000 = vmatprep.subr.mxu0 0.0
    %3001 = vmatpush1.msra.mxu0 0.0
    %3002 = vmatprep.mubr.f32.mxu0 0.0
    %3003 = vmatmul.mubr.f32.gmra.mrb[0].mxu0 %v2936
    %v3004 = vpop.f32.mrb[0].mxu0
    %v3005 = vadd.f32 %v2932, %v3004
    %v3006 = vpop.f32.mrb[0].mxu0
    %v3007 = vadd.f32 %v2934, %v3006
    %3008 = vdwg.mxu0
    %v3009 = vxor.u32 %v3005, 2147483648
    %v3010 = vxor.u32 %v3007, 2147483648
    %v3011 = vmul.f32 %v3009, 1.442695
    %v3012 = vpow.pop %v3011
    %v3013 = vmul.f32 %v3010, 1.442695
    %v3014 = vpow.pop %v3013
    %v3015 = vadd.f32 %v3012, 1.0
    %v3016 = vadd.f32 %v3014, 1.0
    %v3017 = vrcp.pop %v3015
    %v3018 = vmul.f32 1.0, %v3017
    %v3019 = vrcp.pop %v3016
    %v3020 = vmul.f32 1.0, %v3019
    %v3021 = vtanh.pop %v3007
    %v3022 = vmul.f32 %v3018, %v2273
    %v3023 = vmul.f32 %v3018, %v3021
    %3025 = vrot.lane.b32.xlu0 %v3023, 64
    %v3026 = vpop.permute.xlu0 %3025
    %v3028 = vadd.f32 %v3022, %v3026
    %v3029 = vtanh.pop %v3028
    %v3030 = vmul.f32 %v3020, %v3029
    %v3031 = vld [vmem:[#allocation14] sm:$0xff]
    %v3032 = vld [vmem:[#allocation14 + $0x8] sm:$0xff]
    %v3033 = vld [vmem:[#allocation14 + $0x10] sm:$0xff]
    %v3034 = vld [vmem:[#allocation14 + $0x18] sm:$0xff]
    %v3035 = vld [vmem:[#allocation14 + $0x20] sm:$0xff]
    %v3036 = vld [vmem:[#allocation14 + $0x28] sm:$0xff]
    %v3037 = vld [vmem:[#allocation14 + $0x30] sm:$0xff]
    %v3038 = vld [vmem:[#allocation14 + $0x38] sm:$0xff]
    %v3039 = vld [vmem:[#allocation14 + $0x40] sm:$0xff]
    %v3040 = vld [vmem:[#allocation14 + $0x48] sm:$0xff]
    %v3041 = vld [vmem:[#allocation14 + $0x50] sm:$0xff]
    %v3042 = vld [vmem:[#allocation14 + $0x58] sm:$0xff]
    %v3043 = vld [vmem:[#allocation14 + $0x60] sm:$0xff]
    %v3044 = vld [vmem:[#allocation14 + $0x68] sm:$0xff]
    %v3045 = vld [vmem:[#allocation14 + $0x70] sm:$0xff]
    %v3046 = vld [vmem:[#allocation14 + $0x78] sm:$0xff]
    %v3047 = vld [vmem:[#allocation16] sm:$0xff]
    %v3048 = vld [vmem:[#allocation16 + $0x8] sm:$0xff]
    %v3049 = vld [vmem:[#allocation16 + $0x10] sm:$0xff]
    %v3050 = vld [vmem:[#allocation16 + $0x18] sm:$0xff]
    %v3051 = vld [vmem:[#allocation16 + $0x20] sm:$0xff]
    %v3052 = vld [vmem:[#allocation16 + $0x28] sm:$0xff]
    %v3053 = vld [vmem:[#allocation16 + $0x30] sm:$0xff]
    %v3054 = vld [vmem:[#allocation16 + $0x38] sm:$0xff]
    %v3055 = vld [vmem:[#allocation16 + $0x40] sm:$0xff]
    %v3056 = vld [vmem:[#allocation16 + $0x48] sm:$0xff]
    %v3057 = vld [vmem:[#allocation16 + $0x50] sm:$0xff]
    %v3058 = vld [vmem:[#allocation16 + $0x58] sm:$0xff]
    %v3059 = vld [vmem:[#allocation16 + $0x60] sm:$0xff]
    %v3060 = vld [vmem:[#allocation16 + $0x68] sm:$0xff]
    %v3061 = vld [vmem:[#allocation16 + $0x70] sm:$0xff]
    %v3062 = vld [vmem:[#allocation16 + $0x78] sm:$0xff]
    %3064 = vrot.lane.b32.xlu0 %v2481, 64
    %v3065 = vpop.permute.xlu0 %3064
    %v3066 = vsel %vm172, %v3065, 0
    %3068 = vmatprep.subr.mxu0 %v3048
    %3069 = vmatpush1.msra.mxu0 %v3047
    %3070 = vmatprep.subr.mxu0 %v3050
    %3071 = vmatpush1.msra.mxu0 %v3049
    %3072 = vmatprep.subr.mxu0 %v3052
    %3073 = vmatpush1.msra.mxu0 %v3051
    %3074 = vmatprep.subr.mxu0 %v3054
    %3075 = vmatpush1.msra.mxu0 %v3053
    %3076 = vmatprep.subr.mxu0 %v3056
    %3077 = vmatpush1.msra.mxu0 %v3055
    %3078 = vmatprep.subr.mxu0 %v3058
    %3079 = vmatpush1.msra.mxu0 %v3057
    %3080 = vmatprep.subr.mxu0 %v3060
    %3081 = vmatpush1.msra.mxu0 %v3059
    %3082 = vmatprep.subr.mxu0 %v3062
    %3083 = vmatpush1.msra.mxu0 %v3061
    %3084 = vmatprep.subr.mxu0 0.0
    %3085 = vmatpush1.msra.mxu0 0.0
    %3086 = vmatprep.subr.mxu0 0.0
    %3087 = vmatpush1.msra.mxu0 0.0
    %3088 = vmatprep.subr.mxu0 0.0
    %3089 = vmatpush1.msra.mxu0 0.0
    %3090 = vmatprep.subr.mxu0 0.0
    %3091 = vmatpush1.msra.mxu0 0.0
    %3092 = vmatprep.subr.mxu0 0.0
    %3093 = vmatpush1.msra.mxu0 0.0
    %3094 = vmatprep.subr.mxu0 0.0
    %3095 = vmatpush1.msra.mxu0 0.0
    %3096 = vmatprep.subr.mxu0 0.0
    %3097 = vmatpush1.msra.mxu0 0.0
    %3098 = vmatprep.subr.mxu0 0.0
    %3099 = vmatpush1.msra.mxu0 0.0
    %3100 = vmatprep.subr.mxu0 0.0
    %3101 = vmatpush1.msra.mxu0 0.0
    %3102 = vmatprep.subr.mxu0 0.0
    %3103 = vmatpush1.msra.mxu0 0.0
    %3104 = vmatprep.subr.mxu0 0.0
    %3105 = vmatpush1.msra.mxu0 0.0
    %3106 = vmatprep.subr.mxu0 0.0
    %3107 = vmatpush1.msra.mxu0 0.0
    %3108 = vmatprep.subr.mxu0 0.0
    %3109 = vmatpush1.msra.mxu0 0.0
    %3110 = vmatprep.subr.mxu0 0.0
    %3111 = vmatpush1.msra.mxu0 0.0
    %3112 = vmatprep.subr.mxu0 0.0
    %3113 = vmatpush1.msra.mxu0 0.0
    %3114 = vmatprep.subr.mxu0 0.0
    %3115 = vmatpush1.msra.mxu0 0.0
    %3116 = vmatprep.subr.mxu0 0.0
    %3117 = vmatpush1.msra.mxu0 0.0
    %3118 = vmatprep.subr.mxu0 0.0
    %3119 = vmatpush1.msra.mxu0 0.0
    %3120 = vmatprep.subr.mxu0 0.0
    %3121 = vmatpush1.msra.mxu0 0.0
    %3122 = vmatprep.subr.mxu0 0.0
    %3123 = vmatpush1.msra.mxu0 0.0
    %3124 = vmatprep.subr.mxu0 0.0
    %3125 = vmatpush1.msra.mxu0 0.0
    %3126 = vmatprep.subr.mxu0 0.0
    %3127 = vmatpush1.msra.mxu0 0.0
    %3128 = vmatprep.subr.mxu0 0.0
    %3129 = vmatpush1.msra.mxu0 0.0
    %3130 = vmatprep.subr.mxu0 0.0
    %3131 = vmatpush1.msra.mxu0 0.0
    %3132 = vmatprep.mubr.f32.mxu0 0.0
    %3133 = vmatmul.mubr.f32.gmra.mrb[0].mxu0 %v3066
    %v3134 = vpop.f32.mrb[0].mxu0
    %v3135 = vadd.f32 0.0, %v3134
    %v3136 = vpop.f32.mrb[0].mxu0
    %v3137 = vadd.f32 0.0, %v3136
    %3138 = vdwg.mxu0
    %3140 = vrot.lane.b32.xlu0 %v3030, 64
    %v3141 = vpop.permute.xlu0 %3140
    %v3142 = vsel %vm172, %v3141, 0
    %3144 = vmatprep.subr.mxu0 %v3032
    %3145 = vmatpush1.msra.mxu0 %v3031
    %3146 = vmatprep.subr.mxu0 %v3034
    %3147 = vmatpush1.msra.mxu0 %v3033
    %3148 = vmatprep.subr.mxu0 %v3036
    %3149 = vmatpush1.msra.mxu0 %v3035
    %3150 = vmatprep.subr.mxu0 %v3038
    %3151 = vmatpush1.msra.mxu0 %v3037
    %3152 = vmatprep.subr.mxu0 %v3040
    %3153 = vmatpush1.msra.mxu0 %v3039
    %3154 = vmatprep.subr.mxu0 %v3042
    %3155 = vmatpush1.msra.mxu0 %v3041
    %3156 = vmatprep.subr.mxu0 %v3044
    %3157 = vmatpush1.msra.mxu0 %v3043
    %3158 = vmatprep.subr.mxu0 %v3046
    %3159 = vmatpush1.msra.mxu0 %v3045
    %3160 = vmatprep.subr.mxu0 0.0
    %3161 = vmatpush1.msra.mxu0 0.0
    %3162 = vmatprep.subr.mxu0 0.0
    %3163 = vmatpush1.msra.mxu0 0.0
    %3164 = vmatprep.subr.mxu0 0.0
    %3165 = vmatpush1.msra.mxu0 0.0
    %3166 = vmatprep.subr.mxu0 0.0
    %3167 = vmatpush1.msra.mxu0 0.0
    %3168 = vmatprep.subr.mxu0 0.0
    %3169 = vmatpush1.msra.mxu0 0.0
    %3170 = vmatprep.subr.mxu0 0.0
    %3171 = vmatpush1.msra.mxu0 0.0
    %3172 = vmatprep.subr.mxu0 0.0
    %3173 = vmatpush1.msra.mxu0 0.0
    %3174 = vmatprep.subr.mxu0 0.0
    %3175 = vmatpush1.msra.mxu0 0.0
    %3176 = vmatprep.subr.mxu0 0.0
    %3177 = vmatpush1.msra.mxu0 0.0
    %3178 = vmatprep.subr.mxu0 0.0
    %3179 = vmatpush1.msra.mxu0 0.0
    %3180 = vmatprep.subr.mxu0 0.0
    %3181 = vmatpush1.msra.mxu0 0.0
    %3182 = vmatprep.subr.mxu0 0.0
    %3183 = vmatpush1.msra.mxu0 0.0
    %3184 = vmatprep.subr.mxu0 0.0
    %3185 = vmatpush1.msra.mxu0 0.0
    %3186 = vmatprep.subr.mxu0 0.0
    %3187 = vmatpush1.msra.mxu0 0.0
    %3188 = vmatprep.subr.mxu0 0.0
    %3189 = vmatpush1.msra.mxu0 0.0
    %3190 = vmatprep.subr.mxu0 0.0
    %3191 = vmatpush1.msra.mxu0 0.0
    %3192 = vmatprep.subr.mxu0 0.0
    %3193 = vmatpush1.msra.mxu0 0.0
    %3194 = vmatprep.subr.mxu0 0.0
    %3195 = vmatpush1.msra.mxu0 0.0
    %3196 = vmatprep.subr.mxu0 0.0
    %3197 = vmatpush1.msra.mxu0 0.0
    %3198 = vmatprep.subr.mxu0 0.0
    %3199 = vmatpush1.msra.mxu0 0.0
    %3200 = vmatprep.subr.mxu0 0.0
    %3201 = vmatpush1.msra.mxu0 0.0
    %3202 = vmatprep.subr.mxu0 0.0
    %3203 = vmatpush1.msra.mxu0 0.0
    %3204 = vmatprep.subr.mxu0 0.0
    %3205 = vmatpush1.msra.mxu0 0.0
    %3206 = vmatprep.subr.mxu0 0.0
    %3207 = vmatpush1.msra.mxu0 0.0
    %3208 = vmatprep.mubr.f32.mxu0 0.0
    %3209 = vmatmul.mubr.f32.gmra.mrb[0].mxu0 %v3142
    %v3210 = vpop.f32.mrb[0].mxu0
    %v3211 = vadd.f32 %v3135, %v3210
    %v3212 = vpop.f32.mrb[0].mxu0
    %v3213 = vadd.f32 %v3137, %v3212
    %3214 = vdwg.mxu0
    %v3215 = vxor.u32 %v3211, 2147483648
    %v3216 = vxor.u32 %v3213, 2147483648
    %v3217 = vmul.f32 %v3215, 1.442695
    %v3218 = vpow.pop %v3217
    %v3219 = vmul.f32 %v3216, 1.442695
    %v3220 = vpow.pop %v3219
    %v3221 = vadd.f32 %v3218, 1.0
    %v3222 = vadd.f32 %v3220, 1.0
    %v3223 = vrcp.pop %v3221
    %v3224 = vmul.f32 1.0, %v3223
    %v3225 = vrcp.pop %v3222
    %v3226 = vmul.f32 1.0, %v3225
    %v3227 = vtanh.pop %v3213
    %v3228 = vmul.f32 %v3224, %v2479
    %v3229 = vmul.f32 %v3224, %v3227
    %3231 = vrot.lane.b32.xlu0 %v3229, 64
    %v3232 = vpop.permute.xlu0 %3231
    %v3234 = vadd.f32 %v3228, %v3232
    %v3235 = vtanh.pop %v3234
    %v3236 = vmul.f32 %v3226, %v3235
    %v3237 = vxor.u32 %v3236, 2147483648
    %v3238 = vmul.f32 %v3237, 1.442695
    %v3239 = vpow.pop %v3238
    %v3240 = vadd.f32 %v3239, 1.0
    %v3241 = vrcp.pop %v3240
    %v3242 = vmul.f32 1.0, %v3241
    %3244 = vrot.lane.b32.xlu0 %v3242, 64
    %v3245 = vpop.permute.xlu0 %3244
    %s3247 = scalar_lea.vmem %s9, 3
    %3248 = vst.msk [vmem:[%s3247] sm:$0x1] %vm572, %v3245
    %v3249 = vld [vmem:[#allocation7] sm:$0xff]
    %v3250 = vld [vmem:[#allocation7 + $0x8] sm:$0xff]
    %v3251 = vld [vmem:[#allocation7 + $0x10] sm:$0xff]
    %v3252 = vld [vmem:[#allocation7 + $0x18] sm:$0xff]
    %v3253 = vld [vmem:[#allocation7 + $0x20] sm:$0xff]
    %v3254 = vld [vmem:[#allocation7 + $0x28] sm:$0xff]
    %v3255 = vld [vmem:[#allocation7 + $0x30] sm:$0xff]
    %v3256 = vld [vmem:[#allocation7 + $0x38] sm:$0xff]
    %v3257 = vld [vmem:[#allocation7 + $0x40] sm:$0xff]
    %v3258 = vld [vmem:[#allocation7 + $0x48] sm:$0xff]
    %v3259 = vld [vmem:[#allocation7 + $0x50] sm:$0xff]
    %v3260 = vld [vmem:[#allocation7 + $0x58] sm:$0xff]
    %v3261 = vld [vmem:[#allocation7 + $0x60] sm:$0xff]
    %v3262 = vld [vmem:[#allocation7 + $0x68] sm:$0xff]
    %v3263 = vld [vmem:[#allocation7 + $0x70] sm:$0xff]
    %v3264 = vld [vmem:[#allocation7 + $0x78] sm:$0xff]
    %3265 = vmatprep.subr.mxu0 %v3250
    %3266 = vmatpush1.msra.mxu0 %v3249
    %3267 = vmatprep.subr.mxu0 %v3252
    %3268 = vmatpush1.msra.mxu0 %v3251
    %3269 = vmatprep.subr.mxu0 %v3254
    %3270 = vmatpush1.msra.mxu0 %v3253
    %3271 = vmatprep.subr.mxu0 %v3256
    %3272 = vmatpush1.msra.mxu0 %v3255
    %3273 = vmatprep.subr.mxu0 %v3258
    %3274 = vmatpush1.msra.mxu0 %v3257
    %3275 = vmatprep.subr.mxu0 %v3260
    %3276 = vmatpush1.msra.mxu0 %v3259
    %3277 = vmatprep.subr.mxu0 %v3262
    %3278 = vmatpush1.msra.mxu0 %v3261
    %3279 = vmatprep.subr.mxu0 %v3264
    %3280 = vmatpush1.msra.mxu0 %v3263
    %3281 = vmatprep.subr.mxu0 0.0
    %3282 = vmatpush1.msra.mxu0 0.0
    %3283 = vmatprep.subr.mxu0 0.0
    %3284 = vmatpush1.msra.mxu0 0.0
    %3285 = vmatprep.subr.mxu0 0.0
    %3286 = vmatpush1.msra.mxu0 0.0
    %3287 = vmatprep.subr.mxu0 0.0
    %3288 = vmatpush1.msra.mxu0 0.0
    %3289 = vmatprep.subr.mxu0 0.0
    %3290 = vmatpush1.msra.mxu0 0.0
    %3291 = vmatprep.subr.mxu0 0.0
    %3292 = vmatpush1.msra.mxu0 0.0
    %3293 = vmatprep.subr.mxu0 0.0
    %3294 = vmatpush1.msra.mxu0 0.0
    %3295 = vmatprep.subr.mxu0 0.0
    %3296 = vmatpush1.msra.mxu0 0.0
    %3297 = vmatprep.subr.mxu0 0.0
    %3298 = vmatpush1.msra.mxu0 0.0
    %3299 = vmatprep.subr.mxu0 0.0
    %3300 = vmatpush1.msra.mxu0 0.0
    %3301 = vmatprep.subr.mxu0 0.0
    %3302 = vmatpush1.msra.mxu0 0.0
    %3303 = vmatprep.subr.mxu0 0.0
    %3304 = vmatpush1.msra.mxu0 0.0
    %3305 = vmatprep.subr.mxu0 0.0
    %3306 = vmatpush1.msra.mxu0 0.0
    %3307 = vmatprep.subr.mxu0 0.0
    %3308 = vmatpush1.msra.mxu0 0.0
    %3309 = vmatprep.subr.mxu0 0.0
    %3310 = vmatpush1.msra.mxu0 0.0
    %3311 = vmatprep.subr.mxu0 0.0
    %3312 = vmatpush1.msra.mxu0 0.0
    %3313 = vmatprep.subr.mxu0 0.0
    %3314 = vmatpush1.msra.mxu0 0.0
    %3315 = vmatprep.subr.mxu0 0.0
    %3316 = vmatpush1.msra.mxu0 0.0
    %3317 = vmatprep.subr.mxu0 0.0
    %3318 = vmatpush1.msra.mxu0 0.0
    %3319 = vmatprep.subr.mxu0 0.0
    %3320 = vmatpush1.msra.mxu0 0.0
    %3321 = vmatprep.subr.mxu0 0.0
    %3322 = vmatpush1.msra.mxu0 0.0
    %3323 = vmatprep.subr.mxu0 0.0
    %3324 = vmatpush1.msra.mxu0 0.0
    %3325 = vmatprep.subr.mxu0 0.0
    %3326 = vmatpush1.msra.mxu0 0.0
    %3327 = vmatprep.subr.mxu0 0.0
    %3328 = vmatpush1.msra.mxu0 0.0
    %3329 = vmatprep.mubr.f32.mxu0 0.0
    %3330 = vmatmul.mubr.f32.gmra.mrb[0].mxu0 %v2726
    %v3331 = vpop.f32.mrb[0].mxu0
    %v3332 = vadd.f32 0.0, %v3331
    %v3333 = vpop.f32.mrb[0].mxu0
    %v3334 = vadd.f32 0.0, %v3333
    %3335 = vdwg.mxu0
    %v3338 = vrot.slane %v3332, 4
    %v3339 = vrot.slane %v3334, 4
    %v3342 = vadd.f32 %v243, %v3338
    %v3343 = vadd.f32 %v245, %v3339
    %v3344 = vxor.u32 %v3342, 2147483648
    %v3345 = vxor.u32 %v3343, 2147483648
    %v3346 = vmul.f32 %v3344, 1.442695
    %v3347 = vpow.pop %v3346
    %v3348 = vmul.f32 %v3345, 1.442695
    %v3349 = vpow.pop %v3348
    %v3350 = vadd.f32 %v3347, 1.0
    %v3351 = vadd.f32 %v3349, 1.0
    %v3352 = vrcp.pop %v3350
    %v3353 = vmul.f32 1.0, %v3352
    %v3354 = vrcp.pop %v3351
    %v3355 = vmul.f32 1.0, %v3354
    %v3356 = vtanh.pop %v3343
    %v3358 = vrot.slane %v2611, 7
    %v3360 = vmul.f32 %v3353, %v3358
    %v3361 = vmul.f32 %v3353, %v3356
    %3363 = vrot.lane.b32.xlu0 %v3361, 64
    %v3364 = vpop.permute.xlu0 %3363
    %v3366 = vadd.f32 %v3360, %v3364
    %v3367 = vtanh.pop %v3366
    %v3368 = vmul.f32 %v3355, %v3367
    %v3369 = vld [vmem:[#allocation8] sm:$0xff]
    %v3370 = vld [vmem:[#allocation8 + $0x8] sm:$0xff]
    %v3371 = vld [vmem:[#allocation8 + $0x10] sm:$0xff]
    %v3372 = vld [vmem:[#allocation8 + $0x18] sm:$0xff]
    %v3373 = vld [vmem:[#allocation8 + $0x20] sm:$0xff]
    %v3374 = vld [vmem:[#allocation8 + $0x28] sm:$0xff]
    %v3375 = vld [vmem:[#allocation8 + $0x30] sm:$0xff]
    %v3376 = vld [vmem:[#allocation8 + $0x38] sm:$0xff]
    %v3377 = vld [vmem:[#allocation8 + $0x40] sm:$0xff]
    %v3378 = vld [vmem:[#allocation8 + $0x48] sm:$0xff]
    %v3379 = vld [vmem:[#allocation8 + $0x50] sm:$0xff]
    %v3380 = vld [vmem:[#allocation8 + $0x58] sm:$0xff]
    %v3381 = vld [vmem:[#allocation8 + $0x60] sm:$0xff]
    %v3382 = vld [vmem:[#allocation8 + $0x68] sm:$0xff]
    %v3383 = vld [vmem:[#allocation8 + $0x70] sm:$0xff]
    %v3384 = vld [vmem:[#allocation8 + $0x78] sm:$0xff]
    %v3385 = vld [vmem:[#allocation10] sm:$0xff]
    %v3386 = vld [vmem:[#allocation10 + $0x8] sm:$0xff]
    %v3387 = vld [vmem:[#allocation10 + $0x10] sm:$0xff]
    %v3388 = vld [vmem:[#allocation10 + $0x18] sm:$0xff]
    %v3389 = vld [vmem:[#allocation10 + $0x20] sm:$0xff]
    %v3390 = vld [vmem:[#allocation10 + $0x28] sm:$0xff]
    %v3391 = vld [vmem:[#allocation10 + $0x30] sm:$0xff]
    %v3392 = vld [vmem:[#allocation10 + $0x38] sm:$0xff]
    %v3393 = vld [vmem:[#allocation10 + $0x40] sm:$0xff]
    %v3394 = vld [vmem:[#allocation10 + $0x48] sm:$0xff]
    %v3395 = vld [vmem:[#allocation10 + $0x50] sm:$0xff]
    %v3396 = vld [vmem:[#allocation10 + $0x58] sm:$0xff]
    %v3397 = vld [vmem:[#allocation10 + $0x60] sm:$0xff]
    %v3398 = vld [vmem:[#allocation10 + $0x68] sm:$0xff]
    %v3399 = vld [vmem:[#allocation10 + $0x70] sm:$0xff]
    %v3400 = vld [vmem:[#allocation10 + $0x78] sm:$0xff]
    %3402 = vrot.lane.b32.xlu0 %v2820, 64
    %v3403 = vpop.permute.xlu0 %3402
    %v3404 = vsel %vm172, %v3403, 0
    %3406 = vmatprep.subr.mxu0 %v3386
    %3407 = vmatpush1.msra.mxu0 %v3385
    %3408 = vmatprep.subr.mxu0 %v3388
    %3409 = vmatpush1.msra.mxu0 %v3387
    %3410 = vmatprep.subr.mxu0 %v3390
    %3411 = vmatpush1.msra.mxu0 %v3389
    %3412 = vmatprep.subr.mxu0 %v3392
    %3413 = vmatpush1.msra.mxu0 %v3391
    %3414 = vmatprep.subr.mxu0 %v3394
    %3415 = vmatpush1.msra.mxu0 %v3393
    %3416 = vmatprep.subr.mxu0 %v3396
    %3417 = vmatpush1.msra.mxu0 %v3395
    %3418 = vmatprep.subr.mxu0 %v3398
    %3419 = vmatpush1.msra.mxu0 %v3397
    %3420 = vmatprep.subr.mxu0 %v3400
    %3421 = vmatpush1.msra.mxu0 %v3399
    %3422 = vmatprep.subr.mxu0 0.0
    %3423 = vmatpush1.msra.mxu0 0.0
    %3424 = vmatprep.subr.mxu0 0.0
    %3425 = vmatpush1.msra.mxu0 0.0
    %3426 = vmatprep.subr.mxu0 0.0
    %3427 = vmatpush1.msra.mxu0 0.0
    %3428 = vmatprep.subr.mxu0 0.0
    %3429 = vmatpush1.msra.mxu0 0.0
    %3430 = vmatprep.subr.mxu0 0.0
    %3431 = vmatpush1.msra.mxu0 0.0
    %3432 = vmatprep.subr.mxu0 0.0
    %3433 = vmatpush1.msra.mxu0 0.0
    %3434 = vmatprep.subr.mxu0 0.0
    %3435 = vmatpush1.msra.mxu0 0.0
    %3436 = vmatprep.subr.mxu0 0.0
    %3437 = vmatpush1.msra.mxu0 0.0
    %3438 = vmatprep.subr.mxu0 0.0
    %3439 = vmatpush1.msra.mxu0 0.0
    %3440 = vmatprep.subr.mxu0 0.0
    %3441 = vmatpush1.msra.mxu0 0.0
    %3442 = vmatprep.subr.mxu0 0.0
    %3443 = vmatpush1.msra.mxu0 0.0
    %3444 = vmatprep.subr.mxu0 0.0
    %3445 = vmatpush1.msra.mxu0 0.0
    %3446 = vmatprep.subr.mxu0 0.0
    %3447 = vmatpush1.msra.mxu0 0.0
    %3448 = vmatprep.subr.mxu0 0.0
    %3449 = vmatpush1.msra.mxu0 0.0
    %3450 = vmatprep.subr.mxu0 0.0
    %3451 = vmatpush1.msra.mxu0 0.0
    %3452 = vmatprep.subr.mxu0 0.0
    %3453 = vmatpush1.msra.mxu0 0.0
    %3454 = vmatprep.subr.mxu0 0.0
    %3455 = vmatpush1.msra.mxu0 0.0
    %3456 = vmatprep.subr.mxu0 0.0
    %3457 = vmatpush1.msra.mxu0 0.0
    %3458 = vmatprep.subr.mxu0 0.0
    %3459 = vmatpush1.msra.mxu0 0.0
    %3460 = vmatprep.subr.mxu0 0.0
    %3461 = vmatpush1.msra.mxu0 0.0
    %3462 = vmatprep.subr.mxu0 0.0
    %3463 = vmatpush1.msra.mxu0 0.0
    %3464 = vmatprep.subr.mxu0 0.0
    %3465 = vmatpush1.msra.mxu0 0.0
    %3466 = vmatprep.subr.mxu0 0.0
    %3467 = vmatpush1.msra.mxu0 0.0
    %3468 = vmatprep.subr.mxu0 0.0
    %3469 = vmatpush1.msra.mxu0 0.0
    %3470 = vmatprep.mubr.f32.mxu0 0.0
    %3471 = vmatmul.mubr.f32.gmra.mrb[0].mxu0 %v3404
    %v3472 = vpop.f32.mrb[0].mxu0
    %v3473 = vadd.f32 0.0, %v3472
    %v3474 = vpop.f32.mrb[0].mxu0
    %v3475 = vadd.f32 0.0, %v3474
    %3476 = vdwg.mxu0
    %v3478 = vrot.slane %v3368, 4
    %3479 = vrot.lane.b32.xlu0 %v3478, 64
    %v3480 = vpop.permute.xlu0 %3479
    %v3481 = vsel %vm172, %v3480, 0
    %3483 = vmatprep.subr.mxu0 %v3370
    %3484 = vmatpush1.msra.mxu0 %v3369
    %3485 = vmatprep.subr.mxu0 %v3372
    %3486 = vmatpush1.msra.mxu0 %v3371
    %3487 = vmatprep.subr.mxu0 %v3374
    %3488 = vmatpush1.msra.mxu0 %v3373
    %3489 = vmatprep.subr.mxu0 %v3376
    %3490 = vmatpush1.msra.mxu0 %v3375
    %3491 = vmatprep.subr.mxu0 %v3378
    %3492 = vmatpush1.msra.mxu0 %v3377
    %3493 = vmatprep.subr.mxu0 %v3380
    %3494 = vmatpush1.msra.mxu0 %v3379
    %3495 = vmatprep.subr.mxu0 %v3382
    %3496 = vmatpush1.msra.mxu0 %v3381
    %3497 = vmatprep.subr.mxu0 %v3384
    %3498 = vmatpush1.msra.mxu0 %v3383
    %3499 = vmatprep.subr.mxu0 0.0
    %3500 = vmatpush1.msra.mxu0 0.0
    %3501 = vmatprep.subr.mxu0 0.0
    %3502 = vmatpush1.msra.mxu0 0.0
    %3503 = vmatprep.subr.mxu0 0.0
    %3504 = vmatpush1.msra.mxu0 0.0
    %3505 = vmatprep.subr.mxu0 0.0
    %3506 = vmatpush1.msra.mxu0 0.0
    %3507 = vmatprep.subr.mxu0 0.0
    %3508 = vmatpush1.msra.mxu0 0.0
    %3509 = vmatprep.subr.mxu0 0.0
    %3510 = vmatpush1.msra.mxu0 0.0
    %3511 = vmatprep.subr.mxu0 0.0
    %3512 = vmatpush1.msra.mxu0 0.0
    %3513 = vmatprep.subr.mxu0 0.0
    %3514 = vmatpush1.msra.mxu0 0.0
    %3515 = vmatprep.subr.mxu0 0.0
    %3516 = vmatpush1.msra.mxu0 0.0
    %3517 = vmatprep.subr.mxu0 0.0
    %3518 = vmatpush1.msra.mxu0 0.0
    %3519 = vmatprep.subr.mxu0 0.0
    %3520 = vmatpush1.msra.mxu0 0.0
    %3521 = vmatprep.subr.mxu0 0.0
    %3522 = vmatpush1.msra.mxu0 0.0
    %3523 = vmatprep.subr.mxu0 0.0
    %3524 = vmatpush1.msra.mxu0 0.0
    %3525 = vmatprep.subr.mxu0 0.0
    %3526 = vmatpush1.msra.mxu0 0.0
    %3527 = vmatprep.subr.mxu0 0.0
    %3528 = vmatpush1.msra.mxu0 0.0
    %3529 = vmatprep.subr.mxu0 0.0
    %3530 = vmatpush1.msra.mxu0 0.0
    %3531 = vmatprep.subr.mxu0 0.0
    %3532 = vmatpush1.msra.mxu0 0.0
    %3533 = vmatprep.subr.mxu0 0.0
    %3534 = vmatpush1.msra.mxu0 0.0
    %3535 = vmatprep.subr.mxu0 0.0
    %3536 = vmatpush1.msra.mxu0 0.0
    %3537 = vmatprep.subr.mxu0 0.0
    %3538 = vmatpush1.msra.mxu0 0.0
    %3539 = vmatprep.subr.mxu0 0.0
    %3540 = vmatpush1.msra.mxu0 0.0
    %3541 = vmatprep.subr.mxu0 0.0
    %3542 = vmatpush1.msra.mxu0 0.0
    %3543 = vmatprep.subr.mxu0 0.0
    %3544 = vmatpush1.msra.mxu0 0.0
    %3545 = vmatprep.subr.mxu0 0.0
    %3546 = vmatpush1.msra.mxu0 0.0
    %3547 = vmatprep.mubr.f32.mxu0 0.0
    %3548 = vmatmul.mubr.f32.gmra.mrb[0].mxu0 %v3481
    %v3549 = vpop.f32.mrb[0].mxu0
    %v3550 = vadd.f32 %v3473, %v3549
    %v3551 = vpop.f32.mrb[0].mxu0
    %v3552 = vadd.f32 %v3475, %v3551
    %3553 = vdwg.mxu0
    %v3554 = vxor.u32 %v3550, 2147483648
    %v3555 = vxor.u32 %v3552, 2147483648
    %v3556 = vmul.f32 %v3554, 1.442695
    %v3557 = vpow.pop %v3556
    %v3558 = vmul.f32 %v3555, 1.442695
    %v3559 = vpow.pop %v3558
    %v3560 = vadd.f32 %v3557, 1.0
    %v3561 = vadd.f32 %v3559, 1.0
    %v3562 = vrcp.pop %v3560
    %v3563 = vmul.f32 1.0, %v3562
    %v3564 = vrcp.pop %v3561
    %v3565 = vmul.f32 1.0, %v3564
    %v3566 = vtanh.pop %v3552
    %v3567 = vmul.f32 %v3563, %v2818
    %v3568 = vmul.f32 %v3563, %v3566
    %3570 = vrot.lane.b32.xlu0 %v3568, 64
    %v3571 = vpop.permute.xlu0 %3570
    %v3573 = vadd.f32 %v3567, %v3571
    %v3574 = vtanh.pop %v3573
    %v3575 = vmul.f32 %v3565, %v3574
    %v3576 = vxor.u32 %v3575, 2147483648
    %v3577 = vmul.f32 %v3576, 1.442695
    %v3578 = vpow.pop %v3577
    %v3579 = vadd.f32 %v3578, 1.0
    %v3580 = vrcp.pop %v3579
    %v3581 = vmul.f32 1.0, %v3580
    %3583 = vrot.lane.b32.xlu0 %v3581, 64
    %v3584 = vpop.permute.xlu0 %3583
    %s3586 = scalar_lea.vmem [#allocation17], 4
    %3587 = vst.msk [vmem:[%s3586] sm:$0x1] %vm572, %v3584
    %v3588 = vld [vmem:[#allocation11] sm:$0xff]
    %v3589 = vld [vmem:[#allocation11 + $0x8] sm:$0xff]
    %v3590 = vld [vmem:[#allocation11 + $0x10] sm:$0xff]
    %v3591 = vld [vmem:[#allocation11 + $0x18] sm:$0xff]
    %v3592 = vld [vmem:[#allocation11 + $0x20] sm:$0xff]
    %v3593 = vld [vmem:[#allocation11 + $0x28] sm:$0xff]
    %v3594 = vld [vmem:[#allocation11 + $0x30] sm:$0xff]
    %v3595 = vld [vmem:[#allocation11 + $0x38] sm:$0xff]
    %v3596 = vld [vmem:[#allocation11 + $0x40] sm:$0xff]
    %v3597 = vld [vmem:[#allocation11 + $0x48] sm:$0xff]
    %v3598 = vld [vmem:[#allocation11 + $0x50] sm:$0xff]
    %v3599 = vld [vmem:[#allocation11 + $0x58] sm:$0xff]
    %v3600 = vld [vmem:[#allocation11 + $0x60] sm:$0xff]
    %v3601 = vld [vmem:[#allocation11 + $0x68] sm:$0xff]
    %v3602 = vld [vmem:[#allocation11 + $0x70] sm:$0xff]
    %v3603 = vld [vmem:[#allocation11 + $0x78] sm:$0xff]
    %v3604 = vld [vmem:[#allocation13] sm:$0xff]
    %v3605 = vld [vmem:[#allocation13 + $0x8] sm:$0xff]
    %v3606 = vld [vmem:[#allocation13 + $0x10] sm:$0xff]
    %v3607 = vld [vmem:[#allocation13 + $0x18] sm:$0xff]
    %v3608 = vld [vmem:[#allocation13 + $0x20] sm:$0xff]
    %v3609 = vld [vmem:[#allocation13 + $0x28] sm:$0xff]
    %v3610 = vld [vmem:[#allocation13 + $0x30] sm:$0xff]
    %v3611 = vld [vmem:[#allocation13 + $0x38] sm:$0xff]
    %v3612 = vld [vmem:[#allocation13 + $0x40] sm:$0xff]
    %v3613 = vld [vmem:[#allocation13 + $0x48] sm:$0xff]
    %v3614 = vld [vmem:[#allocation13 + $0x50] sm:$0xff]
    %v3615 = vld [vmem:[#allocation13 + $0x58] sm:$0xff]
    %v3616 = vld [vmem:[#allocation13 + $0x60] sm:$0xff]
    %v3617 = vld [vmem:[#allocation13 + $0x68] sm:$0xff]
    %v3618 = vld [vmem:[#allocation13 + $0x70] sm:$0xff]
    %v3619 = vld [vmem:[#allocation13 + $0x78] sm:$0xff]
    %3620 = vmatprep.subr.mxu0 %v3605
    %3621 = vmatpush1.msra.mxu0 %v3604
    %3622 = vmatprep.subr.mxu0 %v3607
    %3623 = vmatpush1.msra.mxu0 %v3606
    %3624 = vmatprep.subr.mxu0 %v3609
    %3625 = vmatpush1.msra.mxu0 %v3608
    %3626 = vmatprep.subr.mxu0 %v3611
    %3627 = vmatpush1.msra.mxu0 %v3610
    %3628 = vmatprep.subr.mxu0 %v3613
    %3629 = vmatpush1.msra.mxu0 %v3612
    %3630 = vmatprep.subr.mxu0 %v3615
    %3631 = vmatpush1.msra.mxu0 %v3614
    %3632 = vmatprep.subr.mxu0 %v3617
    %3633 = vmatpush1.msra.mxu0 %v3616
    %3634 = vmatprep.subr.mxu0 %v3619
    %3635 = vmatpush1.msra.mxu0 %v3618
    %3636 = vmatprep.subr.mxu0 0.0
    %3637 = vmatpush1.msra.mxu0 0.0
    %3638 = vmatprep.subr.mxu0 0.0
    %3639 = vmatpush1.msra.mxu0 0.0
    %3640 = vmatprep.subr.mxu0 0.0
    %3641 = vmatpush1.msra.mxu0 0.0
    %3642 = vmatprep.subr.mxu0 0.0
    %3643 = vmatpush1.msra.mxu0 0.0
    %3644 = vmatprep.subr.mxu0 0.0
    %3645 = vmatpush1.msra.mxu0 0.0
    %3646 = vmatprep.subr.mxu0 0.0
    %3647 = vmatpush1.msra.mxu0 0.0
    %3648 = vmatprep.subr.mxu0 0.0
    %3649 = vmatpush1.msra.mxu0 0.0
    %3650 = vmatprep.subr.mxu0 0.0
    %3651 = vmatpush1.msra.mxu0 0.0
    %3652 = vmatprep.subr.mxu0 0.0
    %3653 = vmatpush1.msra.mxu0 0.0
    %3654 = vmatprep.subr.mxu0 0.0
    %3655 = vmatpush1.msra.mxu0 0.0
    %3656 = vmatprep.subr.mxu0 0.0
    %3657 = vmatpush1.msra.mxu0 0.0
    %3658 = vmatprep.subr.mxu0 0.0
    %3659 = vmatpush1.msra.mxu0 0.0
    %3660 = vmatprep.subr.mxu0 0.0
    %3661 = vmatpush1.msra.mxu0 0.0
    %3662 = vmatprep.subr.mxu0 0.0
    %3663 = vmatpush1.msra.mxu0 0.0
    %3664 = vmatprep.subr.mxu0 0.0
    %3665 = vmatpush1.msra.mxu0 0.0
    %3666 = vmatprep.subr.mxu0 0.0
    %3667 = vmatpush1.msra.mxu0 0.0
    %3668 = vmatprep.subr.mxu0 0.0
    %3669 = vmatpush1.msra.mxu0 0.0
    %3670 = vmatprep.subr.mxu0 0.0
    %3671 = vmatpush1.msra.mxu0 0.0
    %3672 = vmatprep.subr.mxu0 0.0
    %3673 = vmatpush1.msra.mxu0 0.0
    %3674 = vmatprep.subr.mxu0 0.0
    %3675 = vmatpush1.msra.mxu0 0.0
    %3676 = vmatprep.subr.mxu0 0.0
    %3677 = vmatpush1.msra.mxu0 0.0
    %3678 = vmatprep.subr.mxu0 0.0
    %3679 = vmatpush1.msra.mxu0 0.0
    %3680 = vmatprep.subr.mxu0 0.0
    %3681 = vmatpush1.msra.mxu0 0.0
    %3682 = vmatprep.subr.mxu0 0.0
    %3683 = vmatpush1.msra.mxu0 0.0
    %3684 = vmatprep.mubr.f32.mxu0 0.0
    %3685 = vmatmul.mubr.f32.gmra.mrb[0].mxu0 %v3142
    %v3686 = vpop.f32.mrb[0].mxu0
    %v3687 = vadd.f32 0.0, %v3686
    %v3688 = vpop.f32.mrb[0].mxu0
    %v3689 = vadd.f32 0.0, %v3688
    %3690 = vdwg.mxu0
    %v3691 = vsel %vm172, %v3584, 0
    %3693 = vmatprep.subr.mxu0 %v3589
    %3694 = vmatpush1.msra.mxu0 %v3588
    %3695 = vmatprep.subr.mxu0 %v3591
    %3696 = vmatpush1.msra.mxu0 %v3590
    %3697 = vmatprep.subr.mxu0 %v3593
    %3698 = vmatpush1.msra.mxu0 %v3592
    %3699 = vmatprep.subr.mxu0 %v3595
    %3700 = vmatpush1.msra.mxu0 %v3594
    %3701 = vmatprep.subr.mxu0 %v3597
    %3702 = vmatpush1.msra.mxu0 %v3596
    %3703 = vmatprep.subr.mxu0 %v3599
    %3704 = vmatpush1.msra.mxu0 %v3598
    %3705 = vmatprep.subr.mxu0 %v3601
    %3706 = vmatpush1.msra.mxu0 %v3600
    %3707 = vmatprep.subr.mxu0 %v3603
    %3708 = vmatpush1.msra.mxu0 %v3602
    %3709 = vmatprep.subr.mxu0 0.0
    %3710 = vmatpush1.msra.mxu0 0.0
    %3711 = vmatprep.subr.mxu0 0.0
    %3712 = vmatpush1.msra.mxu0 0.0
    %3713 = vmatprep.subr.mxu0 0.0
    %3714 = vmatpush1.msra.mxu0 0.0
    %3715 = vmatprep.subr.mxu0 0.0
    %3716 = vmatpush1.msra.mxu0 0.0
    %3717 = vmatprep.subr.mxu0 0.0
    %3718 = vmatpush1.msra.mxu0 0.0
    %3719 = vmatprep.subr.mxu0 0.0
    %3720 = vmatpush1.msra.mxu0 0.0
    %3721 = vmatprep.subr.mxu0 0.0
    %3722 = vmatpush1.msra.mxu0 0.0
    %3723 = vmatprep.subr.mxu0 0.0
    %3724 = vmatpush1.msra.mxu0 0.0
    %3725 = vmatprep.subr.mxu0 0.0
    %3726 = vmatpush1.msra.mxu0 0.0
    %3727 = vmatprep.subr.mxu0 0.0
    %3728 = vmatpush1.msra.mxu0 0.0
    %3729 = vmatprep.subr.mxu0 0.0
    %3730 = vmatpush1.msra.mxu0 0.0
    %3731 = vmatprep.subr.mxu0 0.0
    %3732 = vmatpush1.msra.mxu0 0.0
    %3733 = vmatprep.subr.mxu0 0.0
    %3734 = vmatpush1.msra.mxu0 0.0
    %3735 = vmatprep.subr.mxu0 0.0
    %3736 = vmatpush1.msra.mxu0 0.0
    %3737 = vmatprep.subr.mxu0 0.0
    %3738 = vmatpush1.msra.mxu0 0.0
    %3739 = vmatprep.subr.mxu0 0.0
    %3740 = vmatpush1.msra.mxu0 0.0
    %3741 = vmatprep.subr.mxu0 0.0
    %3742 = vmatpush1.msra.mxu0 0.0
    %3743 = vmatprep.subr.mxu0 0.0
    %3744 = vmatpush1.msra.mxu0 0.0
    %3745 = vmatprep.subr.mxu0 0.0
    %3746 = vmatpush1.msra.mxu0 0.0
    %3747 = vmatprep.subr.mxu0 0.0
    %3748 = vmatpush1.msra.mxu0 0.0
    %3749 = vmatprep.subr.mxu0 0.0
    %3750 = vmatpush1.msra.mxu0 0.0
    %3751 = vmatprep.subr.mxu0 0.0
    %3752 = vmatpush1.msra.mxu0 0.0
    %3753 = vmatprep.subr.mxu0 0.0
    %3754 = vmatpush1.msra.mxu0 0.0
    %3755 = vmatprep.subr.mxu0 0.0
    %3756 = vmatpush1.msra.mxu0 0.0
    %3757 = vmatprep.mubr.f32.mxu0 0.0
    %3758 = vmatmul.mubr.f32.gmra.mrb[0].mxu0 %v3691
    %v3759 = vpop.f32.mrb[0].mxu0
    %v3760 = vadd.f32 %v3687, %v3759
    %v3761 = vpop.f32.mrb[0].mxu0
    %v3762 = vadd.f32 %v3689, %v3761
    %3763 = vdwg.mxu0
    %v3764 = vxor.u32 %v3760, 2147483648
    %v3765 = vxor.u32 %v3762, 2147483648
    %v3766 = vmul.f32 %v3764, 1.442695
    %v3767 = vpow.pop %v3766
    %v3768 = vmul.f32 %v3765, 1.442695
    %v3769 = vpow.pop %v3768
    %v3770 = vadd.f32 %v3767, 1.0
    %v3771 = vadd.f32 %v3769, 1.0
    %v3772 = vrcp.pop %v3770
    %v3773 = vmul.f32 1.0, %v3772
    %v3774 = vrcp.pop %v3771
    %v3775 = vmul.f32 1.0, %v3774
    %v3776 = vtanh.pop %v3762
    %v3777 = vmul.f32 %v3773, %v3028
    %v3778 = vmul.f32 %v3773, %v3776
    %3780 = vrot.lane.b32.xlu0 %v3778, 64
    %v3781 = vpop.permute.xlu0 %3780
    %v3783 = vadd.f32 %v3777, %v3781
    %v3784 = vtanh.pop %v3783
    %v3785 = vmul.f32 %v3775, %v3784
    %v3786 = vld [vmem:[#allocation14] sm:$0xff]
    %v3787 = vld [vmem:[#allocation14 + $0x8] sm:$0xff]
    %v3788 = vld [vmem:[#allocation14 + $0x10] sm:$0xff]
    %v3789 = vld [vmem:[#allocation14 + $0x18] sm:$0xff]
    %v3790 = vld [vmem:[#allocation14 + $0x20] sm:$0xff]
    %v3791 = vld [vmem:[#allocation14 + $0x28] sm:$0xff]
    %v3792 = vld [vmem:[#allocation14 + $0x30] sm:$0xff]
    %v3793 = vld [vmem:[#allocation14 + $0x38] sm:$0xff]
    %v3794 = vld [vmem:[#allocation14 + $0x40] sm:$0xff]
    %v3795 = vld [vmem:[#allocation14 + $0x48] sm:$0xff]
    %v3796 = vld [vmem:[#allocation14 + $0x50] sm:$0xff]
    %v3797 = vld [vmem:[#allocation14 + $0x58] sm:$0xff]
    %v3798 = vld [vmem:[#allocation14 + $0x60] sm:$0xff]
    %v3799 = vld [vmem:[#allocation14 + $0x68] sm:$0xff]
    %v3800 = vld [vmem:[#allocation14 + $0x70] sm:$0xff]
    %v3801 = vld [vmem:[#allocation14 + $0x78] sm:$0xff]
    %v3802 = vld [vmem:[#allocation16] sm:$0xff]
    %v3803 = vld [vmem:[#allocation16 + $0x8] sm:$0xff]
    %v3804 = vld [vmem:[#allocation16 + $0x10] sm:$0xff]
    %v3805 = vld [vmem:[#allocation16 + $0x18] sm:$0xff]
    %v3806 = vld [vmem:[#allocation16 + $0x20] sm:$0xff]
    %v3807 = vld [vmem:[#allocation16 + $0x28] sm:$0xff]
    %v3808 = vld [vmem:[#allocation16 + $0x30] sm:$0xff]
    %v3809 = vld [vmem:[#allocation16 + $0x38] sm:$0xff]
    %v3810 = vld [vmem:[#allocation16 + $0x40] sm:$0xff]
    %v3811 = vld [vmem:[#allocation16 + $0x48] sm:$0xff]
    %v3812 = vld [vmem:[#allocation16 + $0x50] sm:$0xff]
    %v3813 = vld [vmem:[#allocation16 + $0x58] sm:$0xff]
    %v3814 = vld [vmem:[#allocation16 + $0x60] sm:$0xff]
    %v3815 = vld [vmem:[#allocation16 + $0x68] sm:$0xff]
    %v3816 = vld [vmem:[#allocation16 + $0x70] sm:$0xff]
    %v3817 = vld [vmem:[#allocation16 + $0x78] sm:$0xff]
    %3819 = vrot.lane.b32.xlu0 %v3236, 64
    %v3820 = vpop.permute.xlu0 %3819
    %v3821 = vsel %vm172, %v3820, 0
    %3823 = vmatprep.subr.mxu0 %v3803
    %3824 = vmatpush1.msra.mxu0 %v3802
    %3825 = vmatprep.subr.mxu0 %v3805
    %3826 = vmatpush1.msra.mxu0 %v3804
    %3827 = vmatprep.subr.mxu0 %v3807
    %3828 = vmatpush1.msra.mxu0 %v3806
    %3829 = vmatprep.subr.mxu0 %v3809
    %3830 = vmatpush1.msra.mxu0 %v3808
    %3831 = vmatprep.subr.mxu0 %v3811
    %3832 = vmatpush1.msra.mxu0 %v3810
    %3833 = vmatprep.subr.mxu0 %v3813
    %3834 = vmatpush1.msra.mxu0 %v3812
    %3835 = vmatprep.subr.mxu0 %v3815
    %3836 = vmatpush1.msra.mxu0 %v3814
    %3837 = vmatprep.subr.mxu0 %v3817
    %3838 = vmatpush1.msra.mxu0 %v3816
    %3839 = vmatprep.subr.mxu0 0.0
    %3840 = vmatpush1.msra.mxu0 0.0
    %3841 = vmatprep.subr.mxu0 0.0
    %3842 = vmatpush1.msra.mxu0 0.0
    %3843 = vmatprep.subr.mxu0 0.0
    %3844 = vmatpush1.msra.mxu0 0.0
    %3845 = vmatprep.subr.mxu0 0.0
    %3846 = vmatpush1.msra.mxu0 0.0
    %3847 = vmatprep.subr.mxu0 0.0
    %3848 = vmatpush1.msra.mxu0 0.0
    %3849 = vmatprep.subr.mxu0 0.0
    %3850 = vmatpush1.msra.mxu0 0.0
    %3851 = vmatprep.subr.mxu0 0.0
    %3852 = vmatpush1.msra.mxu0 0.0
    %3853 = vmatprep.subr.mxu0 0.0
    %3854 = vmatpush1.msra.mxu0 0.0
    %3855 = vmatprep.subr.mxu0 0.0
    %3856 = vmatpush1.msra.mxu0 0.0
    %3857 = vmatprep.subr.mxu0 0.0
    %3858 = vmatpush1.msra.mxu0 0.0
    %3859 = vmatprep.subr.mxu0 0.0
    %3860 = vmatpush1.msra.mxu0 0.0
    %3861 = vmatprep.subr.mxu0 0.0
    %3862 = vmatpush1.msra.mxu0 0.0
    %3863 = vmatprep.subr.mxu0 0.0
    %3864 = vmatpush1.msra.mxu0 0.0
    %3865 = vmatprep.subr.mxu0 0.0
    %3866 = vmatpush1.msra.mxu0 0.0
    %3867 = vmatprep.subr.mxu0 0.0
    %3868 = vmatpush1.msra.mxu0 0.0
    %3869 = vmatprep.subr.mxu0 0.0
    %3870 = vmatpush1.msra.mxu0 0.0
    %3871 = vmatprep.subr.mxu0 0.0
    %3872 = vmatpush1.msra.mxu0 0.0
    %3873 = vmatprep.subr.mxu0 0.0
    %3874 = vmatpush1.msra.mxu0 0.0
    %3875 = vmatprep.subr.mxu0 0.0
    %3876 = vmatpush1.msra.mxu0 0.0
    %3877 = vmatprep.subr.mxu0 0.0
    %3878 = vmatpush1.msra.mxu0 0.0
    %3879 = vmatprep.subr.mxu0 0.0
    %3880 = vmatpush1.msra.mxu0 0.0
    %3881 = vmatprep.subr.mxu0 0.0
    %3882 = vmatpush1.msra.mxu0 0.0
    %3883 = vmatprep.subr.mxu0 0.0
    %3884 = vmatpush1.msra.mxu0 0.0
    %3885 = vmatprep.subr.mxu0 0.0
    %3886 = vmatpush1.msra.mxu0 0.0
    %3887 = vmatprep.mubr.f32.mxu0 0.0
    %3888 = vmatmul.mubr.f32.gmra.mrb[0].mxu0 %v3821
    %v3889 = vpop.f32.mrb[0].mxu0
    %v3890 = vadd.f32 0.0, %v3889
    %v3891 = vpop.f32.mrb[0].mxu0
    %v3892 = vadd.f32 0.0, %v3891
    %3893 = vdwg.mxu0
    %3895 = vrot.lane.b32.xlu0 %v3785, 64
    %v3896 = vpop.permute.xlu0 %3895
    %v3897 = vsel %vm172, %v3896, 0
    %3899 = vmatprep.subr.mxu0 %v3787
    %3900 = vmatpush1.msra.mxu0 %v3786
    %3901 = vmatprep.subr.mxu0 %v3789
    %3902 = vmatpush1.msra.mxu0 %v3788
    %3903 = vmatprep.subr.mxu0 %v3791
    %3904 = vmatpush1.msra.mxu0 %v3790
    %3905 = vmatprep.subr.mxu0 %v3793
    %3906 = vmatpush1.msra.mxu0 %v3792
    %3907 = vmatprep.subr.mxu0 %v3795
    %3908 = vmatpush1.msra.mxu0 %v3794
    %3909 = vmatprep.subr.mxu0 %v3797
    %3910 = vmatpush1.msra.mxu0 %v3796
    %3911 = vmatprep.subr.mxu0 %v3799
    %3912 = vmatpush1.msra.mxu0 %v3798
    %3913 = vmatprep.subr.mxu0 %v3801
    %3914 = vmatpush1.msra.mxu0 %v3800
    %3915 = vmatprep.subr.mxu0 0.0
    %3916 = vmatpush1.msra.mxu0 0.0
    %3917 = vmatprep.subr.mxu0 0.0
    %3918 = vmatpush1.msra.mxu0 0.0
    %3919 = vmatprep.subr.mxu0 0.0
    %3920 = vmatpush1.msra.mxu0 0.0
    %3921 = vmatprep.subr.mxu0 0.0
    %3922 = vmatpush1.msra.mxu0 0.0
    %3923 = vmatprep.subr.mxu0 0.0
    %3924 = vmatpush1.msra.mxu0 0.0
    %3925 = vmatprep.subr.mxu0 0.0
    %3926 = vmatpush1.msra.mxu0 0.0
    %3927 = vmatprep.subr.mxu0 0.0
    %3928 = vmatpush1.msra.mxu0 0.0
    %3929 = vmatprep.subr.mxu0 0.0
    %3930 = vmatpush1.msra.mxu0 0.0
    %3931 = vmatprep.subr.mxu0 0.0
    %3932 = vmatpush1.msra.mxu0 0.0
    %3933 = vmatprep.subr.mxu0 0.0
    %3934 = vmatpush1.msra.mxu0 0.0
    %3935 = vmatprep.subr.mxu0 0.0
    %3936 = vmatpush1.msra.mxu0 0.0
    %3937 = vmatprep.subr.mxu0 0.0
    %3938 = vmatpush1.msra.mxu0 0.0
    %3939 = vmatprep.subr.mxu0 0.0
    %3940 = vmatpush1.msra.mxu0 0.0
    %3941 = vmatprep.subr.mxu0 0.0
    %3942 = vmatpush1.msra.mxu0 0.0
    %3943 = vmatprep.subr.mxu0 0.0
    %3944 = vmatpush1.msra.mxu0 0.0
    %3945 = vmatprep.subr.mxu0 0.0
    %3946 = vmatpush1.msra.mxu0 0.0
    %3947 = vmatprep.subr.mxu0 0.0
    %3948 = vmatpush1.msra.mxu0 0.0
    %3949 = vmatprep.subr.mxu0 0.0
    %3950 = vmatpush1.msra.mxu0 0.0
    %3951 = vmatprep.subr.mxu0 0.0
    %3952 = vmatpush1.msra.mxu0 0.0
    %3953 = vmatprep.subr.mxu0 0.0
    %3954 = vmatpush1.msra.mxu0 0.0
    %3955 = vmatprep.subr.mxu0 0.0
    %3956 = vmatpush1.msra.mxu0 0.0
    %3957 = vmatprep.subr.mxu0 0.0
    %3958 = vmatpush1.msra.mxu0 0.0
    %3959 = vmatprep.subr.mxu0 0.0
    %3960 = vmatpush1.msra.mxu0 0.0
    %3961 = vmatprep.subr.mxu0 0.0
    %3962 = vmatpush1.msra.mxu0 0.0
    %3963 = vmatprep.mubr.f32.mxu0 0.0
    %3964 = vmatmul.mubr.f32.gmra.mrb[0].mxu0 %v3897
    %v3965 = vpop.f32.mrb[0].mxu0
    %v3966 = vadd.f32 %v3890, %v3965
    %v3967 = vpop.f32.mrb[0].mxu0
    %v3968 = vadd.f32 %v3892, %v3967
    %3969 = vdwg.mxu0
    %v3970 = vxor.u32 %v3966, 2147483648
    %v3971 = vxor.u32 %v3968, 2147483648
    %v3972 = vmul.f32 %v3970, 1.442695
    %v3973 = vpow.pop %v3972
    %v3974 = vmul.f32 %v3971, 1.442695
    %v3975 = vpow.pop %v3974
    %v3976 = vadd.f32 %v3973, 1.0
    %v3977 = vadd.f32 %v3975, 1.0
    %v3978 = vrcp.pop %v3976
    %v3979 = vmul.f32 1.0, %v3978
    %v3980 = vrcp.pop %v3977
    %v3981 = vmul.f32 1.0, %v3980
    %v3982 = vtanh.pop %v3968
    %v3983 = vmul.f32 %v3979, %v3234
    %v3984 = vmul.f32 %v3979, %v3982
    %3986 = vrot.lane.b32.xlu0 %v3984, 64
    %v3987 = vpop.permute.xlu0 %3986
    %v3989 = vadd.f32 %v3983, %v3987
    %v3990 = vtanh.pop %v3989
    %v3991 = vmul.f32 %v3981, %v3990
    %v3992 = vxor.u32 %v3991, 2147483648
    %v3993 = vmul.f32 %v3992, 1.442695
    %v3994 = vpow.pop %v3993
    %v3995 = vadd.f32 %v3994, 1.0
    %v3996 = vrcp.pop %v3995
    %v3997 = vmul.f32 1.0, %v3996
    %3999 = vrot.lane.b32.xlu0 %v3997, 64
    %v4000 = vpop.permute.xlu0 %3999
    %s4002 = scalar_lea.vmem %s9, 4
    %4003 = vst.msk [vmem:[%s4002] sm:$0x1] %vm572, %v4000
    // Predicated region
    $region74: #{_lambda_.1} parent=1 // pred_check
      _
    $region75: #{_lambda_.1} parent=1 // pred_check_branch
      %4005 = sbr.rel (0) target = $region77
    $region76: #{_lambda_.1} parent=1 // pred_region
      _
    $region77: #{_lambda_.1} parent=1 // pred_fallthru
      _
    // Predicated region
    $region78: #{_lambda_.1} parent=1 // pred_check
      _
    $region79: #{_lambda_.1} parent=1 // pred_check_branch
      %4007 = sbr.rel (0) target = $region81
    $region80: #{_lambda_.1} parent=1 // pred_region
      %s4009 = ssub.s32 80, 80
      %4010 = vsyncadd [#allocation4], %s4009
      %s4011 = sshll.u32 [#allocation17], 4
      %s4012 = int_to_ptr.vmem [resolvable:$true] %s4011
      %4017 = dma.vmem_to_hbm [thread:$0]  %s4012, 80, %s10, [#allocation4], 16, 16, 1
    $region81: #{_lambda_.1} parent=1 // pred_fallthru
      _
    // Predicated region
    $region82: #{_lambda_.1} parent=1 // pred_check
      _
    $region83: #{_lambda_.1} parent=1 // pred_check_branch
      %4019 = sbr.rel (0) target = $region85
    $region84: #{_lambda_.1} parent=1 // pred_region
      _
    $region85: #{_lambda_.1} parent=1 // pred_fallthru
      _
    // Predicated region
    $region86: #{_lambda_.1} parent=1 // pred_check
      _
    $region87: #{_lambda_.1} parent=1 // pred_check_branch
      %4021 = sbr.rel (0) target = $region89
    $region88: #{_lambda_.1} parent=1 // pred_region
      %4022 = dma.done [#allocation4], 80
    $region89: #{_lambda_.1} parent=1 // pred_fallthru
      _
    %4023 = vsyncpa [#allocation3], 1
    %4024 = vsyncpa [#allocation6], 1
    %4025 = vsyncpa [#allocation9], 1
    %4026 = vsyncpa [#allocation12], 1
    %4027 = vsyncpa [#allocation15], 1
    %4028 = vsyncpa [#allocation4], 1

</llo_original>
